<compile_context>
chip_gen: v7x
topology: tpu7x:2x2x1
jax: 0.10.0
libtpu: 0.0.40
codegen_flags: <defaults>
</compile_context>

<pallas_src>
import functools

import jax
import jax.numpy as jnp
from jax.experimental import pallas as pl
from jax.experimental.pallas import tpu as pltpu


def _linear_clamp_kernel(x_ref, w_ref, b_ref, o_ref, *, min_value, max_value):
    # x_ref: (TM, K)  w_ref: (K, N)  b_ref: (1, N)  o_ref: (TM, N)
    x = x_ref[...]
    w = w_ref[...]
    K = w_ref.shape[0]

    # K=3 contraction as unrolled VPU multiply-adds (no MXU push/pop):
    #   y[:, n] = sum_k x[:, k] * w[k, n] + b[n]
    acc = x[:, 0:1] * w[0:1, :]
    for k in range(1, K):
        acc = acc + x[:, k:k + 1] * w[k:k + 1, :]
    y = acc + b_ref[...]                     # bias broadcast over rows

    y = jnp.maximum(y, min_value)            # torch.clamp_min
    y = jnp.minimum(y, max_value)            # torch.clamp_max
    o_ref[...] = y.astype(o_ref.dtype)


def linear_clamp(x, w, b, min_value, max_value, *, tm=2048):
    """x: (..., K) float32; w: (K, N); b: (N,).  Returns (..., N)."""
    orig_shape = x.shape
    K = orig_shape[-1]
    N = w.shape[1]
    x2 = x.reshape(-1, K)
    M = x2.shape[0]

    if M <= tm:
        tm_eff = M                           # single block; full-dim block is legal
    else:
        tm_eff = max(8, (tm // 8) * 8)       # row tiles must be sublane-aligned

    grid = (pl.cdiv(M, tm_eff),)             # ragged tail handled by Pallas masking

    b2 = b.reshape(1, N)

    kernel = functools.partial(
        _linear_clamp_kernel, min_value=min_value, max_value=max_value)

    cost = pl.CostEstimate(
        flops=2 * M * K * N,
        transcendentals=0,
        bytes_accessed=4 * (M * K + K * N + N + M * N))

    out = pl.pallas_call(
        kernel,
        out_shape=jax.ShapeDtypeStruct((M, N), jnp.float32),
        grid_spec=pltpu.PrefetchScalarGridSpec(
            num_scalar_prefetch=0,
            grid=grid,
            in_specs=[
                # large row tile of the input; K (=3) is the full last dim
                pl.BlockSpec((tm_eff, K), lambda i: (i, 0)),
                # weight / bias resident (constant block index -> no re-DMA)
                pl.BlockSpec((K, N), lambda i: (0, 0)),
                pl.BlockSpec((1, N), lambda i: (0, 0)),
            ],
            out_specs=pl.BlockSpec((tm_eff, N), lambda i: (i, 0)),
        ),
        compiler_params=pltpu.CompilerParams(
            dimension_semantics=("parallel",)),
        cost_estimate=cost,
    )(x2, w, b2)

    return out.reshape(*orig_shape[:-1], N)


def make_params(key, in_features=3, out_features=8):
    """Deterministic nn.Linear-style init (uniform in +/- 1/sqrt(fan_in))."""
    kw, kb = jax.random.split(key)
    bound = 1.0 / (in_features ** 0.5)
    # PyTorch stores weight as (out, in); we keep the (in, out) matmul layout.
    w = jax.random.uniform(kw, (in_features, out_features),
                           jnp.float32, -bound, bound)
    b = jax.random.uniform(kb, (out_features,), jnp.float32, -bound, bound)
    return w, b


if __name__ == "__main__":
    key = jax.random.PRNGKey(0)
    k_x1, k_x2, k_x3, k_p = jax.random.split(key, 4)

    w, b = make_params(k_p)
    min_value, max_value = -0.5, 0.5

    def ref_fn(x):
        return jnp.minimum(jnp.maximum(x @ w + b, min_value), max_value)

    # (1) Spec-sized image (3 channels, 64x64), channels-last so Linear(3,8)
    #     applies over the channel axis.  M=4096 -> 2 parallel row blocks.
    x_a = jax.random.normal(k_x1, (1, 64, 64, 3), jnp.float32)
    out_a = jax.block_until_ready(linear_clamp(x_a, w, b, min_value, max_value))
    assert out_a.shape == (1, 64, 64, 8)
    assert jnp.allclose(out_a, ref_fn(x_a), atol=1e-5, rtol=1e-5)

    # (2) Small case: M=512 -> single block, grid=(1,).
    x_b = jax.random.normal(k_x2, (2, 16, 16, 3), jnp.float32)
    out_b = jax.block_until_ready(linear_clamp(x_b, w, b, min_value, max_value))
    assert out_b.shape == (2, 16, 16, 8)
    assert jnp.allclose(out_b, ref_fn(x_b), atol=1e-5, rtol=1e-5)

    # (3) Ragged case: M=500 with a small forced tile -> 4 blocks, the masked
    #     tail is handled in-pipeline (no host-side pad / slice passes).
    x_c = jax.random.normal(k_x3, (5, 10, 10, 3), jnp.float32)
    out_c = jax.block_until_ready(
        linear_clamp(x_c, w, b, min_value, max_value, tm=128))
    assert out_c.shape == (5, 10, 10, 8)
    assert jnp.allclose(out_c, ref_fn(x_c), atol=1e-5, rtol=1e-5)

    print("KERNEL_OK")
</pallas_src>

<mosaic_0001>
module attributes {stable_mosaic.version = 11 : i64} {
  func.func @_linear_clamp_kernel(%arg0: i32, %arg1: memref<2048x3xf32, #tpu.memory_space<vmem>>, %arg2: memref<3x8xf32, #tpu.memory_space<vmem>>, %arg3: memref<1x8xf32, #tpu.memory_space<vmem>>, %arg4: memref<2048x8xf32, #tpu.memory_space<vmem>>) attributes {dimension_semantics = [#tpu.dimension_semantics<parallel>], iteration_bounds = array<i64: 2>, scalar_prefetch = 0 : i64, scratch_operands = 0 : i64, tpu.core_type = #tpu.core_type<tc>, window_params = [{transform_indices = @transform_0, window_bounds = array<i64: 2048, 3>}, {pipeline_mode = #tpu.pipeline_mode<synchronous>, transform_indices = @transform_1, window_bounds = array<i64: 3, 8>}, {pipeline_mode = #tpu.pipeline_mode<synchronous>, transform_indices = @transform_2, window_bounds = array<i64: 1, 8>}, {transform_indices = @transform_3, window_bounds = array<i64: 2048, 8>}]} {
    %c0 = arith.constant 0 : index
    %c0_0 = arith.constant 0 : index
    %0 = vector.load %arg1[%c0, %c0_0] : memref<2048x3xf32, #tpu.memory_space<vmem>>, vector<2048x3xf32>
    %c0_1 = arith.constant 0 : index
    %c0_2 = arith.constant 0 : index
    %1 = vector.load %arg2[%c0_1, %c0_2] : memref<3x8xf32, #tpu.memory_space<vmem>>, vector<3x8xf32>
    %2 = vector.extract_strided_slice %0 {offsets = [0, 0], sizes = [2048, 1], strides = [1, 1]} : vector<2048x3xf32> to vector<2048x1xf32>
    %3 = vector.extract_strided_slice %1 {offsets = [0, 0], sizes = [1, 8], strides = [1, 1]} : vector<3x8xf32> to vector<1x8xf32>
    %4 = vector.broadcast %2 : vector<2048x1xf32> to vector<2048x8xf32>
    %5 = vector.broadcast %3 : vector<1x8xf32> to vector<2048x8xf32>
    %6 = arith.mulf %4, %5 : vector<2048x8xf32>
    %7 = vector.extract_strided_slice %0 {offsets = [0, 1], sizes = [2048, 1], strides = [1, 1]} : vector<2048x3xf32> to vector<2048x1xf32>
    %8 = vector.extract_strided_slice %1 {offsets = [1, 0], sizes = [1, 8], strides = [1, 1]} : vector<3x8xf32> to vector<1x8xf32>
    %9 = vector.broadcast %7 : vector<2048x1xf32> to vector<2048x8xf32>
    %10 = vector.broadcast %8 : vector<1x8xf32> to vector<2048x8xf32>
    %11 = arith.mulf %9, %10 : vector<2048x8xf32>
    %12 = arith.addf %6, %11 : vector<2048x8xf32>
    %13 = vector.extract_strided_slice %0 {offsets = [0, 2], sizes = [2048, 1], strides = [1, 1]} : vector<2048x3xf32> to vector<2048x1xf32>
    %14 = vector.extract_strided_slice %1 {offsets = [2, 0], sizes = [1, 8], strides = [1, 1]} : vector<3x8xf32> to vector<1x8xf32>
    %15 = vector.broadcast %13 : vector<2048x1xf32> to vector<2048x8xf32>
    %16 = vector.broadcast %14 : vector<1x8xf32> to vector<2048x8xf32>
    %17 = arith.mulf %15, %16 : vector<2048x8xf32>
    %18 = arith.addf %12, %17 : vector<2048x8xf32>
    %c0_3 = arith.constant 0 : index
    %c0_4 = arith.constant 0 : index
    %19 = vector.load %arg3[%c0_3, %c0_4] : memref<1x8xf32, #tpu.memory_space<vmem>>, vector<1x8xf32>
    %20 = vector.broadcast %19 : vector<1x8xf32> to vector<2048x8xf32>
    %21 = arith.addf %18, %20 : vector<2048x8xf32>
    %cst = arith.constant -5.000000e-01 : f32
    %22 = vector.broadcast %cst : f32 to vector<2048x8xf32>
    %23 = arith.maximumf %21, %22 : vector<2048x8xf32>
    %cst_5 = arith.constant 5.000000e-01 : f32
    %24 = vector.broadcast %cst_5 : f32 to vector<2048x8xf32>
    %25 = arith.minimumf %23, %24 : vector<2048x8xf32>
    %c0_6 = arith.constant 0 : index
    %c0_7 = arith.constant 0 : index
    %26 = vector.load %arg4[%c0_6, %c0_7] : memref<2048x8xf32, #tpu.memory_space<vmem>>, vector<2048x8xf32>
    tpu.vector_store %arg4[%c0_6, %c0_7], %25 {strides = array<i32>} : memref<2048x8xf32, #tpu.memory_space<vmem>>, vector<2048x8xf32>,
    return
  }
  func.func @transform_0(%arg0: i32) -> (i32, i32) {
    %c0_i32 = arith.constant 0 : i32
    %c0_i32_0 = arith.constant 0 : i32
    return %arg0, %c0_i32 : i32, i32
  }
  func.func @transform_1(%arg0: i32) -> (i32, i32) {
    %c0_i32 = arith.constant 0 : i32
    %c0_i32_0 = arith.constant 0 : i32
    %c0_i32_1 = arith.constant 0 : i32
    return %c0_i32, %c0_i32_0 : i32, i32
  }
  func.func @transform_2(%arg0: i32) -> (i32, i32) {
    %c0_i32 = arith.constant 0 : i32
    %c0_i32_0 = arith.constant 0 : i32
    %c0_i32_1 = arith.constant 0 : i32
    return %c0_i32, %c0_i32_0 : i32, i32
  }
  func.func @transform_3(%arg0: i32) -> (i32, i32) {
    %c0_i32 = arith.constant 0 : i32
    %c0_i32_0 = arith.constant 0 : i32
    return %arg0, %c0_i32 : i32, i32
  }
}

</mosaic_0001>

<llo_original>
// kernel: tpu_custom_call.1
$region0: #{tpu_custom_call.1}
  #allocation0 [shape = 'u32[]', space=smem, size = 0x4, offset = 0x4, fixed_abs, tag = 'smem constant byte address 0x4 - core index']
  #allocation1 [shape = 'u32[144,128]{1,0:T(1,128)}', space=vmem, size = 0x12000, scoped, tag = 'internal scratch']
  %s0 = inlined_call_operand.vmem [shape: f32[4096,3], index: 0, kind: input, shape index: {}]
  %s1 = inlined_call_operand.vmem [shape: f32[3,8], index: 1, kind: input, shape index: {}]
  %s2 = inlined_call_operand.vmem [shape: f32[1,8], index: 2, kind: input, shape index: {}]
  %s3 = inlined_call_operand.vmem [shape: f32[4096,8], index: 3, kind: output, shape index: {}]
  %s4 = sld [smem:[#allocation0]]
  $region45: #{tpu_custom_call.1} parent=0
    _
  %s6 = ssub.s32 1, %s4
  %s7 = scalar_select 0, %s6, %s4
  loop: start=0, step=1, limit=4
  $region2: #{tpu_custom_call.1} parent=0 // loop_pre_header
    _
  $region3: #{tpu_custom_call.1} parent=0 // loop_header
    %s9 = sphi 0, %s13
    %p10 = scmp.ge.s32.totalorder %s9, 4
    %s19 = sphi 0, %s21
    %s22 = sphi 0, %s19
    %s23 = sphi 0, %s22
    %s39 = sphi 0, %s23
    %s43 = sphi 0, %s43
    %s45 = sphi 0, %s43
    %s46 = sphi 0, %s45
    %s60 = sphi 0, %s46
    %s64 = sphi 0, %s64
    %s66 = sphi 0, %s64
    %s67 = sphi 0, %s66
    %s81 = sphi 0, %s67
    %s87 = sphi 0, %s89
    %s90 = sphi 0, %s87
    %s91 = sphi 0, %s90
    %s107 = sphi 0, %s91
  $region4: #{tpu_custom_call.1} parent=0 // loop_header_branch
    %12 = sbr.rel (%p10) target = $region8
  $region5: #{tpu_custom_call.1} parent=0 // loop_body
    %s14 = ssub.s32 %s9, 1
    %s15 = ssub.s32 %s9, 2
    %s16 = sadd.s32 %s9, 1
    %s17 = ssub.s32 %s9, %s16
    %p18 = scmp.eq.s32.totalorder %s17, 0
    %s20 = sadd.s32 %s19, 1
    %s21 = scalar_select %p18, %s19, %s20
    %p24 = pneg %p18
    %p25 = scmp.eq.s32.totalorder %s9, 1
    %p26 = por %p24, %p25
    %p27 = scmp.ne.s32.totalorder %s19, %s22
    %p28 = scmp.eq.s32.totalorder %s9, 0
    %p29 = por %p27, %p28
    %p30 = scmp.ne.s32.totalorder %s19, %s22
    %p31 = scmp.eq.s32.totalorder %s14, 1
    %p32 = por %p30, %p31
    %p33 = scmp.ne.s32.totalorder %s22, %s23
    %p34 = scmp.eq.s32.totalorder %s14, 0
    %p35 = por %p33, %p34
    %p36 = scmp.ne.s32.totalorder %s22, %s23
    %p37 = scmp.eq.s32.totalorder %s15, 1
    %p38 = por %p36, %p37
    %p40 = scmp.ne.s32.totalorder %s23, %s39
    %p41 = scmp.eq.s32.totalorder %s15, 0
    %p42 = por %p40, %p41
    %s44 = sadd.s32 %s43, 1
    %p47 = scmp.eq.s32.totalorder %s9, 1
    %p48 = scmp.ne.s32.totalorder %s43, %s45
    %p49 = scmp.eq.s32.totalorder %s9, 0
    %p50 = por %p48, %p49
    %p51 = scmp.ne.s32.totalorder %s43, %s45
    %p52 = scmp.eq.s32.totalorder %s14, 1
    %p53 = por %p51, %p52
    %p54 = scmp.ne.s32.totalorder %s45, %s46
    %p55 = scmp.eq.s32.totalorder %s14, 0
    %p56 = por %p54, %p55
    %p57 = scmp.ne.s32.totalorder %s45, %s46
    %p58 = scmp.eq.s32.totalorder %s15, 1
    %p59 = por %p57, %p58
    %p61 = scmp.ne.s32.totalorder %s46, %s60
    %p62 = scmp.eq.s32.totalorder %s15, 0
    %p63 = por %p61, %p62
    %s65 = sadd.s32 %s64, 1
    %p68 = scmp.eq.s32.totalorder %s9, 1
    %p69 = scmp.ne.s32.totalorder %s64, %s66
    %p70 = scmp.eq.s32.totalorder %s9, 0
    %p71 = por %p69, %p70
    %p72 = scmp.ne.s32.totalorder %s64, %s66
    %p73 = scmp.eq.s32.totalorder %s14, 1
    %p74 = por %p72, %p73
    %p75 = scmp.ne.s32.totalorder %s66, %s67
    %p76 = scmp.eq.s32.totalorder %s14, 0
    %p77 = por %p75, %p76
    %p78 = scmp.ne.s32.totalorder %s66, %s67
    %p79 = scmp.eq.s32.totalorder %s15, 1
    %p80 = por %p78, %p79
    %p82 = scmp.ne.s32.totalorder %s67, %s81
    %p83 = scmp.eq.s32.totalorder %s15, 0
    %p84 = por %p82, %p83
    %s85 = ssub.s32 %s9, %s16
    %p86 = scmp.eq.s32.totalorder %s85, 0
    %s88 = sadd.s32 %s87, 1
    %s89 = scalar_select %p86, %s87, %s88
    %p92 = pneg %p86
    %p93 = scmp.eq.s32.totalorder %s9, 1
    %p94 = por %p92, %p93
    %p95 = scmp.ne.s32.totalorder %s87, %s90
    %p96 = scmp.eq.s32.totalorder %s9, 0
    %p97 = por %p95, %p96
    %p98 = scmp.ne.s32.totalorder %s87, %s90
    %p99 = scmp.eq.s32.totalorder %s14, 1
    %p100 = por %p98, %p99
    %p101 = scmp.ne.s32.totalorder %s90, %s91
    %p102 = scmp.eq.s32.totalorder %s14, 0
    %p103 = por %p101, %p102
    %p104 = scmp.ne.s32.totalorder %s90, %s91
    %p105 = scmp.eq.s32.totalorder %s15, 1
    %p106 = por %p104, %p105
    %p108 = scmp.ne.s32.totalorder %s91, %s107
    %p109 = scmp.eq.s32.totalorder %s15, 0
    %p110 = por %p108, %p109
    %p111 = scmp.le.s32.totalorder 1, %s9
    %p112 = scmp.lt.s32.totalorder %s9, 3
    %p113 = pnand %p111, %p112
    %p114 = pneg %p113
    // Predicated region
    $region9: #{tpu_custom_call.1} parent=5 // pred_check
      _
    $region10: #{tpu_custom_call.1} parent=5 // pred_check_branch
      %116 = sbr.rel (%p113) target = $region12
    $region11: #{tpu_custom_call.1} parent=5 // pred_region
      %s117 = ssub.s32 %s9, 1
      // Predicated region
      $region13: #{tpu_custom_call.1} parent=11 // pred_check
        %p118 = pneg %p56
      $region14: #{tpu_custom_call.1} parent=11 // pred_check_branch
        %120 = sbr.rel (%p118) target = $region16
      $region15: #{tpu_custom_call.1} parent=11 // pred_region
        _
      $region16: #{tpu_custom_call.1} parent=11 // pred_fallthru
        _
      // Predicated region
      $region17: #{tpu_custom_call.1} parent=11 // pred_check
        %p121 = pneg %p77
      $region18: #{tpu_custom_call.1} parent=11 // pred_check_branch
        %123 = sbr.rel (%p121) target = $region20
      $region19: #{tpu_custom_call.1} parent=11 // pred_region
        _
      $region20: #{tpu_custom_call.1} parent=11 // pred_fallthru
        _
    $region12: #{tpu_custom_call.1} parent=5 // pred_fallthru
      _
    %p124 = scmp.lt.s32.totalorder %s9, 2
    // Predicated region
    $region21: #{tpu_custom_call.1} parent=5 // pred_check
      %p125 = pneg %p124
    $region22: #{tpu_custom_call.1} parent=5 // pred_check_branch
      %127 = sbr.rel (%p125) target = $region24
    $region23: #{tpu_custom_call.1} parent=5 // pred_region
      // Predicated region
      $region25: #{tpu_custom_call.1} parent=23 // pred_check
        %p128 = pneg %p29
      $region26: #{tpu_custom_call.1} parent=23 // pred_check_branch
        %130 = sbr.rel (%p128) target = $region28
      $region27: #{tpu_custom_call.1} parent=23 // pred_region
        %s131 = smul.u32 256, %s9
        %p132 = scmp.lt.s32.totalorder %s131, 511
        %s133 = scalar_select %p132, %s131, 511
        %s134 = smul.addr %s133, 8
        %s135 = scalar_lea.vmem %s0, %s134
        %s136 = smul.u32 256, %s9
      $region28: #{tpu_custom_call.1} parent=23 // pred_fallthru
        _
    $region24: #{tpu_custom_call.1} parent=5 // pred_fallthru
      _
    %p137 = scmp.le.s32.totalorder 1, %s9
    %p138 = scmp.lt.s32.totalorder %s9, 3
    %p139 = pnand %p137, %p138
    %p140 = pneg %p139
    // Predicated region
    $region29: #{tpu_custom_call.1} parent=5 // pred_check
      _
    $region30: #{tpu_custom_call.1} parent=5 // pred_check_branch
      %142 = sbr.rel (%p139) target = $region32
    $region31: #{tpu_custom_call.1} parent=5 // pred_region
      %s143 = ssub.s32 %s9, 1
      %s144 = smul.u32 256, %s14
      %p145 = scmp.lt.s32.totalorder %s144, 511
      %s146 = scalar_select %p145, %s144, 511
      %s147 = smul.addr %s146, 8
      %s148 = scalar_lea.vmem %s0, %s147
      %p149 = pneg %p35
      %p150 = pneg %p32
      %p151 = pneg %p56
      %p152 = pneg %p53
      %p153 = pneg %p77
      %p154 = pneg %p74
      %p155 = pneg %p103
      %p156 = pneg %p100
      %s157 = smul.u32 256, %s14
      %p158 = scmp.lt.s32.totalorder %s157, 511
      %s159 = scalar_select %p158, %s157, 511
      %s160 = smul.addr %s159, 8
      %s161 = scalar_lea.vmem %s3, %s160
      %s162 = smul.u32 256, %s14
      %p163 = scmp.lt.s32.totalorder %s162, 511
      %s164 = scalar_select %p163, %s162, 511
      %s165 = smul.addr %s164, 8
      %s166 = scalar_lea.vmem %s0, %s165
      %s167 = smul.u32 256, %s14
      %s168 = smul.u32 256, %s14
      %p169 = scmp.lt.s32.totalorder %s168, 511
      %s170 = scalar_select %p169, %s168, 511
      %s171 = smul.addr %s170, 8
      %s172 = scalar_lea.vmem %s3, %s171
      %s173 = smul.u32 256, %s14
      %v174 = vld [vmem:[%s166] sm:$0xff]
      %v175 = vld [vmem:[%s166 + $0x8] sm:$0xff]
      %v176 = vld [vmem:[%s166 + $0x10] sm:$0xff]
      %v177 = vld [vmem:[%s166 + $0x18] sm:$0xff]
      %v178 = vld [vmem:[%s166 + $0x20] sm:$0xff]
      %v179 = vld [vmem:[%s166 + $0x28] sm:$0xff]
      %v180 = vld [vmem:[%s166 + $0x30] sm:$0xff]
      %v181 = vld [vmem:[%s166 + $0x38] sm:$0xff]
      %v182 = vld [vmem:[%s166 + $0x40] sm:$0xff]
      %v183 = vld [vmem:[%s166 + $0x48] sm:$0xff]
      %v184 = vld [vmem:[%s166 + $0x50] sm:$0xff]
      %v185 = vld [vmem:[%s166 + $0x58] sm:$0xff]
      %v186 = vld [vmem:[%s166 + $0x60] sm:$0xff]
      %v187 = vld [vmem:[%s166 + $0x68] sm:$0xff]
      %v188 = vld [vmem:[%s166 + $0x70] sm:$0xff]
      %v189 = vld [vmem:[%s166 + $0x78] sm:$0xff]
      %v190 = vld [vmem:[%s166 + $0x80] sm:$0xff]
      %v191 = vld [vmem:[%s166 + $0x88] sm:$0xff]
      %v192 = vld [vmem:[%s166 + $0x90] sm:$0xff]
      %v193 = vld [vmem:[%s166 + $0x98] sm:$0xff]
      %v194 = vld [vmem:[%s166 + $0xa0] sm:$0xff]
      %v195 = vld [vmem:[%s166 + $0xa8] sm:$0xff]
      %v196 = vld [vmem:[%s166 + $0xb0] sm:$0xff]
      %v197 = vld [vmem:[%s166 + $0xb8] sm:$0xff]
      %v198 = vld [vmem:[%s166 + $0xc0] sm:$0xff]
      %v199 = vld [vmem:[%s166 + $0xc8] sm:$0xff]
      %v200 = vld [vmem:[%s166 + $0xd0] sm:$0xff]
      %v201 = vld [vmem:[%s166 + $0xd8] sm:$0xff]
      %v202 = vld [vmem:[%s166 + $0xe0] sm:$0xff]
      %v203 = vld [vmem:[%s166 + $0xe8] sm:$0xff]
      %v204 = vld [vmem:[%s166 + $0xf0] sm:$0xff]
      %v205 = vld [vmem:[%s166 + $0xf8] sm:$0xff]
      %v206 = vld [vmem:[%s166 + $0x100] sm:$0xff]
      %v207 = vld [vmem:[%s166 + $0x108] sm:$0xff]
      %v208 = vld [vmem:[%s166 + $0x110] sm:$0xff]
      %v209 = vld [vmem:[%s166 + $0x118] sm:$0xff]
      %v210 = vld [vmem:[%s166 + $0x120] sm:$0xff]
      %v211 = vld [vmem:[%s166 + $0x128] sm:$0xff]
      %v212 = vld [vmem:[%s166 + $0x130] sm:$0xff]
      %v213 = vld [vmem:[%s166 + $0x138] sm:$0xff]
      %v214 = vld [vmem:[%s166 + $0x140] sm:$0xff]
      %v215 = vld [vmem:[%s166 + $0x148] sm:$0xff]
      %v216 = vld [vmem:[%s166 + $0x150] sm:$0xff]
      %v217 = vld [vmem:[%s166 + $0x158] sm:$0xff]
      %v218 = vld [vmem:[%s166 + $0x160] sm:$0xff]
      %v219 = vld [vmem:[%s166 + $0x168] sm:$0xff]
      %v220 = vld [vmem:[%s166 + $0x170] sm:$0xff]
      %v221 = vld [vmem:[%s166 + $0x178] sm:$0xff]
      %v222 = vld [vmem:[%s166 + $0x180] sm:$0xff]
      %v223 = vld [vmem:[%s166 + $0x188] sm:$0xff]
      %v224 = vld [vmem:[%s166 + $0x190] sm:$0xff]
      %v225 = vld [vmem:[%s166 + $0x198] sm:$0xff]
      %v226 = vld [vmem:[%s166 + $0x1a0] sm:$0xff]
      %v227 = vld [vmem:[%s166 + $0x1a8] sm:$0xff]
      %v228 = vld [vmem:[%s166 + $0x1b0] sm:$0xff]
      %v229 = vld [vmem:[%s166 + $0x1b8] sm:$0xff]
      %v230 = vld [vmem:[%s166 + $0x1c0] sm:$0xff]
      %v231 = vld [vmem:[%s166 + $0x1c8] sm:$0xff]
      %v232 = vld [vmem:[%s166 + $0x1d0] sm:$0xff]
      %v233 = vld [vmem:[%s166 + $0x1d8] sm:$0xff]
      %v234 = vld [vmem:[%s166 + $0x1e0] sm:$0xff]
      %v235 = vld [vmem:[%s166 + $0x1e8] sm:$0xff]
      %v236 = vld [vmem:[%s166 + $0x1f0] sm:$0xff]
      %v237 = vld [vmem:[%s166 + $0x1f8] sm:$0xff]
      %v238 = vld [vmem:[%s166 + $0x200] sm:$0xff]
      %v239 = vld [vmem:[%s166 + $0x208] sm:$0xff]
      %v240 = vld [vmem:[%s166 + $0x210] sm:$0xff]
      %v241 = vld [vmem:[%s166 + $0x218] sm:$0xff]
      %v242 = vld [vmem:[%s166 + $0x220] sm:$0xff]
      %v243 = vld [vmem:[%s166 + $0x228] sm:$0xff]
      %v244 = vld [vmem:[%s166 + $0x230] sm:$0xff]
      %v245 = vld [vmem:[%s166 + $0x238] sm:$0xff]
      %v246 = vld [vmem:[%s166 + $0x240] sm:$0xff]
      %v247 = vld [vmem:[%s166 + $0x248] sm:$0xff]
      %v248 = vld [vmem:[%s166 + $0x250] sm:$0xff]
      %v249 = vld [vmem:[%s166 + $0x258] sm:$0xff]
      %v250 = vld [vmem:[%s166 + $0x260] sm:$0xff]
      %v251 = vld [vmem:[%s166 + $0x268] sm:$0xff]
      %v252 = vld [vmem:[%s166 + $0x270] sm:$0xff]
      %v253 = vld [vmem:[%s166 + $0x278] sm:$0xff]
      %v254 = vld [vmem:[%s166 + $0x280] sm:$0xff]
      %v255 = vld [vmem:[%s166 + $0x288] sm:$0xff]
      %v256 = vld [vmem:[%s166 + $0x290] sm:$0xff]
      %v257 = vld [vmem:[%s166 + $0x298] sm:$0xff]
      %v258 = vld [vmem:[%s166 + $0x2a0] sm:$0xff]
      %v259 = vld [vmem:[%s166 + $0x2a8] sm:$0xff]
      %v260 = vld [vmem:[%s166 + $0x2b0] sm:$0xff]
      %v261 = vld [vmem:[%s166 + $0x2b8] sm:$0xff]
      %v262 = vld [vmem:[%s166 + $0x2c0] sm:$0xff]
      %v263 = vld [vmem:[%s166 + $0x2c8] sm:$0xff]
      %v264 = vld [vmem:[%s166 + $0x2d0] sm:$0xff]
      %v265 = vld [vmem:[%s166 + $0x2d8] sm:$0xff]
      %v266 = vld [vmem:[%s166 + $0x2e0] sm:$0xff]
      %v267 = vld [vmem:[%s166 + $0x2e8] sm:$0xff]
      %v268 = vld [vmem:[%s166 + $0x2f0] sm:$0xff]
      %v269 = vld [vmem:[%s166 + $0x2f8] sm:$0xff]
      %v270 = vld [vmem:[%s166 + $0x300] sm:$0xff]
      %v271 = vld [vmem:[%s166 + $0x308] sm:$0xff]
      %v272 = vld [vmem:[%s166 + $0x310] sm:$0xff]
      %v273 = vld [vmem:[%s166 + $0x318] sm:$0xff]
      %v274 = vld [vmem:[%s166 + $0x320] sm:$0xff]
      %v275 = vld [vmem:[%s166 + $0x328] sm:$0xff]
      %v276 = vld [vmem:[%s166 + $0x330] sm:$0xff]
      %v277 = vld [vmem:[%s166 + $0x338] sm:$0xff]
      %v278 = vld [vmem:[%s166 + $0x340] sm:$0xff]
      %v279 = vld [vmem:[%s166 + $0x348] sm:$0xff]
      %v280 = vld [vmem:[%s166 + $0x350] sm:$0xff]
      %v281 = vld [vmem:[%s166 + $0x358] sm:$0xff]
      %v282 = vld [vmem:[%s166 + $0x360] sm:$0xff]
      %v283 = vld [vmem:[%s166 + $0x368] sm:$0xff]
      %v284 = vld [vmem:[%s166 + $0x370] sm:$0xff]
      %v285 = vld [vmem:[%s166 + $0x378] sm:$0xff]
      %v286 = vld [vmem:[%s166 + $0x380] sm:$0xff]
      %v287 = vld [vmem:[%s166 + $0x388] sm:$0xff]
      %v288 = vld [vmem:[%s166 + $0x390] sm:$0xff]
      %v289 = vld [vmem:[%s166 + $0x398] sm:$0xff]
      %v290 = vld [vmem:[%s166 + $0x3a0] sm:$0xff]
      %v291 = vld [vmem:[%s166 + $0x3a8] sm:$0xff]
      %v292 = vld [vmem:[%s166 + $0x3b0] sm:$0xff]
      %v293 = vld [vmem:[%s166 + $0x3b8] sm:$0xff]
      %v294 = vld [vmem:[%s166 + $0x3c0] sm:$0xff]
      %v295 = vld [vmem:[%s166 + $0x3c8] sm:$0xff]
      %v296 = vld [vmem:[%s166 + $0x3d0] sm:$0xff]
      %v297 = vld [vmem:[%s166 + $0x3d8] sm:$0xff]
      %v298 = vld [vmem:[%s166 + $0x3e0] sm:$0xff]
      %v299 = vld [vmem:[%s166 + $0x3e8] sm:$0xff]
      %v300 = vld [vmem:[%s166 + $0x3f0] sm:$0xff]
      %v301 = vld [vmem:[%s166 + $0x3f8] sm:$0xff]
      %v302 = vld [vmem:[%s166 + $0x400] sm:$0xff]
      %v303 = vld [vmem:[%s166 + $0x408] sm:$0xff]
      %v304 = vld [vmem:[%s166 + $0x410] sm:$0xff]
      %v305 = vld [vmem:[%s166 + $0x418] sm:$0xff]
      %v306 = vld [vmem:[%s166 + $0x420] sm:$0xff]
      %v307 = vld [vmem:[%s166 + $0x428] sm:$0xff]
      %v308 = vld [vmem:[%s166 + $0x430] sm:$0xff]
      %v309 = vld [vmem:[%s166 + $0x438] sm:$0xff]
      %v310 = vld [vmem:[%s166 + $0x440] sm:$0xff]
      %v311 = vld [vmem:[%s166 + $0x448] sm:$0xff]
      %v312 = vld [vmem:[%s166 + $0x450] sm:$0xff]
      %v313 = vld [vmem:[%s166 + $0x458] sm:$0xff]
      %v314 = vld [vmem:[%s166 + $0x460] sm:$0xff]
      %v315 = vld [vmem:[%s166 + $0x468] sm:$0xff]
      %v316 = vld [vmem:[%s166 + $0x470] sm:$0xff]
      %v317 = vld [vmem:[%s166 + $0x478] sm:$0xff]
      %v318 = vld [vmem:[%s166 + $0x480] sm:$0xff]
      %v319 = vld [vmem:[%s166 + $0x488] sm:$0xff]
      %v320 = vld [vmem:[%s166 + $0x490] sm:$0xff]
      %v321 = vld [vmem:[%s166 + $0x498] sm:$0xff]
      %v322 = vld [vmem:[%s166 + $0x4a0] sm:$0xff]
      %v323 = vld [vmem:[%s166 + $0x4a8] sm:$0xff]
      %v324 = vld [vmem:[%s166 + $0x4b0] sm:$0xff]
      %v325 = vld [vmem:[%s166 + $0x4b8] sm:$0xff]
      %v326 = vld [vmem:[%s166 + $0x4c0] sm:$0xff]
      %v327 = vld [vmem:[%s166 + $0x4c8] sm:$0xff]
      %v328 = vld [vmem:[%s166 + $0x4d0] sm:$0xff]
      %v329 = vld [vmem:[%s166 + $0x4d8] sm:$0xff]
      %v330 = vld [vmem:[%s166 + $0x4e0] sm:$0xff]
      %v331 = vld [vmem:[%s166 + $0x4e8] sm:$0xff]
      %v332 = vld [vmem:[%s166 + $0x4f0] sm:$0xff]
      %v333 = vld [vmem:[%s166 + $0x4f8] sm:$0xff]
      %v334 = vld [vmem:[%s166 + $0x500] sm:$0xff]
      %v335 = vld [vmem:[%s166 + $0x508] sm:$0xff]
      %v336 = vld [vmem:[%s166 + $0x510] sm:$0xff]
      %v337 = vld [vmem:[%s166 + $0x518] sm:$0xff]
      %v338 = vld [vmem:[%s166 + $0x520] sm:$0xff]
      %v339 = vld [vmem:[%s166 + $0x528] sm:$0xff]
      %v340 = vld [vmem:[%s166 + $0x530] sm:$0xff]
      %v341 = vld [vmem:[%s166 + $0x538] sm:$0xff]
      %v342 = vld [vmem:[%s166 + $0x540] sm:$0xff]
      %v343 = vld [vmem:[%s166 + $0x548] sm:$0xff]
      %v344 = vld [vmem:[%s166 + $0x550] sm:$0xff]
      %v345 = vld [vmem:[%s166 + $0x558] sm:$0xff]
      %v346 = vld [vmem:[%s166 + $0x560] sm:$0xff]
      %v347 = vld [vmem:[%s166 + $0x568] sm:$0xff]
      %v348 = vld [vmem:[%s166 + $0x570] sm:$0xff]
      %v349 = vld [vmem:[%s166 + $0x578] sm:$0xff]
      %v350 = vld [vmem:[%s166 + $0x580] sm:$0xff]
      %v351 = vld [vmem:[%s166 + $0x588] sm:$0xff]
      %v352 = vld [vmem:[%s166 + $0x590] sm:$0xff]
      %v353 = vld [vmem:[%s166 + $0x598] sm:$0xff]
      %v354 = vld [vmem:[%s166 + $0x5a0] sm:$0xff]
      %v355 = vld [vmem:[%s166 + $0x5a8] sm:$0xff]
      %v356 = vld [vmem:[%s166 + $0x5b0] sm:$0xff]
      %v357 = vld [vmem:[%s166 + $0x5b8] sm:$0xff]
      %v358 = vld [vmem:[%s166 + $0x5c0] sm:$0xff]
      %v359 = vld [vmem:[%s166 + $0x5c8] sm:$0xff]
      %v360 = vld [vmem:[%s166 + $0x5d0] sm:$0xff]
      %v361 = vld [vmem:[%s166 + $0x5d8] sm:$0xff]
      %v362 = vld [vmem:[%s166 + $0x5e0] sm:$0xff]
      %v363 = vld [vmem:[%s166 + $0x5e8] sm:$0xff]
      %v364 = vld [vmem:[%s166 + $0x5f0] sm:$0xff]
      %v365 = vld [vmem:[%s166 + $0x5f8] sm:$0xff]
      %v366 = vld [vmem:[%s166 + $0x600] sm:$0xff]
      %v367 = vld [vmem:[%s166 + $0x608] sm:$0xff]
      %v368 = vld [vmem:[%s166 + $0x610] sm:$0xff]
      %v369 = vld [vmem:[%s166 + $0x618] sm:$0xff]
      %v370 = vld [vmem:[%s166 + $0x620] sm:$0xff]
      %v371 = vld [vmem:[%s166 + $0x628] sm:$0xff]
      %v372 = vld [vmem:[%s166 + $0x630] sm:$0xff]
      %v373 = vld [vmem:[%s166 + $0x638] sm:$0xff]
      %v374 = vld [vmem:[%s166 + $0x640] sm:$0xff]
      %v375 = vld [vmem:[%s166 + $0x648] sm:$0xff]
      %v376 = vld [vmem:[%s166 + $0x650] sm:$0xff]
      %v377 = vld [vmem:[%s166 + $0x658] sm:$0xff]
      %v378 = vld [vmem:[%s166 + $0x660] sm:$0xff]
      %v379 = vld [vmem:[%s166 + $0x668] sm:$0xff]
      %v380 = vld [vmem:[%s166 + $0x670] sm:$0xff]
      %v381 = vld [vmem:[%s166 + $0x678] sm:$0xff]
      %v382 = vld [vmem:[%s166 + $0x680] sm:$0xff]
      %v383 = vld [vmem:[%s166 + $0x688] sm:$0xff]
      %v384 = vld [vmem:[%s166 + $0x690] sm:$0xff]
      %v385 = vld [vmem:[%s166 + $0x698] sm:$0xff]
      %v386 = vld [vmem:[%s166 + $0x6a0] sm:$0xff]
      %v387 = vld [vmem:[%s166 + $0x6a8] sm:$0xff]
      %v388 = vld [vmem:[%s166 + $0x6b0] sm:$0xff]
      %v389 = vld [vmem:[%s166 + $0x6b8] sm:$0xff]
      %v390 = vld [vmem:[%s166 + $0x6c0] sm:$0xff]
      %v391 = vld [vmem:[%s166 + $0x6c8] sm:$0xff]
      %v392 = vld [vmem:[%s166 + $0x6d0] sm:$0xff]
      %v393 = vld [vmem:[%s166 + $0x6d8] sm:$0xff]
      %v394 = vld [vmem:[%s166 + $0x6e0] sm:$0xff]
      %v395 = vld [vmem:[%s166 + $0x6e8] sm:$0xff]
      %v396 = vld [vmem:[%s166 + $0x6f0] sm:$0xff]
      %v397 = vld [vmem:[%s166 + $0x6f8] sm:$0xff]
      %v398 = vld [vmem:[%s166 + $0x700] sm:$0xff]
      %v399 = vld [vmem:[%s166 + $0x708] sm:$0xff]
      %v400 = vld [vmem:[%s166 + $0x710] sm:$0xff]
      %v401 = vld [vmem:[%s166 + $0x718] sm:$0xff]
      %v402 = vld [vmem:[%s166 + $0x720] sm:$0xff]
      %v403 = vld [vmem:[%s166 + $0x728] sm:$0xff]
      %v404 = vld [vmem:[%s166 + $0x730] sm:$0xff]
      %v405 = vld [vmem:[%s166 + $0x738] sm:$0xff]
      %v406 = vld [vmem:[%s166 + $0x740] sm:$0xff]
      %v407 = vld [vmem:[%s166 + $0x748] sm:$0xff]
      %v408 = vld [vmem:[%s166 + $0x750] sm:$0xff]
      %v409 = vld [vmem:[%s166 + $0x758] sm:$0xff]
      %v410 = vld [vmem:[%s166 + $0x760] sm:$0xff]
      %v411 = vld [vmem:[%s166 + $0x768] sm:$0xff]
      %v412 = vld [vmem:[%s166 + $0x770] sm:$0xff]
      %v413 = vld [vmem:[%s166 + $0x778] sm:$0xff]
      %v414 = vld [vmem:[%s166 + $0x780] sm:$0xff]
      %v415 = vld [vmem:[%s166 + $0x788] sm:$0xff]
      %v416 = vld [vmem:[%s166 + $0x790] sm:$0xff]
      %v417 = vld [vmem:[%s166 + $0x798] sm:$0xff]
      %v418 = vld [vmem:[%s166 + $0x7a0] sm:$0xff]
      %v419 = vld [vmem:[%s166 + $0x7a8] sm:$0xff]
      %v420 = vld [vmem:[%s166 + $0x7b0] sm:$0xff]
      %v421 = vld [vmem:[%s166 + $0x7b8] sm:$0xff]
      %v422 = vld [vmem:[%s166 + $0x7c0] sm:$0xff]
      %v423 = vld [vmem:[%s166 + $0x7c8] sm:$0xff]
      %v424 = vld [vmem:[%s166 + $0x7d0] sm:$0xff]
      %v425 = vld [vmem:[%s166 + $0x7d8] sm:$0xff]
      %v426 = vld [vmem:[%s166 + $0x7e0] sm:$0xff]
      %v427 = vld [vmem:[%s166 + $0x7e8] sm:$0xff]
      %v428 = vld [vmem:[%s166 + $0x7f0] sm:$0xff]
      %v429 = vld [vmem:[%s166 + $0x7f8] sm:$0xff]
      %v430 = vld [vmem:[%s1] sm:$0x7]
      %432 = vset.pattern.permute.xlu0 0
      %433 = vperm.xlu0 %432, %v174
      %v434 = vpop.permute.xlu0 %433
      %437 = vset.pattern.permute.xlu0 0
      %438 = vperm.xlu0 %437, %v175
      %v439 = vpop.permute.xlu0 %438
      %442 = vset.pattern.permute.xlu0 0
      %443 = vperm.xlu0 %442, %v176
      %v444 = vpop.permute.xlu0 %443
      %447 = vset.pattern.permute.xlu0 0
      %448 = vperm.xlu0 %447, %v177
      %v449 = vpop.permute.xlu0 %448
      %452 = vset.pattern.permute.xlu0 0
      %453 = vperm.xlu0 %452, %v178
      %v454 = vpop.permute.xlu0 %453
      %457 = vset.pattern.permute.xlu0 0
      %458 = vperm.xlu0 %457, %v179
      %v459 = vpop.permute.xlu0 %458
      %462 = vset.pattern.permute.xlu0 0
      %463 = vperm.xlu0 %462, %v180
      %v464 = vpop.permute.xlu0 %463
      %467 = vset.pattern.permute.xlu0 0
      %468 = vperm.xlu0 %467, %v181
      %v469 = vpop.permute.xlu0 %468
      %472 = vset.pattern.permute.xlu0 0
      %473 = vperm.xlu0 %472, %v182
      %v474 = vpop.permute.xlu0 %473
      %477 = vset.pattern.permute.xlu0 0
      %478 = vperm.xlu0 %477, %v183
      %v479 = vpop.permute.xlu0 %478
      %482 = vset.pattern.permute.xlu0 0
      %483 = vperm.xlu0 %482, %v184
      %v484 = vpop.permute.xlu0 %483
      %487 = vset.pattern.permute.xlu0 0
      %488 = vperm.xlu0 %487, %v185
      %v489 = vpop.permute.xlu0 %488
      %492 = vset.pattern.permute.xlu0 0
      %493 = vperm.xlu0 %492, %v186
      %v494 = vpop.permute.xlu0 %493
      %497 = vset.pattern.permute.xlu0 0
      %498 = vperm.xlu0 %497, %v187
      %v499 = vpop.permute.xlu0 %498
      %502 = vset.pattern.permute.xlu0 0
      %503 = vperm.xlu0 %502, %v188
      %v504 = vpop.permute.xlu0 %503
      %507 = vset.pattern.permute.xlu0 0
      %508 = vperm.xlu0 %507, %v189
      %v509 = vpop.permute.xlu0 %508
      %512 = vset.pattern.permute.xlu0 0
      %513 = vperm.xlu0 %512, %v190
      %v514 = vpop.permute.xlu0 %513
      %517 = vset.pattern.permute.xlu0 0
      %518 = vperm.xlu0 %517, %v191
      %v519 = vpop.permute.xlu0 %518
      %522 = vset.pattern.permute.xlu0 0
      %523 = vperm.xlu0 %522, %v192
      %v524 = vpop.permute.xlu0 %523
      %527 = vset.pattern.permute.xlu0 0
      %528 = vperm.xlu0 %527, %v193
      %v529 = vpop.permute.xlu0 %528
      %532 = vset.pattern.permute.xlu0 0
      %533 = vperm.xlu0 %532, %v194
      %v534 = vpop.permute.xlu0 %533
      %537 = vset.pattern.permute.xlu0 0
      %538 = vperm.xlu0 %537, %v195
      %v539 = vpop.permute.xlu0 %538
      %542 = vset.pattern.permute.xlu0 0
      %543 = vperm.xlu0 %542, %v196
      %v544 = vpop.permute.xlu0 %543
      %547 = vset.pattern.permute.xlu0 0
      %548 = vperm.xlu0 %547, %v197
      %v549 = vpop.permute.xlu0 %548
      %552 = vset.pattern.permute.xlu0 0
      %553 = vperm.xlu0 %552, %v198
      %v554 = vpop.permute.xlu0 %553
      %557 = vset.pattern.permute.xlu0 0
      %558 = vperm.xlu0 %557, %v199
      %v559 = vpop.permute.xlu0 %558
      %562 = vset.pattern.permute.xlu0 0
      %563 = vperm.xlu0 %562, %v200
      %v564 = vpop.permute.xlu0 %563
      %567 = vset.pattern.permute.xlu0 0
      %568 = vperm.xlu0 %567, %v201
      %v569 = vpop.permute.xlu0 %568
      %572 = vset.pattern.permute.xlu0 0
      %573 = vperm.xlu0 %572, %v202
      %v574 = vpop.permute.xlu0 %573
      %577 = vset.pattern.permute.xlu0 0
      %578 = vperm.xlu0 %577, %v203
      %v579 = vpop.permute.xlu0 %578
      %582 = vset.pattern.permute.xlu0 0
      %583 = vperm.xlu0 %582, %v204
      %v584 = vpop.permute.xlu0 %583
      %587 = vset.pattern.permute.xlu0 0
      %588 = vperm.xlu0 %587, %v205
      %v589 = vpop.permute.xlu0 %588
      %592 = vset.pattern.permute.xlu0 0
      %593 = vperm.xlu0 %592, %v206
      %v594 = vpop.permute.xlu0 %593
      %597 = vset.pattern.permute.xlu0 0
      %598 = vperm.xlu0 %597, %v207
      %v599 = vpop.permute.xlu0 %598
      %602 = vset.pattern.permute.xlu0 0
      %603 = vperm.xlu0 %602, %v208
      %v604 = vpop.permute.xlu0 %603
      %607 = vset.pattern.permute.xlu0 0
      %608 = vperm.xlu0 %607, %v209
      %v609 = vpop.permute.xlu0 %608
      %612 = vset.pattern.permute.xlu0 0
      %613 = vperm.xlu0 %612, %v210
      %v614 = vpop.permute.xlu0 %613
      %617 = vset.pattern.permute.xlu0 0
      %618 = vperm.xlu0 %617, %v211
      %v619 = vpop.permute.xlu0 %618
      %622 = vset.pattern.permute.xlu0 0
      %623 = vperm.xlu0 %622, %v212
      %v624 = vpop.permute.xlu0 %623
      %627 = vset.pattern.permute.xlu0 0
      %628 = vperm.xlu0 %627, %v213
      %v629 = vpop.permute.xlu0 %628
      %632 = vset.pattern.permute.xlu0 0
      %633 = vperm.xlu0 %632, %v214
      %v634 = vpop.permute.xlu0 %633
      %637 = vset.pattern.permute.xlu0 0
      %638 = vperm.xlu0 %637, %v215
      %v639 = vpop.permute.xlu0 %638
      %642 = vset.pattern.permute.xlu0 0
      %643 = vperm.xlu0 %642, %v216
      %v644 = vpop.permute.xlu0 %643
      %647 = vset.pattern.permute.xlu0 0
      %648 = vperm.xlu0 %647, %v217
      %v649 = vpop.permute.xlu0 %648
      %652 = vset.pattern.permute.xlu0 0
      %653 = vperm.xlu0 %652, %v218
      %v654 = vpop.permute.xlu0 %653
      %657 = vset.pattern.permute.xlu0 0
      %658 = vperm.xlu0 %657, %v219
      %v659 = vpop.permute.xlu0 %658
      %662 = vset.pattern.permute.xlu0 0
      %663 = vperm.xlu0 %662, %v220
      %v664 = vpop.permute.xlu0 %663
      %667 = vset.pattern.permute.xlu0 0
      %668 = vperm.xlu0 %667, %v221
      %v669 = vpop.permute.xlu0 %668
      %672 = vset.pattern.permute.xlu0 0
      %673 = vperm.xlu0 %672, %v222
      %v674 = vpop.permute.xlu0 %673
      %677 = vset.pattern.permute.xlu0 0
      %678 = vperm.xlu0 %677, %v223
      %v679 = vpop.permute.xlu0 %678
      %682 = vset.pattern.permute.xlu0 0
      %683 = vperm.xlu0 %682, %v224
      %v684 = vpop.permute.xlu0 %683
      %687 = vset.pattern.permute.xlu0 0
      %688 = vperm.xlu0 %687, %v225
      %v689 = vpop.permute.xlu0 %688
      %692 = vset.pattern.permute.xlu0 0
      %693 = vperm.xlu0 %692, %v226
      %v694 = vpop.permute.xlu0 %693
      %697 = vset.pattern.permute.xlu0 0
      %698 = vperm.xlu0 %697, %v227
      %v699 = vpop.permute.xlu0 %698
      %702 = vset.pattern.permute.xlu0 0
      %703 = vperm.xlu0 %702, %v228
      %v704 = vpop.permute.xlu0 %703
      %707 = vset.pattern.permute.xlu0 0
      %708 = vperm.xlu0 %707, %v229
      %v709 = vpop.permute.xlu0 %708
      %712 = vset.pattern.permute.xlu0 0
      %713 = vperm.xlu0 %712, %v230
      %v714 = vpop.permute.xlu0 %713
      %717 = vset.pattern.permute.xlu0 0
      %718 = vperm.xlu0 %717, %v231
      %v719 = vpop.permute.xlu0 %718
      %722 = vset.pattern.permute.xlu0 0
      %723 = vperm.xlu0 %722, %v232
      %v724 = vpop.permute.xlu0 %723
      %727 = vset.pattern.permute.xlu0 0
      %728 = vperm.xlu0 %727, %v233
      %v729 = vpop.permute.xlu0 %728
      %732 = vset.pattern.permute.xlu0 0
      %733 = vperm.xlu0 %732, %v234
      %v734 = vpop.permute.xlu0 %733
      %737 = vset.pattern.permute.xlu0 0
      %738 = vperm.xlu0 %737, %v235
      %v739 = vpop.permute.xlu0 %738
      %742 = vset.pattern.permute.xlu0 0
      %743 = vperm.xlu0 %742, %v236
      %v744 = vpop.permute.xlu0 %743
      %747 = vset.pattern.permute.xlu0 0
      %748 = vperm.xlu0 %747, %v237
      %v749 = vpop.permute.xlu0 %748
      %752 = vset.pattern.permute.xlu0 0
      %753 = vperm.xlu0 %752, %v238
      %v754 = vpop.permute.xlu0 %753
      %757 = vset.pattern.permute.xlu0 0
      %758 = vperm.xlu0 %757, %v239
      %v759 = vpop.permute.xlu0 %758
      %762 = vset.pattern.permute.xlu0 0
      %763 = vperm.xlu0 %762, %v240
      %v764 = vpop.permute.xlu0 %763
      %767 = vset.pattern.permute.xlu0 0
      %768 = vperm.xlu0 %767, %v241
      %v769 = vpop.permute.xlu0 %768
      %772 = vset.pattern.permute.xlu0 0
      %773 = vperm.xlu0 %772, %v242
      %v774 = vpop.permute.xlu0 %773
      %777 = vset.pattern.permute.xlu0 0
      %778 = vperm.xlu0 %777, %v243
      %v779 = vpop.permute.xlu0 %778
      %782 = vset.pattern.permute.xlu0 0
      %783 = vperm.xlu0 %782, %v244
      %v784 = vpop.permute.xlu0 %783
      %787 = vset.pattern.permute.xlu0 0
      %788 = vperm.xlu0 %787, %v245
      %v789 = vpop.permute.xlu0 %788
      %792 = vset.pattern.permute.xlu0 0
      %793 = vperm.xlu0 %792, %v246
      %v794 = vpop.permute.xlu0 %793
      %797 = vset.pattern.permute.xlu0 0
      %798 = vperm.xlu0 %797, %v247
      %v799 = vpop.permute.xlu0 %798
      %802 = vset.pattern.permute.xlu0 0
      %803 = vperm.xlu0 %802, %v248
      %v804 = vpop.permute.xlu0 %803
      %807 = vset.pattern.permute.xlu0 0
      %808 = vperm.xlu0 %807, %v249
      %v809 = vpop.permute.xlu0 %808
      %812 = vset.pattern.permute.xlu0 0
      %813 = vperm.xlu0 %812, %v250
      %v814 = vpop.permute.xlu0 %813
      %817 = vset.pattern.permute.xlu0 0
      %818 = vperm.xlu0 %817, %v251
      %v819 = vpop.permute.xlu0 %818
      %822 = vset.pattern.permute.xlu0 0
      %823 = vperm.xlu0 %822, %v252
      %v824 = vpop.permute.xlu0 %823
      %827 = vset.pattern.permute.xlu0 0
      %828 = vperm.xlu0 %827, %v253
      %v829 = vpop.permute.xlu0 %828
      %832 = vset.pattern.permute.xlu0 0
      %833 = vperm.xlu0 %832, %v254
      %v834 = vpop.permute.xlu0 %833
      %837 = vset.pattern.permute.xlu0 0
      %838 = vperm.xlu0 %837, %v255
      %v839 = vpop.permute.xlu0 %838
      %842 = vset.pattern.permute.xlu0 0
      %843 = vperm.xlu0 %842, %v256
      %v844 = vpop.permute.xlu0 %843
      %847 = vset.pattern.permute.xlu0 0
      %848 = vperm.xlu0 %847, %v257
      %v849 = vpop.permute.xlu0 %848
      %852 = vset.pattern.permute.xlu0 0
      %853 = vperm.xlu0 %852, %v258
      %v854 = vpop.permute.xlu0 %853
      %857 = vset.pattern.permute.xlu0 0
      %858 = vperm.xlu0 %857, %v259
      %v859 = vpop.permute.xlu0 %858
      %862 = vset.pattern.permute.xlu0 0
      %863 = vperm.xlu0 %862, %v260
      %v864 = vpop.permute.xlu0 %863
      %867 = vset.pattern.permute.xlu0 0
      %868 = vperm.xlu0 %867, %v261
      %v869 = vpop.permute.xlu0 %868
      %872 = vset.pattern.permute.xlu0 0
      %873 = vperm.xlu0 %872, %v262
      %v874 = vpop.permute.xlu0 %873
      %877 = vset.pattern.permute.xlu0 0
      %878 = vperm.xlu0 %877, %v263
      %v879 = vpop.permute.xlu0 %878
      %882 = vset.pattern.permute.xlu0 0
      %883 = vperm.xlu0 %882, %v264
      %v884 = vpop.permute.xlu0 %883
      %887 = vset.pattern.permute.xlu0 0
      %888 = vperm.xlu0 %887, %v265
      %v889 = vpop.permute.xlu0 %888
      %892 = vset.pattern.permute.xlu0 0
      %893 = vperm.xlu0 %892, %v266
      %v894 = vpop.permute.xlu0 %893
      %897 = vset.pattern.permute.xlu0 0
      %898 = vperm.xlu0 %897, %v267
      %v899 = vpop.permute.xlu0 %898
      %902 = vset.pattern.permute.xlu0 0
      %903 = vperm.xlu0 %902, %v268
      %v904 = vpop.permute.xlu0 %903
      %907 = vset.pattern.permute.xlu0 0
      %908 = vperm.xlu0 %907, %v269
      %v909 = vpop.permute.xlu0 %908
      %912 = vset.pattern.permute.xlu0 0
      %913 = vperm.xlu0 %912, %v270
      %v914 = vpop.permute.xlu0 %913
      %917 = vset.pattern.permute.xlu0 0
      %918 = vperm.xlu0 %917, %v271
      %v919 = vpop.permute.xlu0 %918
      %922 = vset.pattern.permute.xlu0 0
      %923 = vperm.xlu0 %922, %v272
      %v924 = vpop.permute.xlu0 %923
      %927 = vset.pattern.permute.xlu0 0
      %928 = vperm.xlu0 %927, %v273
      %v929 = vpop.permute.xlu0 %928
      %932 = vset.pattern.permute.xlu0 0
      %933 = vperm.xlu0 %932, %v274
      %v934 = vpop.permute.xlu0 %933
      %937 = vset.pattern.permute.xlu0 0
      %938 = vperm.xlu0 %937, %v275
      %v939 = vpop.permute.xlu0 %938
      %942 = vset.pattern.permute.xlu0 0
      %943 = vperm.xlu0 %942, %v276
      %v944 = vpop.permute.xlu0 %943
      %947 = vset.pattern.permute.xlu0 0
      %948 = vperm.xlu0 %947, %v277
      %v949 = vpop.permute.xlu0 %948
      %952 = vset.pattern.permute.xlu0 0
      %953 = vperm.xlu0 %952, %v278
      %v954 = vpop.permute.xlu0 %953
      %957 = vset.pattern.permute.xlu0 0
      %958 = vperm.xlu0 %957, %v279
      %v959 = vpop.permute.xlu0 %958
      %962 = vset.pattern.permute.xlu0 0
      %963 = vperm.xlu0 %962, %v280
      %v964 = vpop.permute.xlu0 %963
      %967 = vset.pattern.permute.xlu0 0
      %968 = vperm.xlu0 %967, %v281
      %v969 = vpop.permute.xlu0 %968
      %972 = vset.pattern.permute.xlu0 0
      %973 = vperm.xlu0 %972, %v282
      %v974 = vpop.permute.xlu0 %973
      %977 = vset.pattern.permute.xlu0 0
      %978 = vperm.xlu0 %977, %v283
      %v979 = vpop.permute.xlu0 %978
      %982 = vset.pattern.permute.xlu0 0
      %983 = vperm.xlu0 %982, %v284
      %v984 = vpop.permute.xlu0 %983
      %987 = vset.pattern.permute.xlu0 0
      %988 = vperm.xlu0 %987, %v285
      %v989 = vpop.permute.xlu0 %988
      %992 = vset.pattern.permute.xlu0 0
      %993 = vperm.xlu0 %992, %v286
      %v994 = vpop.permute.xlu0 %993
      %997 = vset.pattern.permute.xlu0 0
      %998 = vperm.xlu0 %997, %v287
      %v999 = vpop.permute.xlu0 %998
      %1002 = vset.pattern.permute.xlu0 0
      %1003 = vperm.xlu0 %1002, %v288
      %v1004 = vpop.permute.xlu0 %1003
      %1007 = vset.pattern.permute.xlu0 0
      %1008 = vperm.xlu0 %1007, %v289
      %v1009 = vpop.permute.xlu0 %1008
      %1012 = vset.pattern.permute.xlu0 0
      %1013 = vperm.xlu0 %1012, %v290
      %v1014 = vpop.permute.xlu0 %1013
      %1017 = vset.pattern.permute.xlu0 0
      %1018 = vperm.xlu0 %1017, %v291
      %v1019 = vpop.permute.xlu0 %1018
      %1022 = vset.pattern.permute.xlu0 0
      %1023 = vperm.xlu0 %1022, %v292
      %v1024 = vpop.permute.xlu0 %1023
      %1027 = vset.pattern.permute.xlu0 0
      %1028 = vperm.xlu0 %1027, %v293
      %v1029 = vpop.permute.xlu0 %1028
      %1032 = vset.pattern.permute.xlu0 0
      %1033 = vperm.xlu0 %1032, %v294
      %v1034 = vpop.permute.xlu0 %1033
      %1037 = vset.pattern.permute.xlu0 0
      %1038 = vperm.xlu0 %1037, %v295
      %v1039 = vpop.permute.xlu0 %1038
      %1042 = vset.pattern.permute.xlu0 0
      %1043 = vperm.xlu0 %1042, %v296
      %v1044 = vpop.permute.xlu0 %1043
      %1047 = vset.pattern.permute.xlu0 0
      %1048 = vperm.xlu0 %1047, %v297
      %v1049 = vpop.permute.xlu0 %1048
      %1052 = vset.pattern.permute.xlu0 0
      %1053 = vperm.xlu0 %1052, %v298
      %v1054 = vpop.permute.xlu0 %1053
      %1057 = vset.pattern.permute.xlu0 0
      %1058 = vperm.xlu0 %1057, %v299
      %v1059 = vpop.permute.xlu0 %1058
      %1062 = vset.pattern.permute.xlu0 0
      %1063 = vperm.xlu0 %1062, %v300
      %v1064 = vpop.permute.xlu0 %1063
      %1067 = vset.pattern.permute.xlu0 0
      %1068 = vperm.xlu0 %1067, %v301
      %v1069 = vpop.permute.xlu0 %1068
      %1072 = vset.pattern.permute.xlu0 0
      %1073 = vperm.xlu0 %1072, %v302
      %v1074 = vpop.permute.xlu0 %1073
      %1077 = vset.pattern.permute.xlu0 0
      %1078 = vperm.xlu0 %1077, %v303
      %v1079 = vpop.permute.xlu0 %1078
      %1082 = vset.pattern.permute.xlu0 0
      %1083 = vperm.xlu0 %1082, %v304
      %v1084 = vpop.permute.xlu0 %1083
      %1087 = vset.pattern.permute.xlu0 0
      %1088 = vperm.xlu0 %1087, %v305
      %v1089 = vpop.permute.xlu0 %1088
      %1092 = vset.pattern.permute.xlu0 0
      %1093 = vperm.xlu0 %1092, %v306
      %v1094 = vpop.permute.xlu0 %1093
      %1097 = vset.pattern.permute.xlu0 0
      %1098 = vperm.xlu0 %1097, %v307
      %v1099 = vpop.permute.xlu0 %1098
      %1102 = vset.pattern.permute.xlu0 0
      %1103 = vperm.xlu0 %1102, %v308
      %v1104 = vpop.permute.xlu0 %1103
      %1107 = vset.pattern.permute.xlu0 0
      %1108 = vperm.xlu0 %1107, %v309
      %v1109 = vpop.permute.xlu0 %1108
      %1112 = vset.pattern.permute.xlu0 0
      %1113 = vperm.xlu0 %1112, %v310
      %v1114 = vpop.permute.xlu0 %1113
      %1117 = vset.pattern.permute.xlu0 0
      %1118 = vperm.xlu0 %1117, %v311
      %v1119 = vpop.permute.xlu0 %1118
      %1122 = vset.pattern.permute.xlu0 0
      %1123 = vperm.xlu0 %1122, %v312
      %v1124 = vpop.permute.xlu0 %1123
      %1127 = vset.pattern.permute.xlu0 0
      %1128 = vperm.xlu0 %1127, %v313
      %v1129 = vpop.permute.xlu0 %1128
      %1132 = vset.pattern.permute.xlu0 0
      %1133 = vperm.xlu0 %1132, %v314
      %v1134 = vpop.permute.xlu0 %1133
      %1137 = vset.pattern.permute.xlu0 0
      %1138 = vperm.xlu0 %1137, %v315
      %v1139 = vpop.permute.xlu0 %1138
      %1142 = vset.pattern.permute.xlu0 0
      %1143 = vperm.xlu0 %1142, %v316
      %v1144 = vpop.permute.xlu0 %1143
      %1147 = vset.pattern.permute.xlu0 0
      %1148 = vperm.xlu0 %1147, %v317
      %v1149 = vpop.permute.xlu0 %1148
      %1152 = vset.pattern.permute.xlu0 0
      %1153 = vperm.xlu0 %1152, %v318
      %v1154 = vpop.permute.xlu0 %1153
      %1157 = vset.pattern.permute.xlu0 0
      %1158 = vperm.xlu0 %1157, %v319
      %v1159 = vpop.permute.xlu0 %1158
      %1162 = vset.pattern.permute.xlu0 0
      %1163 = vperm.xlu0 %1162, %v320
      %v1164 = vpop.permute.xlu0 %1163
      %1167 = vset.pattern.permute.xlu0 0
      %1168 = vperm.xlu0 %1167, %v321
      %v1169 = vpop.permute.xlu0 %1168
      %1172 = vset.pattern.permute.xlu0 0
      %1173 = vperm.xlu0 %1172, %v322
      %v1174 = vpop.permute.xlu0 %1173
      %1177 = vset.pattern.permute.xlu0 0
      %1178 = vperm.xlu0 %1177, %v323
      %v1179 = vpop.permute.xlu0 %1178
      %1182 = vset.pattern.permute.xlu0 0
      %1183 = vperm.xlu0 %1182, %v324
      %v1184 = vpop.permute.xlu0 %1183
      %1187 = vset.pattern.permute.xlu0 0
      %1188 = vperm.xlu0 %1187, %v325
      %v1189 = vpop.permute.xlu0 %1188
      %1192 = vset.pattern.permute.xlu0 0
      %1193 = vperm.xlu0 %1192, %v326
      %v1194 = vpop.permute.xlu0 %1193
      %1197 = vset.pattern.permute.xlu0 0
      %1198 = vperm.xlu0 %1197, %v327
      %v1199 = vpop.permute.xlu0 %1198
      %1202 = vset.pattern.permute.xlu0 0
      %1203 = vperm.xlu0 %1202, %v328
      %v1204 = vpop.permute.xlu0 %1203
      %1207 = vset.pattern.permute.xlu0 0
      %1208 = vperm.xlu0 %1207, %v329
      %v1209 = vpop.permute.xlu0 %1208
      %1212 = vset.pattern.permute.xlu0 0
      %1213 = vperm.xlu0 %1212, %v330
      %v1214 = vpop.permute.xlu0 %1213
      %1217 = vset.pattern.permute.xlu0 0
      %1218 = vperm.xlu0 %1217, %v331
      %v1219 = vpop.permute.xlu0 %1218
      %1222 = vset.pattern.permute.xlu0 0
      %1223 = vperm.xlu0 %1222, %v332
      %v1224 = vpop.permute.xlu0 %1223
      %1227 = vset.pattern.permute.xlu0 0
      %1228 = vperm.xlu0 %1227, %v333
      %v1229 = vpop.permute.xlu0 %1228
      %1232 = vset.pattern.permute.xlu0 0
      %1233 = vperm.xlu0 %1232, %v334
      %v1234 = vpop.permute.xlu0 %1233
      %1237 = vset.pattern.permute.xlu0 0
      %1238 = vperm.xlu0 %1237, %v335
      %v1239 = vpop.permute.xlu0 %1238
      %1242 = vset.pattern.permute.xlu0 0
      %1243 = vperm.xlu0 %1242, %v336
      %v1244 = vpop.permute.xlu0 %1243
      %1247 = vset.pattern.permute.xlu0 0
      %1248 = vperm.xlu0 %1247, %v337
      %v1249 = vpop.permute.xlu0 %1248
      %1252 = vset.pattern.permute.xlu0 0
      %1253 = vperm.xlu0 %1252, %v338
      %v1254 = vpop.permute.xlu0 %1253
      %1257 = vset.pattern.permute.xlu0 0
      %1258 = vperm.xlu0 %1257, %v339
      %v1259 = vpop.permute.xlu0 %1258
      %1262 = vset.pattern.permute.xlu0 0
      %1263 = vperm.xlu0 %1262, %v340
      %v1264 = vpop.permute.xlu0 %1263
      %1267 = vset.pattern.permute.xlu0 0
      %1268 = vperm.xlu0 %1267, %v341
      %v1269 = vpop.permute.xlu0 %1268
      %1272 = vset.pattern.permute.xlu0 0
      %1273 = vperm.xlu0 %1272, %v342
      %v1274 = vpop.permute.xlu0 %1273
      %1277 = vset.pattern.permute.xlu0 0
      %1278 = vperm.xlu0 %1277, %v343
      %v1279 = vpop.permute.xlu0 %1278
      %1282 = vset.pattern.permute.xlu0 0
      %1283 = vperm.xlu0 %1282, %v344
      %v1284 = vpop.permute.xlu0 %1283
      %1287 = vset.pattern.permute.xlu0 0
      %1288 = vperm.xlu0 %1287, %v345
      %v1289 = vpop.permute.xlu0 %1288
      %1292 = vset.pattern.permute.xlu0 0
      %1293 = vperm.xlu0 %1292, %v346
      %v1294 = vpop.permute.xlu0 %1293
      %1297 = vset.pattern.permute.xlu0 0
      %1298 = vperm.xlu0 %1297, %v347
      %v1299 = vpop.permute.xlu0 %1298
      %1302 = vset.pattern.permute.xlu0 0
      %1303 = vperm.xlu0 %1302, %v348
      %v1304 = vpop.permute.xlu0 %1303
      %1307 = vset.pattern.permute.xlu0 0
      %1308 = vperm.xlu0 %1307, %v349
      %v1309 = vpop.permute.xlu0 %1308
      %1312 = vset.pattern.permute.xlu0 0
      %1313 = vperm.xlu0 %1312, %v350
      %v1314 = vpop.permute.xlu0 %1313
      %1317 = vset.pattern.permute.xlu0 0
      %1318 = vperm.xlu0 %1317, %v351
      %v1319 = vpop.permute.xlu0 %1318
      %1322 = vset.pattern.permute.xlu0 0
      %1323 = vperm.xlu0 %1322, %v352
      %v1324 = vpop.permute.xlu0 %1323
      %1327 = vset.pattern.permute.xlu0 0
      %1328 = vperm.xlu0 %1327, %v353
      %v1329 = vpop.permute.xlu0 %1328
      %1332 = vset.pattern.permute.xlu0 0
      %1333 = vperm.xlu0 %1332, %v354
      %v1334 = vpop.permute.xlu0 %1333
      %1337 = vset.pattern.permute.xlu0 0
      %1338 = vperm.xlu0 %1337, %v355
      %v1339 = vpop.permute.xlu0 %1338
      %1342 = vset.pattern.permute.xlu0 0
      %1343 = vperm.xlu0 %1342, %v356
      %v1344 = vpop.permute.xlu0 %1343
      %1347 = vset.pattern.permute.xlu0 0
      %1348 = vperm.xlu0 %1347, %v357
      %v1349 = vpop.permute.xlu0 %1348
      %1352 = vset.pattern.permute.xlu0 0
      %1353 = vperm.xlu0 %1352, %v358
      %v1354 = vpop.permute.xlu0 %1353
      %1357 = vset.pattern.permute.xlu0 0
      %1358 = vperm.xlu0 %1357, %v359
      %v1359 = vpop.permute.xlu0 %1358
      %1362 = vset.pattern.permute.xlu0 0
      %1363 = vperm.xlu0 %1362, %v360
      %v1364 = vpop.permute.xlu0 %1363
      %1367 = vset.pattern.permute.xlu0 0
      %1368 = vperm.xlu0 %1367, %v361
      %v1369 = vpop.permute.xlu0 %1368
      %1372 = vset.pattern.permute.xlu0 0
      %1373 = vperm.xlu0 %1372, %v362
      %v1374 = vpop.permute.xlu0 %1373
      %1377 = vset.pattern.permute.xlu0 0
      %1378 = vperm.xlu0 %1377, %v363
      %v1379 = vpop.permute.xlu0 %1378
      %1382 = vset.pattern.permute.xlu0 0
      %1383 = vperm.xlu0 %1382, %v364
      %v1384 = vpop.permute.xlu0 %1383
      %1387 = vset.pattern.permute.xlu0 0
      %1388 = vperm.xlu0 %1387, %v365
      %v1389 = vpop.permute.xlu0 %1388
      %1392 = vset.pattern.permute.xlu0 0
      %1393 = vperm.xlu0 %1392, %v366
      %v1394 = vpop.permute.xlu0 %1393
      %1397 = vset.pattern.permute.xlu0 0
      %1398 = vperm.xlu0 %1397, %v367
      %v1399 = vpop.permute.xlu0 %1398
      %1402 = vset.pattern.permute.xlu0 0
      %1403 = vperm.xlu0 %1402, %v368
      %v1404 = vpop.permute.xlu0 %1403
      %1407 = vset.pattern.permute.xlu0 0
      %1408 = vperm.xlu0 %1407, %v369
      %v1409 = vpop.permute.xlu0 %1408
      %1412 = vset.pattern.permute.xlu0 0
      %1413 = vperm.xlu0 %1412, %v370
      %v1414 = vpop.permute.xlu0 %1413
      %1417 = vset.pattern.permute.xlu0 0
      %1418 = vperm.xlu0 %1417, %v371
      %v1419 = vpop.permute.xlu0 %1418
      %1422 = vset.pattern.permute.xlu0 0
      %1423 = vperm.xlu0 %1422, %v372
      %v1424 = vpop.permute.xlu0 %1423
      %1427 = vset.pattern.permute.xlu0 0
      %1428 = vperm.xlu0 %1427, %v373
      %v1429 = vpop.permute.xlu0 %1428
      %1432 = vset.pattern.permute.xlu0 0
      %1433 = vperm.xlu0 %1432, %v374
      %v1434 = vpop.permute.xlu0 %1433
      %1437 = vset.pattern.permute.xlu0 0
      %1438 = vperm.xlu0 %1437, %v375
      %v1439 = vpop.permute.xlu0 %1438
      %1442 = vset.pattern.permute.xlu0 0
      %1443 = vperm.xlu0 %1442, %v376
      %v1444 = vpop.permute.xlu0 %1443
      %1447 = vset.pattern.permute.xlu0 0
      %1448 = vperm.xlu0 %1447, %v377
      %v1449 = vpop.permute.xlu0 %1448
      %1452 = vset.pattern.permute.xlu0 0
      %1453 = vperm.xlu0 %1452, %v378
      %v1454 = vpop.permute.xlu0 %1453
      %1457 = vset.pattern.permute.xlu0 0
      %1458 = vperm.xlu0 %1457, %v379
      %v1459 = vpop.permute.xlu0 %1458
      %1462 = vset.pattern.permute.xlu0 0
      %1463 = vperm.xlu0 %1462, %v380
      %v1464 = vpop.permute.xlu0 %1463
      %1467 = vset.pattern.permute.xlu0 0
      %1468 = vperm.xlu0 %1467, %v381
      %v1469 = vpop.permute.xlu0 %1468
      %1472 = vset.pattern.permute.xlu0 0
      %1473 = vperm.xlu0 %1472, %v382
      %v1474 = vpop.permute.xlu0 %1473
      %1477 = vset.pattern.permute.xlu0 0
      %1478 = vperm.xlu0 %1477, %v383
      %v1479 = vpop.permute.xlu0 %1478
      %1482 = vset.pattern.permute.xlu0 0
      %1483 = vperm.xlu0 %1482, %v384
      %v1484 = vpop.permute.xlu0 %1483
      %1487 = vset.pattern.permute.xlu0 0
      %1488 = vperm.xlu0 %1487, %v385
      %v1489 = vpop.permute.xlu0 %1488
      %1492 = vset.pattern.permute.xlu0 0
      %1493 = vperm.xlu0 %1492, %v386
      %v1494 = vpop.permute.xlu0 %1493
      %1497 = vset.pattern.permute.xlu0 0
      %1498 = vperm.xlu0 %1497, %v387
      %v1499 = vpop.permute.xlu0 %1498
      %1502 = vset.pattern.permute.xlu0 0
      %1503 = vperm.xlu0 %1502, %v388
      %v1504 = vpop.permute.xlu0 %1503
      %1507 = vset.pattern.permute.xlu0 0
      %1508 = vperm.xlu0 %1507, %v389
      %v1509 = vpop.permute.xlu0 %1508
      %1512 = vset.pattern.permute.xlu0 0
      %1513 = vperm.xlu0 %1512, %v390
      %v1514 = vpop.permute.xlu0 %1513
      %1517 = vset.pattern.permute.xlu0 0
      %1518 = vperm.xlu0 %1517, %v391
      %v1519 = vpop.permute.xlu0 %1518
      %1522 = vset.pattern.permute.xlu0 0
      %1523 = vperm.xlu0 %1522, %v392
      %v1524 = vpop.permute.xlu0 %1523
      %1527 = vset.pattern.permute.xlu0 0
      %1528 = vperm.xlu0 %1527, %v393
      %v1529 = vpop.permute.xlu0 %1528
      %1532 = vset.pattern.permute.xlu0 0
      %1533 = vperm.xlu0 %1532, %v394
      %v1534 = vpop.permute.xlu0 %1533
      %1537 = vset.pattern.permute.xlu0 0
      %1538 = vperm.xlu0 %1537, %v395
      %v1539 = vpop.permute.xlu0 %1538
      %1542 = vset.pattern.permute.xlu0 0
      %1543 = vperm.xlu0 %1542, %v396
      %v1544 = vpop.permute.xlu0 %1543
      %1547 = vset.pattern.permute.xlu0 0
      %1548 = vperm.xlu0 %1547, %v397
      %v1549 = vpop.permute.xlu0 %1548
      %1552 = vset.pattern.permute.xlu0 0
      %1553 = vperm.xlu0 %1552, %v398
      %v1554 = vpop.permute.xlu0 %1553
      %1557 = vset.pattern.permute.xlu0 0
      %1558 = vperm.xlu0 %1557, %v399
      %v1559 = vpop.permute.xlu0 %1558
      %1562 = vset.pattern.permute.xlu0 0
      %1563 = vperm.xlu0 %1562, %v400
      %v1564 = vpop.permute.xlu0 %1563
      %1567 = vset.pattern.permute.xlu0 0
      %1568 = vperm.xlu0 %1567, %v401
      %v1569 = vpop.permute.xlu0 %1568
      %1572 = vset.pattern.permute.xlu0 0
      %1573 = vperm.xlu0 %1572, %v402
      %v1574 = vpop.permute.xlu0 %1573
      %1577 = vset.pattern.permute.xlu0 0
      %1578 = vperm.xlu0 %1577, %v403
      %v1579 = vpop.permute.xlu0 %1578
      %1582 = vset.pattern.permute.xlu0 0
      %1583 = vperm.xlu0 %1582, %v404
      %v1584 = vpop.permute.xlu0 %1583
      %1587 = vset.pattern.permute.xlu0 0
      %1588 = vperm.xlu0 %1587, %v405
      %v1589 = vpop.permute.xlu0 %1588
      %1592 = vset.pattern.permute.xlu0 0
      %1593 = vperm.xlu0 %1592, %v406
      %v1594 = vpop.permute.xlu0 %1593
      %1597 = vset.pattern.permute.xlu0 0
      %1598 = vperm.xlu0 %1597, %v407
      %v1599 = vpop.permute.xlu0 %1598
      %1602 = vset.pattern.permute.xlu0 0
      %1603 = vperm.xlu0 %1602, %v408
      %v1604 = vpop.permute.xlu0 %1603
      %1607 = vset.pattern.permute.xlu0 0
      %1608 = vperm.xlu0 %1607, %v409
      %v1609 = vpop.permute.xlu0 %1608
      %1612 = vset.pattern.permute.xlu0 0
      %1613 = vperm.xlu0 %1612, %v410
      %v1614 = vpop.permute.xlu0 %1613
      %1617 = vset.pattern.permute.xlu0 0
      %1618 = vperm.xlu0 %1617, %v411
      %v1619 = vpop.permute.xlu0 %1618
      %1622 = vset.pattern.permute.xlu0 0
      %1623 = vperm.xlu0 %1622, %v412
      %v1624 = vpop.permute.xlu0 %1623
      %1627 = vset.pattern.permute.xlu0 0
      %1628 = vperm.xlu0 %1627, %v413
      %v1629 = vpop.permute.xlu0 %1628
      %1632 = vset.pattern.permute.xlu0 0
      %1633 = vperm.xlu0 %1632, %v414
      %v1634 = vpop.permute.xlu0 %1633
      %1637 = vset.pattern.permute.xlu0 0
      %1638 = vperm.xlu0 %1637, %v415
      %v1639 = vpop.permute.xlu0 %1638
      %1642 = vset.pattern.permute.xlu0 0
      %1643 = vperm.xlu0 %1642, %v416
      %v1644 = vpop.permute.xlu0 %1643
      %1647 = vset.pattern.permute.xlu0 0
      %1648 = vperm.xlu0 %1647, %v417
      %v1649 = vpop.permute.xlu0 %1648
      %1652 = vset.pattern.permute.xlu0 0
      %1653 = vperm.xlu0 %1652, %v418
      %v1654 = vpop.permute.xlu0 %1653
      %1657 = vset.pattern.permute.xlu0 0
      %1658 = vperm.xlu0 %1657, %v419
      %v1659 = vpop.permute.xlu0 %1658
      %1662 = vset.pattern.permute.xlu0 0
      %1663 = vperm.xlu0 %1662, %v420
      %v1664 = vpop.permute.xlu0 %1663
      %1667 = vset.pattern.permute.xlu0 0
      %1668 = vperm.xlu0 %1667, %v421
      %v1669 = vpop.permute.xlu0 %1668
      %1672 = vset.pattern.permute.xlu0 0
      %1673 = vperm.xlu0 %1672, %v422
      %v1674 = vpop.permute.xlu0 %1673
      %1677 = vset.pattern.permute.xlu0 0
      %1678 = vperm.xlu0 %1677, %v423
      %v1679 = vpop.permute.xlu0 %1678
      %1682 = vset.pattern.permute.xlu0 0
      %1683 = vperm.xlu0 %1682, %v424
      %v1684 = vpop.permute.xlu0 %1683
      %1687 = vset.pattern.permute.xlu0 0
      %1688 = vperm.xlu0 %1687, %v425
      %v1689 = vpop.permute.xlu0 %1688
      %1692 = vset.pattern.permute.xlu0 0
      %1693 = vperm.xlu0 %1692, %v426
      %v1694 = vpop.permute.xlu0 %1693
      %1697 = vset.pattern.permute.xlu0 0
      %1698 = vperm.xlu0 %1697, %v427
      %v1699 = vpop.permute.xlu0 %1698
      %1702 = vset.pattern.permute.xlu0 0
      %1703 = vperm.xlu0 %1702, %v428
      %v1704 = vpop.permute.xlu0 %1703
      %1707 = vset.pattern.permute.xlu0 0
      %1708 = vperm.xlu0 %1707, %v429
      %v1709 = vpop.permute.xlu0 %1708
      %v1711 = vlaneseq
      %v1712 = vshrl.u32 %v1711, 7
      %v1713 = vsub.s32 0, %v1712
      %v1714 = vrot.slane %v430, %v1713
      %v1715 = vmul.f32 %v434, %v1714
      %v1716 = vmul.f32 %v439, %v1714
      %v1717 = vmul.f32 %v444, %v1714
      %v1718 = vmul.f32 %v449, %v1714
      %v1719 = vmul.f32 %v454, %v1714
      %v1720 = vmul.f32 %v459, %v1714
      %v1721 = vmul.f32 %v464, %v1714
      %v1722 = vmul.f32 %v469, %v1714
      %v1723 = vmul.f32 %v474, %v1714
      %v1724 = vmul.f32 %v479, %v1714
      %v1725 = vmul.f32 %v484, %v1714
      %v1726 = vmul.f32 %v489, %v1714
      %v1727 = vmul.f32 %v494, %v1714
      %v1728 = vmul.f32 %v499, %v1714
      %v1729 = vmul.f32 %v504, %v1714
      %v1730 = vmul.f32 %v509, %v1714
      %v1731 = vmul.f32 %v514, %v1714
      %v1732 = vmul.f32 %v519, %v1714
      %v1733 = vmul.f32 %v524, %v1714
      %v1734 = vmul.f32 %v529, %v1714
      %v1735 = vmul.f32 %v534, %v1714
      %v1736 = vmul.f32 %v539, %v1714
      %v1737 = vmul.f32 %v544, %v1714
      %v1738 = vmul.f32 %v549, %v1714
      %v1739 = vmul.f32 %v554, %v1714
      %v1740 = vmul.f32 %v559, %v1714
      %v1741 = vmul.f32 %v564, %v1714
      %v1742 = vmul.f32 %v569, %v1714
      %v1743 = vmul.f32 %v574, %v1714
      %v1744 = vmul.f32 %v579, %v1714
      %v1745 = vmul.f32 %v584, %v1714
      %v1746 = vmul.f32 %v589, %v1714
      %v1747 = vmul.f32 %v594, %v1714
      %v1748 = vmul.f32 %v599, %v1714
      %v1749 = vmul.f32 %v604, %v1714
      %v1750 = vmul.f32 %v609, %v1714
      %v1751 = vmul.f32 %v614, %v1714
      %v1752 = vmul.f32 %v619, %v1714
      %v1753 = vmul.f32 %v624, %v1714
      %v1754 = vmul.f32 %v629, %v1714
      %v1755 = vmul.f32 %v634, %v1714
      %v1756 = vmul.f32 %v639, %v1714
      %v1757 = vmul.f32 %v644, %v1714
      %v1758 = vmul.f32 %v649, %v1714
      %v1759 = vmul.f32 %v654, %v1714
      %v1760 = vmul.f32 %v659, %v1714
      %v1761 = vmul.f32 %v664, %v1714
      %v1762 = vmul.f32 %v669, %v1714
      %v1763 = vmul.f32 %v674, %v1714
      %v1764 = vmul.f32 %v679, %v1714
      %v1765 = vmul.f32 %v684, %v1714
      %v1766 = vmul.f32 %v689, %v1714
      %v1767 = vmul.f32 %v694, %v1714
      %v1768 = vmul.f32 %v699, %v1714
      %v1769 = vmul.f32 %v704, %v1714
      %v1770 = vmul.f32 %v709, %v1714
      %v1771 = vmul.f32 %v714, %v1714
      %v1772 = vmul.f32 %v719, %v1714
      %v1773 = vmul.f32 %v724, %v1714
      %v1774 = vmul.f32 %v729, %v1714
      %v1775 = vmul.f32 %v734, %v1714
      %v1776 = vmul.f32 %v739, %v1714
      %v1777 = vmul.f32 %v744, %v1714
      %v1778 = vmul.f32 %v749, %v1714
      %v1779 = vmul.f32 %v754, %v1714
      %v1780 = vmul.f32 %v759, %v1714
      %v1781 = vmul.f32 %v764, %v1714
      %v1782 = vmul.f32 %v769, %v1714
      %v1783 = vmul.f32 %v774, %v1714
      %v1784 = vmul.f32 %v779, %v1714
      %v1785 = vmul.f32 %v784, %v1714
      %v1786 = vmul.f32 %v789, %v1714
      %v1787 = vmul.f32 %v794, %v1714
      %v1788 = vmul.f32 %v799, %v1714
      %v1789 = vmul.f32 %v804, %v1714
      %v1790 = vmul.f32 %v809, %v1714
      %v1791 = vmul.f32 %v814, %v1714
      %v1792 = vmul.f32 %v819, %v1714
      %v1793 = vmul.f32 %v824, %v1714
      %v1794 = vmul.f32 %v829, %v1714
      %v1795 = vmul.f32 %v834, %v1714
      %v1796 = vmul.f32 %v839, %v1714
      %v1797 = vmul.f32 %v844, %v1714
      %v1798 = vmul.f32 %v849, %v1714
      %v1799 = vmul.f32 %v854, %v1714
      %v1800 = vmul.f32 %v859, %v1714
      %v1801 = vmul.f32 %v864, %v1714
      %v1802 = vmul.f32 %v869, %v1714
      %v1803 = vmul.f32 %v874, %v1714
      %v1804 = vmul.f32 %v879, %v1714
      %v1805 = vmul.f32 %v884, %v1714
      %v1806 = vmul.f32 %v889, %v1714
      %v1807 = vmul.f32 %v894, %v1714
      %v1808 = vmul.f32 %v899, %v1714
      %v1809 = vmul.f32 %v904, %v1714
      %v1810 = vmul.f32 %v909, %v1714
      %v1811 = vmul.f32 %v914, %v1714
      %v1812 = vmul.f32 %v919, %v1714
      %v1813 = vmul.f32 %v924, %v1714
      %v1814 = vmul.f32 %v929, %v1714
      %v1815 = vmul.f32 %v934, %v1714
      %v1816 = vmul.f32 %v939, %v1714
      %v1817 = vmul.f32 %v944, %v1714
      %v1818 = vmul.f32 %v949, %v1714
      %v1819 = vmul.f32 %v954, %v1714
      %v1820 = vmul.f32 %v959, %v1714
      %v1821 = vmul.f32 %v964, %v1714
      %v1822 = vmul.f32 %v969, %v1714
      %v1823 = vmul.f32 %v974, %v1714
      %v1824 = vmul.f32 %v979, %v1714
      %v1825 = vmul.f32 %v984, %v1714
      %v1826 = vmul.f32 %v989, %v1714
      %v1827 = vmul.f32 %v994, %v1714
      %v1828 = vmul.f32 %v999, %v1714
      %v1829 = vmul.f32 %v1004, %v1714
      %v1830 = vmul.f32 %v1009, %v1714
      %v1831 = vmul.f32 %v1014, %v1714
      %v1832 = vmul.f32 %v1019, %v1714
      %v1833 = vmul.f32 %v1024, %v1714
      %v1834 = vmul.f32 %v1029, %v1714
      %v1835 = vmul.f32 %v1034, %v1714
      %v1836 = vmul.f32 %v1039, %v1714
      %v1837 = vmul.f32 %v1044, %v1714
      %v1838 = vmul.f32 %v1049, %v1714
      %v1839 = vmul.f32 %v1054, %v1714
      %v1840 = vmul.f32 %v1059, %v1714
      %v1841 = vmul.f32 %v1064, %v1714
      %v1842 = vmul.f32 %v1069, %v1714
      %v1843 = vmul.f32 %v1074, %v1714
      %v1844 = vmul.f32 %v1079, %v1714
      %v1845 = vmul.f32 %v1084, %v1714
      %v1846 = vmul.f32 %v1089, %v1714
      %v1847 = vmul.f32 %v1094, %v1714
      %v1848 = vmul.f32 %v1099, %v1714
      %v1849 = vmul.f32 %v1104, %v1714
      %v1850 = vmul.f32 %v1109, %v1714
      %v1851 = vmul.f32 %v1114, %v1714
      %v1852 = vmul.f32 %v1119, %v1714
      %v1853 = vmul.f32 %v1124, %v1714
      %v1854 = vmul.f32 %v1129, %v1714
      %v1855 = vmul.f32 %v1134, %v1714
      %v1856 = vmul.f32 %v1139, %v1714
      %v1857 = vmul.f32 %v1144, %v1714
      %v1858 = vmul.f32 %v1149, %v1714
      %v1859 = vmul.f32 %v1154, %v1714
      %v1860 = vmul.f32 %v1159, %v1714
      %v1861 = vmul.f32 %v1164, %v1714
      %v1862 = vmul.f32 %v1169, %v1714
      %v1863 = vmul.f32 %v1174, %v1714
      %v1864 = vmul.f32 %v1179, %v1714
      %v1865 = vmul.f32 %v1184, %v1714
      %v1866 = vmul.f32 %v1189, %v1714
      %v1867 = vmul.f32 %v1194, %v1714
      %v1868 = vmul.f32 %v1199, %v1714
      %v1869 = vmul.f32 %v1204, %v1714
      %v1870 = vmul.f32 %v1209, %v1714
      %v1871 = vmul.f32 %v1214, %v1714
      %v1872 = vmul.f32 %v1219, %v1714
      %v1873 = vmul.f32 %v1224, %v1714
      %v1874 = vmul.f32 %v1229, %v1714
      %v1875 = vmul.f32 %v1234, %v1714
      %v1876 = vmul.f32 %v1239, %v1714
      %v1877 = vmul.f32 %v1244, %v1714
      %v1878 = vmul.f32 %v1249, %v1714
      %v1879 = vmul.f32 %v1254, %v1714
      %v1880 = vmul.f32 %v1259, %v1714
      %v1881 = vmul.f32 %v1264, %v1714
      %v1882 = vmul.f32 %v1269, %v1714
      %v1883 = vmul.f32 %v1274, %v1714
      %v1884 = vmul.f32 %v1279, %v1714
      %v1885 = vmul.f32 %v1284, %v1714
      %v1886 = vmul.f32 %v1289, %v1714
      %v1887 = vmul.f32 %v1294, %v1714
      %v1888 = vmul.f32 %v1299, %v1714
      %v1889 = vmul.f32 %v1304, %v1714
      %v1890 = vmul.f32 %v1309, %v1714
      %v1891 = vmul.f32 %v1314, %v1714
      %v1892 = vmul.f32 %v1319, %v1714
      %v1893 = vmul.f32 %v1324, %v1714
      %v1894 = vmul.f32 %v1329, %v1714
      %v1895 = vmul.f32 %v1334, %v1714
      %v1896 = vmul.f32 %v1339, %v1714
      %v1897 = vmul.f32 %v1344, %v1714
      %v1898 = vmul.f32 %v1349, %v1714
      %v1899 = vmul.f32 %v1354, %v1714
      %v1900 = vmul.f32 %v1359, %v1714
      %v1901 = vmul.f32 %v1364, %v1714
      %v1902 = vmul.f32 %v1369, %v1714
      %v1903 = vmul.f32 %v1374, %v1714
      %v1904 = vmul.f32 %v1379, %v1714
      %v1905 = vmul.f32 %v1384, %v1714
      %v1906 = vmul.f32 %v1389, %v1714
      %v1907 = vmul.f32 %v1394, %v1714
      %v1908 = vmul.f32 %v1399, %v1714
      %v1909 = vmul.f32 %v1404, %v1714
      %v1910 = vmul.f32 %v1409, %v1714
      %v1911 = vmul.f32 %v1414, %v1714
      %v1912 = vmul.f32 %v1419, %v1714
      %v1913 = vmul.f32 %v1424, %v1714
      %v1914 = vmul.f32 %v1429, %v1714
      %v1915 = vmul.f32 %v1434, %v1714
      %v1916 = vmul.f32 %v1439, %v1714
      %v1917 = vmul.f32 %v1444, %v1714
      %v1918 = vmul.f32 %v1449, %v1714
      %v1919 = vmul.f32 %v1454, %v1714
      %v1920 = vmul.f32 %v1459, %v1714
      %v1921 = vmul.f32 %v1464, %v1714
      %v1922 = vmul.f32 %v1469, %v1714
      %v1923 = vmul.f32 %v1474, %v1714
      %v1924 = vmul.f32 %v1479, %v1714
      %v1925 = vmul.f32 %v1484, %v1714
      %v1926 = vmul.f32 %v1489, %v1714
      %v1927 = vmul.f32 %v1494, %v1714
      %v1928 = vmul.f32 %v1499, %v1714
      %v1929 = vmul.f32 %v1504, %v1714
      %v1930 = vmul.f32 %v1509, %v1714
      %v1931 = vmul.f32 %v1514, %v1714
      %v1932 = vmul.f32 %v1519, %v1714
      %v1933 = vmul.f32 %v1524, %v1714
      %v1934 = vmul.f32 %v1529, %v1714
      %v1935 = vmul.f32 %v1534, %v1714
      %v1936 = vmul.f32 %v1539, %v1714
      %v1937 = vmul.f32 %v1544, %v1714
      %v1938 = vmul.f32 %v1549, %v1714
      %v1939 = vmul.f32 %v1554, %v1714
      %v1940 = vmul.f32 %v1559, %v1714
      %v1941 = vmul.f32 %v1564, %v1714
      %v1942 = vmul.f32 %v1569, %v1714
      %v1943 = vmul.f32 %v1574, %v1714
      %v1944 = vmul.f32 %v1579, %v1714
      %v1945 = vmul.f32 %v1584, %v1714
      %v1946 = vmul.f32 %v1589, %v1714
      %v1947 = vmul.f32 %v1594, %v1714
      %v1948 = vmul.f32 %v1599, %v1714
      %v1949 = vmul.f32 %v1604, %v1714
      %v1950 = vmul.f32 %v1609, %v1714
      %v1951 = vmul.f32 %v1614, %v1714
      %v1952 = vmul.f32 %v1619, %v1714
      %v1953 = vmul.f32 %v1624, %v1714
      %v1954 = vmul.f32 %v1629, %v1714
      %v1955 = vmul.f32 %v1634, %v1714
      %v1956 = vmul.f32 %v1639, %v1714
      %v1957 = vmul.f32 %v1644, %v1714
      %v1958 = vmul.f32 %v1649, %v1714
      %v1959 = vmul.f32 %v1654, %v1714
      %v1960 = vmul.f32 %v1659, %v1714
      %v1961 = vmul.f32 %v1664, %v1714
      %v1962 = vmul.f32 %v1669, %v1714
      %v1963 = vmul.f32 %v1674, %v1714
      %v1964 = vmul.f32 %v1679, %v1714
      %v1965 = vmul.f32 %v1684, %v1714
      %v1966 = vmul.f32 %v1689, %v1714
      %v1967 = vmul.f32 %v1694, %v1714
      %v1968 = vmul.f32 %v1699, %v1714
      %v1969 = vmul.f32 %v1704, %v1714
      %v1970 = vmul.f32 %v1709, %v1714
      %1971 = vset.pattern.permute.xlu0 1
      %1972 = vperm.xlu0 %1971, %v174
      %v1973 = vpop.permute.xlu0 %1972
      %1975 = vset.pattern.permute.xlu0 1
      %1976 = vperm.xlu0 %1975, %v175
      %v1977 = vpop.permute.xlu0 %1976
      %1979 = vset.pattern.permute.xlu0 1
      %1980 = vperm.xlu0 %1979, %v176
      %v1981 = vpop.permute.xlu0 %1980
      %1983 = vset.pattern.permute.xlu0 1
      %1984 = vperm.xlu0 %1983, %v177
      %v1985 = vpop.permute.xlu0 %1984
      %1987 = vset.pattern.permute.xlu0 1
      %1988 = vperm.xlu0 %1987, %v178
      %v1989 = vpop.permute.xlu0 %1988
      %1991 = vset.pattern.permute.xlu0 1
      %1992 = vperm.xlu0 %1991, %v179
      %v1993 = vpop.permute.xlu0 %1992
      %1995 = vset.pattern.permute.xlu0 1
      %1996 = vperm.xlu0 %1995, %v180
      %v1997 = vpop.permute.xlu0 %1996
      %1999 = vset.pattern.permute.xlu0 1
      %2000 = vperm.xlu0 %1999, %v181
      %v2001 = vpop.permute.xlu0 %2000
      %2003 = vset.pattern.permute.xlu0 1
      %2004 = vperm.xlu0 %2003, %v182
      %v2005 = vpop.permute.xlu0 %2004
      %2007 = vset.pattern.permute.xlu0 1
      %2008 = vperm.xlu0 %2007, %v183
      %v2009 = vpop.permute.xlu0 %2008
      %2011 = vset.pattern.permute.xlu0 1
      %2012 = vperm.xlu0 %2011, %v184
      %v2013 = vpop.permute.xlu0 %2012
      %2015 = vset.pattern.permute.xlu0 1
      %2016 = vperm.xlu0 %2015, %v185
      %v2017 = vpop.permute.xlu0 %2016
      %2019 = vset.pattern.permute.xlu0 1
      %2020 = vperm.xlu0 %2019, %v186
      %v2021 = vpop.permute.xlu0 %2020
      %2023 = vset.pattern.permute.xlu0 1
      %2024 = vperm.xlu0 %2023, %v187
      %v2025 = vpop.permute.xlu0 %2024
      %2027 = vset.pattern.permute.xlu0 1
      %2028 = vperm.xlu0 %2027, %v188
      %v2029 = vpop.permute.xlu0 %2028
      %2031 = vset.pattern.permute.xlu0 1
      %2032 = vperm.xlu0 %2031, %v189
      %v2033 = vpop.permute.xlu0 %2032
      %2035 = vset.pattern.permute.xlu0 1
      %2036 = vperm.xlu0 %2035, %v190
      %v2037 = vpop.permute.xlu0 %2036
      %2039 = vset.pattern.permute.xlu0 1
      %2040 = vperm.xlu0 %2039, %v191
      %v2041 = vpop.permute.xlu0 %2040
      %2043 = vset.pattern.permute.xlu0 1
      %2044 = vperm.xlu0 %2043, %v192
      %v2045 = vpop.permute.xlu0 %2044
      %2047 = vset.pattern.permute.xlu0 1
      %2048 = vperm.xlu0 %2047, %v193
      %v2049 = vpop.permute.xlu0 %2048
      %2051 = vset.pattern.permute.xlu0 1
      %2052 = vperm.xlu0 %2051, %v194
      %v2053 = vpop.permute.xlu0 %2052
      %2055 = vset.pattern.permute.xlu0 1
      %2056 = vperm.xlu0 %2055, %v195
      %v2057 = vpop.permute.xlu0 %2056
      %2059 = vset.pattern.permute.xlu0 1
      %2060 = vperm.xlu0 %2059, %v196
      %v2061 = vpop.permute.xlu0 %2060
      %2063 = vset.pattern.permute.xlu0 1
      %2064 = vperm.xlu0 %2063, %v197
      %v2065 = vpop.permute.xlu0 %2064
      %2067 = vset.pattern.permute.xlu0 1
      %2068 = vperm.xlu0 %2067, %v198
      %v2069 = vpop.permute.xlu0 %2068
      %2071 = vset.pattern.permute.xlu0 1
      %2072 = vperm.xlu0 %2071, %v199
      %v2073 = vpop.permute.xlu0 %2072
      %2075 = vset.pattern.permute.xlu0 1
      %2076 = vperm.xlu0 %2075, %v200
      %v2077 = vpop.permute.xlu0 %2076
      %2079 = vset.pattern.permute.xlu0 1
      %2080 = vperm.xlu0 %2079, %v201
      %v2081 = vpop.permute.xlu0 %2080
      %2083 = vset.pattern.permute.xlu0 1
      %2084 = vperm.xlu0 %2083, %v202
      %v2085 = vpop.permute.xlu0 %2084
      %2087 = vset.pattern.permute.xlu0 1
      %2088 = vperm.xlu0 %2087, %v203
      %v2089 = vpop.permute.xlu0 %2088
      %2091 = vset.pattern.permute.xlu0 1
      %2092 = vperm.xlu0 %2091, %v204
      %v2093 = vpop.permute.xlu0 %2092
      %2095 = vset.pattern.permute.xlu0 1
      %2096 = vperm.xlu0 %2095, %v205
      %v2097 = vpop.permute.xlu0 %2096
      %2099 = vset.pattern.permute.xlu0 1
      %2100 = vperm.xlu0 %2099, %v206
      %v2101 = vpop.permute.xlu0 %2100
      %2103 = vset.pattern.permute.xlu0 1
      %2104 = vperm.xlu0 %2103, %v207
      %v2105 = vpop.permute.xlu0 %2104
      %2107 = vset.pattern.permute.xlu0 1
      %2108 = vperm.xlu0 %2107, %v208
      %v2109 = vpop.permute.xlu0 %2108
      %2111 = vset.pattern.permute.xlu0 1
      %2112 = vperm.xlu0 %2111, %v209
      %v2113 = vpop.permute.xlu0 %2112
      %2115 = vset.pattern.permute.xlu0 1
      %2116 = vperm.xlu0 %2115, %v210
      %v2117 = vpop.permute.xlu0 %2116
      %2119 = vset.pattern.permute.xlu0 1
      %2120 = vperm.xlu0 %2119, %v211
      %v2121 = vpop.permute.xlu0 %2120
      %2123 = vset.pattern.permute.xlu0 1
      %2124 = vperm.xlu0 %2123, %v212
      %v2125 = vpop.permute.xlu0 %2124
      %2127 = vset.pattern.permute.xlu0 1
      %2128 = vperm.xlu0 %2127, %v213
      %v2129 = vpop.permute.xlu0 %2128
      %2131 = vset.pattern.permute.xlu0 1
      %2132 = vperm.xlu0 %2131, %v214
      %v2133 = vpop.permute.xlu0 %2132
      %2135 = vset.pattern.permute.xlu0 1
      %2136 = vperm.xlu0 %2135, %v215
      %v2137 = vpop.permute.xlu0 %2136
      %2139 = vset.pattern.permute.xlu0 1
      %2140 = vperm.xlu0 %2139, %v216
      %v2141 = vpop.permute.xlu0 %2140
      %2143 = vset.pattern.permute.xlu0 1
      %2144 = vperm.xlu0 %2143, %v217
      %v2145 = vpop.permute.xlu0 %2144
      %2147 = vset.pattern.permute.xlu0 1
      %2148 = vperm.xlu0 %2147, %v218
      %v2149 = vpop.permute.xlu0 %2148
      %2151 = vset.pattern.permute.xlu0 1
      %2152 = vperm.xlu0 %2151, %v219
      %v2153 = vpop.permute.xlu0 %2152
      %2155 = vset.pattern.permute.xlu0 1
      %2156 = vperm.xlu0 %2155, %v220
      %v2157 = vpop.permute.xlu0 %2156
      %2159 = vset.pattern.permute.xlu0 1
      %2160 = vperm.xlu0 %2159, %v221
      %v2161 = vpop.permute.xlu0 %2160
      %2163 = vset.pattern.permute.xlu0 1
      %2164 = vperm.xlu0 %2163, %v222
      %v2165 = vpop.permute.xlu0 %2164
      %2167 = vset.pattern.permute.xlu0 1
      %2168 = vperm.xlu0 %2167, %v223
      %v2169 = vpop.permute.xlu0 %2168
      %2171 = vset.pattern.permute.xlu0 1
      %2172 = vperm.xlu0 %2171, %v224
      %v2173 = vpop.permute.xlu0 %2172
      %2175 = vset.pattern.permute.xlu0 1
      %2176 = vperm.xlu0 %2175, %v225
      %v2177 = vpop.permute.xlu0 %2176
      %2179 = vset.pattern.permute.xlu0 1
      %2180 = vperm.xlu0 %2179, %v226
      %v2181 = vpop.permute.xlu0 %2180
      %2183 = vset.pattern.permute.xlu0 1
      %2184 = vperm.xlu0 %2183, %v227
      %v2185 = vpop.permute.xlu0 %2184
      %2187 = vset.pattern.permute.xlu0 1
      %2188 = vperm.xlu0 %2187, %v228
      %v2189 = vpop.permute.xlu0 %2188
      %2191 = vset.pattern.permute.xlu0 1
      %2192 = vperm.xlu0 %2191, %v229
      %v2193 = vpop.permute.xlu0 %2192
      %2195 = vset.pattern.permute.xlu0 1
      %2196 = vperm.xlu0 %2195, %v230
      %v2197 = vpop.permute.xlu0 %2196
      %2199 = vset.pattern.permute.xlu0 1
      %2200 = vperm.xlu0 %2199, %v231
      %v2201 = vpop.permute.xlu0 %2200
      %2203 = vset.pattern.permute.xlu0 1
      %2204 = vperm.xlu0 %2203, %v232
      %v2205 = vpop.permute.xlu0 %2204
      %2207 = vset.pattern.permute.xlu0 1
      %2208 = vperm.xlu0 %2207, %v233
      %v2209 = vpop.permute.xlu0 %2208
      %2211 = vset.pattern.permute.xlu0 1
      %2212 = vperm.xlu0 %2211, %v234
      %v2213 = vpop.permute.xlu0 %2212
      %2215 = vset.pattern.permute.xlu0 1
      %2216 = vperm.xlu0 %2215, %v235
      %v2217 = vpop.permute.xlu0 %2216
      %2219 = vset.pattern.permute.xlu0 1
      %2220 = vperm.xlu0 %2219, %v236
      %v2221 = vpop.permute.xlu0 %2220
      %2223 = vset.pattern.permute.xlu0 1
      %2224 = vperm.xlu0 %2223, %v237
      %v2225 = vpop.permute.xlu0 %2224
      %2227 = vset.pattern.permute.xlu0 1
      %2228 = vperm.xlu0 %2227, %v238
      %v2229 = vpop.permute.xlu0 %2228
      %2231 = vset.pattern.permute.xlu0 1
      %2232 = vperm.xlu0 %2231, %v239
      %v2233 = vpop.permute.xlu0 %2232
      %2235 = vset.pattern.permute.xlu0 1
      %2236 = vperm.xlu0 %2235, %v240
      %v2237 = vpop.permute.xlu0 %2236
      %2239 = vset.pattern.permute.xlu0 1
      %2240 = vperm.xlu0 %2239, %v241
      %v2241 = vpop.permute.xlu0 %2240
      %2243 = vset.pattern.permute.xlu0 1
      %2244 = vperm.xlu0 %2243, %v242
      %v2245 = vpop.permute.xlu0 %2244
      %2247 = vset.pattern.permute.xlu0 1
      %2248 = vperm.xlu0 %2247, %v243
      %v2249 = vpop.permute.xlu0 %2248
      %2251 = vset.pattern.permute.xlu0 1
      %2252 = vperm.xlu0 %2251, %v244
      %v2253 = vpop.permute.xlu0 %2252
      %2255 = vset.pattern.permute.xlu0 1
      %2256 = vperm.xlu0 %2255, %v245
      %v2257 = vpop.permute.xlu0 %2256
      %2259 = vset.pattern.permute.xlu0 1
      %2260 = vperm.xlu0 %2259, %v246
      %v2261 = vpop.permute.xlu0 %2260
      %2263 = vset.pattern.permute.xlu0 1
      %2264 = vperm.xlu0 %2263, %v247
      %v2265 = vpop.permute.xlu0 %2264
      %2267 = vset.pattern.permute.xlu0 1
      %2268 = vperm.xlu0 %2267, %v248
      %v2269 = vpop.permute.xlu0 %2268
      %2271 = vset.pattern.permute.xlu0 1
      %2272 = vperm.xlu0 %2271, %v249
      %v2273 = vpop.permute.xlu0 %2272
      %2275 = vset.pattern.permute.xlu0 1
      %2276 = vperm.xlu0 %2275, %v250
      %v2277 = vpop.permute.xlu0 %2276
      %2279 = vset.pattern.permute.xlu0 1
      %2280 = vperm.xlu0 %2279, %v251
      %v2281 = vpop.permute.xlu0 %2280
      %2283 = vset.pattern.permute.xlu0 1
      %2284 = vperm.xlu0 %2283, %v252
      %v2285 = vpop.permute.xlu0 %2284
      %2287 = vset.pattern.permute.xlu0 1
      %2288 = vperm.xlu0 %2287, %v253
      %v2289 = vpop.permute.xlu0 %2288
      %2291 = vset.pattern.permute.xlu0 1
      %2292 = vperm.xlu0 %2291, %v254
      %v2293 = vpop.permute.xlu0 %2292
      %2295 = vset.pattern.permute.xlu0 1
      %2296 = vperm.xlu0 %2295, %v255
      %v2297 = vpop.permute.xlu0 %2296
      %2299 = vset.pattern.permute.xlu0 1
      %2300 = vperm.xlu0 %2299, %v256
      %v2301 = vpop.permute.xlu0 %2300
      %2303 = vset.pattern.permute.xlu0 1
      %2304 = vperm.xlu0 %2303, %v257
      %v2305 = vpop.permute.xlu0 %2304
      %2307 = vset.pattern.permute.xlu0 1
      %2308 = vperm.xlu0 %2307, %v258
      %v2309 = vpop.permute.xlu0 %2308
      %2311 = vset.pattern.permute.xlu0 1
      %2312 = vperm.xlu0 %2311, %v259
      %v2313 = vpop.permute.xlu0 %2312
      %2315 = vset.pattern.permute.xlu0 1
      %2316 = vperm.xlu0 %2315, %v260
      %v2317 = vpop.permute.xlu0 %2316
      %2319 = vset.pattern.permute.xlu0 1
      %2320 = vperm.xlu0 %2319, %v261
      %v2321 = vpop.permute.xlu0 %2320
      %2323 = vset.pattern.permute.xlu0 1
      %2324 = vperm.xlu0 %2323, %v262
      %v2325 = vpop.permute.xlu0 %2324
      %2327 = vset.pattern.permute.xlu0 1
      %2328 = vperm.xlu0 %2327, %v263
      %v2329 = vpop.permute.xlu0 %2328
      %2331 = vset.pattern.permute.xlu0 1
      %2332 = vperm.xlu0 %2331, %v264
      %v2333 = vpop.permute.xlu0 %2332
      %2335 = vset.pattern.permute.xlu0 1
      %2336 = vperm.xlu0 %2335, %v265
      %v2337 = vpop.permute.xlu0 %2336
      %2339 = vset.pattern.permute.xlu0 1
      %2340 = vperm.xlu0 %2339, %v266
      %v2341 = vpop.permute.xlu0 %2340
      %2343 = vset.pattern.permute.xlu0 1
      %2344 = vperm.xlu0 %2343, %v267
      %v2345 = vpop.permute.xlu0 %2344
      %2347 = vset.pattern.permute.xlu0 1
      %2348 = vperm.xlu0 %2347, %v268
      %v2349 = vpop.permute.xlu0 %2348
      %2351 = vset.pattern.permute.xlu0 1
      %2352 = vperm.xlu0 %2351, %v269
      %v2353 = vpop.permute.xlu0 %2352
      %2355 = vset.pattern.permute.xlu0 1
      %2356 = vperm.xlu0 %2355, %v270
      %v2357 = vpop.permute.xlu0 %2356
      %2359 = vset.pattern.permute.xlu0 1
      %2360 = vperm.xlu0 %2359, %v271
      %v2361 = vpop.permute.xlu0 %2360
      %2363 = vset.pattern.permute.xlu0 1
      %2364 = vperm.xlu0 %2363, %v272
      %v2365 = vpop.permute.xlu0 %2364
      %2367 = vset.pattern.permute.xlu0 1
      %2368 = vperm.xlu0 %2367, %v273
      %v2369 = vpop.permute.xlu0 %2368
      %2371 = vset.pattern.permute.xlu0 1
      %2372 = vperm.xlu0 %2371, %v274
      %v2373 = vpop.permute.xlu0 %2372
      %2375 = vset.pattern.permute.xlu0 1
      %2376 = vperm.xlu0 %2375, %v275
      %v2377 = vpop.permute.xlu0 %2376
      %2379 = vset.pattern.permute.xlu0 1
      %2380 = vperm.xlu0 %2379, %v276
      %v2381 = vpop.permute.xlu0 %2380
      %2383 = vset.pattern.permute.xlu0 1
      %2384 = vperm.xlu0 %2383, %v277
      %v2385 = vpop.permute.xlu0 %2384
      %2387 = vset.pattern.permute.xlu0 1
      %2388 = vperm.xlu0 %2387, %v278
      %v2389 = vpop.permute.xlu0 %2388
      %2391 = vset.pattern.permute.xlu0 1
      %2392 = vperm.xlu0 %2391, %v279
      %v2393 = vpop.permute.xlu0 %2392
      %2395 = vset.pattern.permute.xlu0 1
      %2396 = vperm.xlu0 %2395, %v280
      %v2397 = vpop.permute.xlu0 %2396
      %2399 = vset.pattern.permute.xlu0 1
      %2400 = vperm.xlu0 %2399, %v281
      %v2401 = vpop.permute.xlu0 %2400
      %2403 = vset.pattern.permute.xlu0 1
      %2404 = vperm.xlu0 %2403, %v282
      %v2405 = vpop.permute.xlu0 %2404
      %2407 = vset.pattern.permute.xlu0 1
      %2408 = vperm.xlu0 %2407, %v283
      %v2409 = vpop.permute.xlu0 %2408
      %2411 = vset.pattern.permute.xlu0 1
      %2412 = vperm.xlu0 %2411, %v284
      %v2413 = vpop.permute.xlu0 %2412
      %2415 = vset.pattern.permute.xlu0 1
      %2416 = vperm.xlu0 %2415, %v285
      %v2417 = vpop.permute.xlu0 %2416
      %2419 = vset.pattern.permute.xlu0 1
      %2420 = vperm.xlu0 %2419, %v286
      %v2421 = vpop.permute.xlu0 %2420
      %2423 = vset.pattern.permute.xlu0 1
      %2424 = vperm.xlu0 %2423, %v287
      %v2425 = vpop.permute.xlu0 %2424
      %2427 = vset.pattern.permute.xlu0 1
      %2428 = vperm.xlu0 %2427, %v288
      %v2429 = vpop.permute.xlu0 %2428
      %2431 = vset.pattern.permute.xlu0 1
      %2432 = vperm.xlu0 %2431, %v289
      %v2433 = vpop.permute.xlu0 %2432
      %2435 = vset.pattern.permute.xlu0 1
      %2436 = vperm.xlu0 %2435, %v290
      %v2437 = vpop.permute.xlu0 %2436
      %2439 = vset.pattern.permute.xlu0 1
      %2440 = vperm.xlu0 %2439, %v291
      %v2441 = vpop.permute.xlu0 %2440
      %2443 = vset.pattern.permute.xlu0 1
      %2444 = vperm.xlu0 %2443, %v292
      %v2445 = vpop.permute.xlu0 %2444
      %2447 = vset.pattern.permute.xlu0 1
      %2448 = vperm.xlu0 %2447, %v293
      %v2449 = vpop.permute.xlu0 %2448
      %2451 = vset.pattern.permute.xlu0 1
      %2452 = vperm.xlu0 %2451, %v294
      %v2453 = vpop.permute.xlu0 %2452
      %2455 = vset.pattern.permute.xlu0 1
      %2456 = vperm.xlu0 %2455, %v295
      %v2457 = vpop.permute.xlu0 %2456
      %2459 = vset.pattern.permute.xlu0 1
      %2460 = vperm.xlu0 %2459, %v296
      %v2461 = vpop.permute.xlu0 %2460
      %2463 = vset.pattern.permute.xlu0 1
      %2464 = vperm.xlu0 %2463, %v297
      %v2465 = vpop.permute.xlu0 %2464
      %2467 = vset.pattern.permute.xlu0 1
      %2468 = vperm.xlu0 %2467, %v298
      %v2469 = vpop.permute.xlu0 %2468
      %2471 = vset.pattern.permute.xlu0 1
      %2472 = vperm.xlu0 %2471, %v299
      %v2473 = vpop.permute.xlu0 %2472
      %2475 = vset.pattern.permute.xlu0 1
      %2476 = vperm.xlu0 %2475, %v300
      %v2477 = vpop.permute.xlu0 %2476
      %2479 = vset.pattern.permute.xlu0 1
      %2480 = vperm.xlu0 %2479, %v301
      %v2481 = vpop.permute.xlu0 %2480
      %2483 = vset.pattern.permute.xlu0 1
      %2484 = vperm.xlu0 %2483, %v302
      %v2485 = vpop.permute.xlu0 %2484
      %2487 = vset.pattern.permute.xlu0 1
      %2488 = vperm.xlu0 %2487, %v303
      %v2489 = vpop.permute.xlu0 %2488
      %2491 = vset.pattern.permute.xlu0 1
      %2492 = vperm.xlu0 %2491, %v304
      %v2493 = vpop.permute.xlu0 %2492
      %2495 = vset.pattern.permute.xlu0 1
      %2496 = vperm.xlu0 %2495, %v305
      %v2497 = vpop.permute.xlu0 %2496
      %2499 = vset.pattern.permute.xlu0 1
      %2500 = vperm.xlu0 %2499, %v306
      %v2501 = vpop.permute.xlu0 %2500
      %2503 = vset.pattern.permute.xlu0 1
      %2504 = vperm.xlu0 %2503, %v307
      %v2505 = vpop.permute.xlu0 %2504
      %2507 = vset.pattern.permute.xlu0 1
      %2508 = vperm.xlu0 %2507, %v308
      %v2509 = vpop.permute.xlu0 %2508
      %2511 = vset.pattern.permute.xlu0 1
      %2512 = vperm.xlu0 %2511, %v309
      %v2513 = vpop.permute.xlu0 %2512
      %2515 = vset.pattern.permute.xlu0 1
      %2516 = vperm.xlu0 %2515, %v310
      %v2517 = vpop.permute.xlu0 %2516
      %2519 = vset.pattern.permute.xlu0 1
      %2520 = vperm.xlu0 %2519, %v311
      %v2521 = vpop.permute.xlu0 %2520
      %2523 = vset.pattern.permute.xlu0 1
      %2524 = vperm.xlu0 %2523, %v312
      %v2525 = vpop.permute.xlu0 %2524
      %2527 = vset.pattern.permute.xlu0 1
      %2528 = vperm.xlu0 %2527, %v313
      %v2529 = vpop.permute.xlu0 %2528
      %2531 = vset.pattern.permute.xlu0 1
      %2532 = vperm.xlu0 %2531, %v314
      %v2533 = vpop.permute.xlu0 %2532
      %2535 = vset.pattern.permute.xlu0 1
      %2536 = vperm.xlu0 %2535, %v315
      %v2537 = vpop.permute.xlu0 %2536
      %2539 = vset.pattern.permute.xlu0 1
      %2540 = vperm.xlu0 %2539, %v316
      %v2541 = vpop.permute.xlu0 %2540
      %2543 = vset.pattern.permute.xlu0 1
      %2544 = vperm.xlu0 %2543, %v317
      %v2545 = vpop.permute.xlu0 %2544
      %2547 = vset.pattern.permute.xlu0 1
      %2548 = vperm.xlu0 %2547, %v318
      %v2549 = vpop.permute.xlu0 %2548
      %2551 = vset.pattern.permute.xlu0 1
      %2552 = vperm.xlu0 %2551, %v319
      %v2553 = vpop.permute.xlu0 %2552
      %2555 = vset.pattern.permute.xlu0 1
      %2556 = vperm.xlu0 %2555, %v320
      %v2557 = vpop.permute.xlu0 %2556
      %2559 = vset.pattern.permute.xlu0 1
      %2560 = vperm.xlu0 %2559, %v321
      %v2561 = vpop.permute.xlu0 %2560
      %2563 = vset.pattern.permute.xlu0 1
      %2564 = vperm.xlu0 %2563, %v322
      %v2565 = vpop.permute.xlu0 %2564
      %2567 = vset.pattern.permute.xlu0 1
      %2568 = vperm.xlu0 %2567, %v323
      %v2569 = vpop.permute.xlu0 %2568
      %2571 = vset.pattern.permute.xlu0 1
      %2572 = vperm.xlu0 %2571, %v324
      %v2573 = vpop.permute.xlu0 %2572
      %2575 = vset.pattern.permute.xlu0 1
      %2576 = vperm.xlu0 %2575, %v325
      %v2577 = vpop.permute.xlu0 %2576
      %2579 = vset.pattern.permute.xlu0 1
      %2580 = vperm.xlu0 %2579, %v326
      %v2581 = vpop.permute.xlu0 %2580
      %2583 = vset.pattern.permute.xlu0 1
      %2584 = vperm.xlu0 %2583, %v327
      %v2585 = vpop.permute.xlu0 %2584
      %2587 = vset.pattern.permute.xlu0 1
      %2588 = vperm.xlu0 %2587, %v328
      %v2589 = vpop.permute.xlu0 %2588
      %2591 = vset.pattern.permute.xlu0 1
      %2592 = vperm.xlu0 %2591, %v329
      %v2593 = vpop.permute.xlu0 %2592
      %2595 = vset.pattern.permute.xlu0 1
      %2596 = vperm.xlu0 %2595, %v330
      %v2597 = vpop.permute.xlu0 %2596
      %2599 = vset.pattern.permute.xlu0 1
      %2600 = vperm.xlu0 %2599, %v331
      %v2601 = vpop.permute.xlu0 %2600
      %2603 = vset.pattern.permute.xlu0 1
      %2604 = vperm.xlu0 %2603, %v332
      %v2605 = vpop.permute.xlu0 %2604
      %2607 = vset.pattern.permute.xlu0 1
      %2608 = vperm.xlu0 %2607, %v333
      %v2609 = vpop.permute.xlu0 %2608
      %2611 = vset.pattern.permute.xlu0 1
      %2612 = vperm.xlu0 %2611, %v334
      %v2613 = vpop.permute.xlu0 %2612
      %2615 = vset.pattern.permute.xlu0 1
      %2616 = vperm.xlu0 %2615, %v335
      %v2617 = vpop.permute.xlu0 %2616
      %2619 = vset.pattern.permute.xlu0 1
      %2620 = vperm.xlu0 %2619, %v336
      %v2621 = vpop.permute.xlu0 %2620
      %2623 = vset.pattern.permute.xlu0 1
      %2624 = vperm.xlu0 %2623, %v337
      %v2625 = vpop.permute.xlu0 %2624
      %2627 = vset.pattern.permute.xlu0 1
      %2628 = vperm.xlu0 %2627, %v338
      %v2629 = vpop.permute.xlu0 %2628
      %2631 = vset.pattern.permute.xlu0 1
      %2632 = vperm.xlu0 %2631, %v339
      %v2633 = vpop.permute.xlu0 %2632
      %2635 = vset.pattern.permute.xlu0 1
      %2636 = vperm.xlu0 %2635, %v340
      %v2637 = vpop.permute.xlu0 %2636
      %2639 = vset.pattern.permute.xlu0 1
      %2640 = vperm.xlu0 %2639, %v341
      %v2641 = vpop.permute.xlu0 %2640
      %2643 = vset.pattern.permute.xlu0 1
      %2644 = vperm.xlu0 %2643, %v342
      %v2645 = vpop.permute.xlu0 %2644
      %2647 = vset.pattern.permute.xlu0 1
      %2648 = vperm.xlu0 %2647, %v343
      %v2649 = vpop.permute.xlu0 %2648
      %2651 = vset.pattern.permute.xlu0 1
      %2652 = vperm.xlu0 %2651, %v344
      %v2653 = vpop.permute.xlu0 %2652
      %2655 = vset.pattern.permute.xlu0 1
      %2656 = vperm.xlu0 %2655, %v345
      %v2657 = vpop.permute.xlu0 %2656
      %2659 = vset.pattern.permute.xlu0 1
      %2660 = vperm.xlu0 %2659, %v346
      %v2661 = vpop.permute.xlu0 %2660
      %2663 = vset.pattern.permute.xlu0 1
      %2664 = vperm.xlu0 %2663, %v347
      %v2665 = vpop.permute.xlu0 %2664
      %2667 = vset.pattern.permute.xlu0 1
      %2668 = vperm.xlu0 %2667, %v348
      %v2669 = vpop.permute.xlu0 %2668
      %2671 = vset.pattern.permute.xlu0 1
      %2672 = vperm.xlu0 %2671, %v349
      %v2673 = vpop.permute.xlu0 %2672
      %2675 = vset.pattern.permute.xlu0 1
      %2676 = vperm.xlu0 %2675, %v350
      %v2677 = vpop.permute.xlu0 %2676
      %2679 = vset.pattern.permute.xlu0 1
      %2680 = vperm.xlu0 %2679, %v351
      %v2681 = vpop.permute.xlu0 %2680
      %2683 = vset.pattern.permute.xlu0 1
      %2684 = vperm.xlu0 %2683, %v352
      %v2685 = vpop.permute.xlu0 %2684
      %2687 = vset.pattern.permute.xlu0 1
      %2688 = vperm.xlu0 %2687, %v353
      %v2689 = vpop.permute.xlu0 %2688
      %2691 = vset.pattern.permute.xlu0 1
      %2692 = vperm.xlu0 %2691, %v354
      %v2693 = vpop.permute.xlu0 %2692
      %2695 = vset.pattern.permute.xlu0 1
      %2696 = vperm.xlu0 %2695, %v355
      %v2697 = vpop.permute.xlu0 %2696
      %2699 = vset.pattern.permute.xlu0 1
      %2700 = vperm.xlu0 %2699, %v356
      %v2701 = vpop.permute.xlu0 %2700
      %2703 = vset.pattern.permute.xlu0 1
      %2704 = vperm.xlu0 %2703, %v357
      %v2705 = vpop.permute.xlu0 %2704
      %2707 = vset.pattern.permute.xlu0 1
      %2708 = vperm.xlu0 %2707, %v358
      %v2709 = vpop.permute.xlu0 %2708
      %2711 = vset.pattern.permute.xlu0 1
      %2712 = vperm.xlu0 %2711, %v359
      %v2713 = vpop.permute.xlu0 %2712
      %2715 = vset.pattern.permute.xlu0 1
      %2716 = vperm.xlu0 %2715, %v360
      %v2717 = vpop.permute.xlu0 %2716
      %2719 = vset.pattern.permute.xlu0 1
      %2720 = vperm.xlu0 %2719, %v361
      %v2721 = vpop.permute.xlu0 %2720
      %2723 = vset.pattern.permute.xlu0 1
      %2724 = vperm.xlu0 %2723, %v362
      %v2725 = vpop.permute.xlu0 %2724
      %2727 = vset.pattern.permute.xlu0 1
      %2728 = vperm.xlu0 %2727, %v363
      %v2729 = vpop.permute.xlu0 %2728
      %2731 = vset.pattern.permute.xlu0 1
      %2732 = vperm.xlu0 %2731, %v364
      %v2733 = vpop.permute.xlu0 %2732
      %2735 = vset.pattern.permute.xlu0 1
      %2736 = vperm.xlu0 %2735, %v365
      %v2737 = vpop.permute.xlu0 %2736
      %2739 = vset.pattern.permute.xlu0 1
      %2740 = vperm.xlu0 %2739, %v366
      %v2741 = vpop.permute.xlu0 %2740
      %2743 = vset.pattern.permute.xlu0 1
      %2744 = vperm.xlu0 %2743, %v367
      %v2745 = vpop.permute.xlu0 %2744
      %2747 = vset.pattern.permute.xlu0 1
      %2748 = vperm.xlu0 %2747, %v368
      %v2749 = vpop.permute.xlu0 %2748
      %2751 = vset.pattern.permute.xlu0 1
      %2752 = vperm.xlu0 %2751, %v369
      %v2753 = vpop.permute.xlu0 %2752
      %2755 = vset.pattern.permute.xlu0 1
      %2756 = vperm.xlu0 %2755, %v370
      %v2757 = vpop.permute.xlu0 %2756
      %2759 = vset.pattern.permute.xlu0 1
      %2760 = vperm.xlu0 %2759, %v371
      %v2761 = vpop.permute.xlu0 %2760
      %2763 = vset.pattern.permute.xlu0 1
      %2764 = vperm.xlu0 %2763, %v372
      %v2765 = vpop.permute.xlu0 %2764
      %2767 = vset.pattern.permute.xlu0 1
      %2768 = vperm.xlu0 %2767, %v373
      %v2769 = vpop.permute.xlu0 %2768
      %2771 = vset.pattern.permute.xlu0 1
      %2772 = vperm.xlu0 %2771, %v374
      %v2773 = vpop.permute.xlu0 %2772
      %2775 = vset.pattern.permute.xlu0 1
      %2776 = vperm.xlu0 %2775, %v375
      %v2777 = vpop.permute.xlu0 %2776
      %2779 = vset.pattern.permute.xlu0 1
      %2780 = vperm.xlu0 %2779, %v376
      %v2781 = vpop.permute.xlu0 %2780
      %2783 = vset.pattern.permute.xlu0 1
      %2784 = vperm.xlu0 %2783, %v377
      %v2785 = vpop.permute.xlu0 %2784
      %2787 = vset.pattern.permute.xlu0 1
      %2788 = vperm.xlu0 %2787, %v378
      %v2789 = vpop.permute.xlu0 %2788
      %2791 = vset.pattern.permute.xlu0 1
      %2792 = vperm.xlu0 %2791, %v379
      %v2793 = vpop.permute.xlu0 %2792
      %2795 = vset.pattern.permute.xlu0 1
      %2796 = vperm.xlu0 %2795, %v380
      %v2797 = vpop.permute.xlu0 %2796
      %2799 = vset.pattern.permute.xlu0 1
      %2800 = vperm.xlu0 %2799, %v381
      %v2801 = vpop.permute.xlu0 %2800
      %2803 = vset.pattern.permute.xlu0 1
      %2804 = vperm.xlu0 %2803, %v382
      %v2805 = vpop.permute.xlu0 %2804
      %2807 = vset.pattern.permute.xlu0 1
      %2808 = vperm.xlu0 %2807, %v383
      %v2809 = vpop.permute.xlu0 %2808
      %2811 = vset.pattern.permute.xlu0 1
      %2812 = vperm.xlu0 %2811, %v384
      %v2813 = vpop.permute.xlu0 %2812
      %2815 = vset.pattern.permute.xlu0 1
      %2816 = vperm.xlu0 %2815, %v385
      %v2817 = vpop.permute.xlu0 %2816
      %2819 = vset.pattern.permute.xlu0 1
      %2820 = vperm.xlu0 %2819, %v386
      %v2821 = vpop.permute.xlu0 %2820
      %2823 = vset.pattern.permute.xlu0 1
      %2824 = vperm.xlu0 %2823, %v387
      %v2825 = vpop.permute.xlu0 %2824
      %2827 = vset.pattern.permute.xlu0 1
      %2828 = vperm.xlu0 %2827, %v388
      %v2829 = vpop.permute.xlu0 %2828
      %2831 = vset.pattern.permute.xlu0 1
      %2832 = vperm.xlu0 %2831, %v389
      %v2833 = vpop.permute.xlu0 %2832
      %2835 = vset.pattern.permute.xlu0 1
      %2836 = vperm.xlu0 %2835, %v390
      %v2837 = vpop.permute.xlu0 %2836
      %2839 = vset.pattern.permute.xlu0 1
      %2840 = vperm.xlu0 %2839, %v391
      %v2841 = vpop.permute.xlu0 %2840
      %2843 = vset.pattern.permute.xlu0 1
      %2844 = vperm.xlu0 %2843, %v392
      %v2845 = vpop.permute.xlu0 %2844
      %2847 = vset.pattern.permute.xlu0 1
      %2848 = vperm.xlu0 %2847, %v393
      %v2849 = vpop.permute.xlu0 %2848
      %2851 = vset.pattern.permute.xlu0 1
      %2852 = vperm.xlu0 %2851, %v394
      %v2853 = vpop.permute.xlu0 %2852
      %2855 = vset.pattern.permute.xlu0 1
      %2856 = vperm.xlu0 %2855, %v395
      %v2857 = vpop.permute.xlu0 %2856
      %2859 = vset.pattern.permute.xlu0 1
      %2860 = vperm.xlu0 %2859, %v396
      %v2861 = vpop.permute.xlu0 %2860
      %2863 = vset.pattern.permute.xlu0 1
      %2864 = vperm.xlu0 %2863, %v397
      %v2865 = vpop.permute.xlu0 %2864
      %2867 = vset.pattern.permute.xlu0 1
      %2868 = vperm.xlu0 %2867, %v398
      %v2869 = vpop.permute.xlu0 %2868
      %2871 = vset.pattern.permute.xlu0 1
      %2872 = vperm.xlu0 %2871, %v399
      %v2873 = vpop.permute.xlu0 %2872
      %2875 = vset.pattern.permute.xlu0 1
      %2876 = vperm.xlu0 %2875, %v400
      %v2877 = vpop.permute.xlu0 %2876
      %2879 = vset.pattern.permute.xlu0 1
      %2880 = vperm.xlu0 %2879, %v401
      %v2881 = vpop.permute.xlu0 %2880
      %2883 = vset.pattern.permute.xlu0 1
      %2884 = vperm.xlu0 %2883, %v402
      %v2885 = vpop.permute.xlu0 %2884
      %2887 = vset.pattern.permute.xlu0 1
      %2888 = vperm.xlu0 %2887, %v403
      %v2889 = vpop.permute.xlu0 %2888
      %2891 = vset.pattern.permute.xlu0 1
      %2892 = vperm.xlu0 %2891, %v404
      %v2893 = vpop.permute.xlu0 %2892
      %2895 = vset.pattern.permute.xlu0 1
      %2896 = vperm.xlu0 %2895, %v405
      %v2897 = vpop.permute.xlu0 %2896
      %2899 = vset.pattern.permute.xlu0 1
      %2900 = vperm.xlu0 %2899, %v406
      %v2901 = vpop.permute.xlu0 %2900
      %2903 = vset.pattern.permute.xlu0 1
      %2904 = vperm.xlu0 %2903, %v407
      %v2905 = vpop.permute.xlu0 %2904
      %2907 = vset.pattern.permute.xlu0 1
      %2908 = vperm.xlu0 %2907, %v408
      %v2909 = vpop.permute.xlu0 %2908
      %2911 = vset.pattern.permute.xlu0 1
      %2912 = vperm.xlu0 %2911, %v409
      %v2913 = vpop.permute.xlu0 %2912
      %2915 = vset.pattern.permute.xlu0 1
      %2916 = vperm.xlu0 %2915, %v410
      %v2917 = vpop.permute.xlu0 %2916
      %2919 = vset.pattern.permute.xlu0 1
      %2920 = vperm.xlu0 %2919, %v411
      %v2921 = vpop.permute.xlu0 %2920
      %2923 = vset.pattern.permute.xlu0 1
      %2924 = vperm.xlu0 %2923, %v412
      %v2925 = vpop.permute.xlu0 %2924
      %2927 = vset.pattern.permute.xlu0 1
      %2928 = vperm.xlu0 %2927, %v413
      %v2929 = vpop.permute.xlu0 %2928
      %2931 = vset.pattern.permute.xlu0 1
      %2932 = vperm.xlu0 %2931, %v414
      %v2933 = vpop.permute.xlu0 %2932
      %2935 = vset.pattern.permute.xlu0 1
      %2936 = vperm.xlu0 %2935, %v415
      %v2937 = vpop.permute.xlu0 %2936
      %2939 = vset.pattern.permute.xlu0 1
      %2940 = vperm.xlu0 %2939, %v416
      %v2941 = vpop.permute.xlu0 %2940
      %2943 = vset.pattern.permute.xlu0 1
      %2944 = vperm.xlu0 %2943, %v417
      %v2945 = vpop.permute.xlu0 %2944
      %2947 = vset.pattern.permute.xlu0 1
      %2948 = vperm.xlu0 %2947, %v418
      %v2949 = vpop.permute.xlu0 %2948
      %2951 = vset.pattern.permute.xlu0 1
      %2952 = vperm.xlu0 %2951, %v419
      %v2953 = vpop.permute.xlu0 %2952
      %2955 = vset.pattern.permute.xlu0 1
      %2956 = vperm.xlu0 %2955, %v420
      %v2957 = vpop.permute.xlu0 %2956
      %2959 = vset.pattern.permute.xlu0 1
      %2960 = vperm.xlu0 %2959, %v421
      %v2961 = vpop.permute.xlu0 %2960
      %2963 = vset.pattern.permute.xlu0 1
      %2964 = vperm.xlu0 %2963, %v422
      %v2965 = vpop.permute.xlu0 %2964
      %2967 = vset.pattern.permute.xlu0 1
      %2968 = vperm.xlu0 %2967, %v423
      %v2969 = vpop.permute.xlu0 %2968
      %2971 = vset.pattern.permute.xlu0 1
      %2972 = vperm.xlu0 %2971, %v424
      %v2973 = vpop.permute.xlu0 %2972
      %2975 = vset.pattern.permute.xlu0 1
      %2976 = vperm.xlu0 %2975, %v425
      %v2977 = vpop.permute.xlu0 %2976
      %2979 = vset.pattern.permute.xlu0 1
      %2980 = vperm.xlu0 %2979, %v426
      %v2981 = vpop.permute.xlu0 %2980
      %2983 = vset.pattern.permute.xlu0 1
      %2984 = vperm.xlu0 %2983, %v427
      %v2985 = vpop.permute.xlu0 %2984
      %2987 = vset.pattern.permute.xlu0 1
      %2988 = vperm.xlu0 %2987, %v428
      %v2989 = vpop.permute.xlu0 %2988
      %2991 = vset.pattern.permute.xlu0 1
      %2992 = vperm.xlu0 %2991, %v429
      %v2993 = vpop.permute.xlu0 %2992
      %v2995 = vlaneseq
      %v2996 = vshrl.u32 %v2995, 7
      %v2997 = vsub.s32 1, %v2996
      %v2998 = vrot.slane %v430, %v2997
      %v2999 = vmul.f32 %v1973, %v2998
      %v3000 = vmul.f32 %v1977, %v2998
      %v3001 = vmul.f32 %v1981, %v2998
      %v3002 = vmul.f32 %v1985, %v2998
      %v3003 = vmul.f32 %v1989, %v2998
      %v3004 = vmul.f32 %v1993, %v2998
      %v3005 = vmul.f32 %v1997, %v2998
      %v3006 = vmul.f32 %v2001, %v2998
      %v3007 = vmul.f32 %v2005, %v2998
      %v3008 = vmul.f32 %v2009, %v2998
      %v3009 = vmul.f32 %v2013, %v2998
      %v3010 = vmul.f32 %v2017, %v2998
      %v3011 = vmul.f32 %v2021, %v2998
      %v3012 = vmul.f32 %v2025, %v2998
      %v3013 = vmul.f32 %v2029, %v2998
      %v3014 = vmul.f32 %v2033, %v2998
      %v3015 = vmul.f32 %v2037, %v2998
      %v3016 = vmul.f32 %v2041, %v2998
      %v3017 = vmul.f32 %v2045, %v2998
      %v3018 = vmul.f32 %v2049, %v2998
      %v3019 = vmul.f32 %v2053, %v2998
      %v3020 = vmul.f32 %v2057, %v2998
      %v3021 = vmul.f32 %v2061, %v2998
      %v3022 = vmul.f32 %v2065, %v2998
      %v3023 = vmul.f32 %v2069, %v2998
      %v3024 = vmul.f32 %v2073, %v2998
      %v3025 = vmul.f32 %v2077, %v2998
      %v3026 = vmul.f32 %v2081, %v2998
      %v3027 = vmul.f32 %v2085, %v2998
      %v3028 = vmul.f32 %v2089, %v2998
      %v3029 = vmul.f32 %v2093, %v2998
      %v3030 = vmul.f32 %v2097, %v2998
      %v3031 = vmul.f32 %v2101, %v2998
      %v3032 = vmul.f32 %v2105, %v2998
      %v3033 = vmul.f32 %v2109, %v2998
      %v3034 = vmul.f32 %v2113, %v2998
      %v3035 = vmul.f32 %v2117, %v2998
      %v3036 = vmul.f32 %v2121, %v2998
      %v3037 = vmul.f32 %v2125, %v2998
      %v3038 = vmul.f32 %v2129, %v2998
      %v3039 = vmul.f32 %v2133, %v2998
      %v3040 = vmul.f32 %v2137, %v2998
      %v3041 = vmul.f32 %v2141, %v2998
      %v3042 = vmul.f32 %v2145, %v2998
      %v3043 = vmul.f32 %v2149, %v2998
      %v3044 = vmul.f32 %v2153, %v2998
      %v3045 = vmul.f32 %v2157, %v2998
      %v3046 = vmul.f32 %v2161, %v2998
      %v3047 = vmul.f32 %v2165, %v2998
      %v3048 = vmul.f32 %v2169, %v2998
      %v3049 = vmul.f32 %v2173, %v2998
      %v3050 = vmul.f32 %v2177, %v2998
      %v3051 = vmul.f32 %v2181, %v2998
      %v3052 = vmul.f32 %v2185, %v2998
      %v3053 = vmul.f32 %v2189, %v2998
      %v3054 = vmul.f32 %v2193, %v2998
      %v3055 = vmul.f32 %v2197, %v2998
      %v3056 = vmul.f32 %v2201, %v2998
      %v3057 = vmul.f32 %v2205, %v2998
      %v3058 = vmul.f32 %v2209, %v2998
      %v3059 = vmul.f32 %v2213, %v2998
      %v3060 = vmul.f32 %v2217, %v2998
      %v3061 = vmul.f32 %v2221, %v2998
      %v3062 = vmul.f32 %v2225, %v2998
      %v3063 = vmul.f32 %v2229, %v2998
      %v3064 = vmul.f32 %v2233, %v2998
      %v3065 = vmul.f32 %v2237, %v2998
      %v3066 = vmul.f32 %v2241, %v2998
      %v3067 = vmul.f32 %v2245, %v2998
      %v3068 = vmul.f32 %v2249, %v2998
      %v3069 = vmul.f32 %v2253, %v2998
      %v3070 = vmul.f32 %v2257, %v2998
      %v3071 = vmul.f32 %v2261, %v2998
      %v3072 = vmul.f32 %v2265, %v2998
      %v3073 = vmul.f32 %v2269, %v2998
      %v3074 = vmul.f32 %v2273, %v2998
      %v3075 = vmul.f32 %v2277, %v2998
      %v3076 = vmul.f32 %v2281, %v2998
      %v3077 = vmul.f32 %v2285, %v2998
      %v3078 = vmul.f32 %v2289, %v2998
      %v3079 = vmul.f32 %v2293, %v2998
      %v3080 = vmul.f32 %v2297, %v2998
      %v3081 = vmul.f32 %v2301, %v2998
      %v3082 = vmul.f32 %v2305, %v2998
      %v3083 = vmul.f32 %v2309, %v2998
      %v3084 = vmul.f32 %v2313, %v2998
      %v3085 = vmul.f32 %v2317, %v2998
      %v3086 = vmul.f32 %v2321, %v2998
      %v3087 = vmul.f32 %v2325, %v2998
      %v3088 = vmul.f32 %v2329, %v2998
      %v3089 = vmul.f32 %v2333, %v2998
      %v3090 = vmul.f32 %v2337, %v2998
      %v3091 = vmul.f32 %v2341, %v2998
      %v3092 = vmul.f32 %v2345, %v2998
      %v3093 = vmul.f32 %v2349, %v2998
      %v3094 = vmul.f32 %v2353, %v2998
      %v3095 = vmul.f32 %v2357, %v2998
      %v3096 = vmul.f32 %v2361, %v2998
      %v3097 = vmul.f32 %v2365, %v2998
      %v3098 = vmul.f32 %v2369, %v2998
      %v3099 = vmul.f32 %v2373, %v2998
      %v3100 = vmul.f32 %v2377, %v2998
      %v3101 = vmul.f32 %v2381, %v2998
      %v3102 = vmul.f32 %v2385, %v2998
      %v3103 = vmul.f32 %v2389, %v2998
      %v3104 = vmul.f32 %v2393, %v2998
      %v3105 = vmul.f32 %v2397, %v2998
      %v3106 = vmul.f32 %v2401, %v2998
      %v3107 = vmul.f32 %v2405, %v2998
      %v3108 = vmul.f32 %v2409, %v2998
      %v3109 = vmul.f32 %v2413, %v2998
      %v3110 = vmul.f32 %v2417, %v2998
      %v3111 = vmul.f32 %v2421, %v2998
      %v3112 = vmul.f32 %v2425, %v2998
      %v3113 = vmul.f32 %v2429, %v2998
      %v3114 = vmul.f32 %v2433, %v2998
      %v3115 = vmul.f32 %v2437, %v2998
      %v3116 = vmul.f32 %v2441, %v2998
      %v3117 = vmul.f32 %v2445, %v2998
      %v3118 = vmul.f32 %v2449, %v2998
      %v3119 = vmul.f32 %v2453, %v2998
      %v3120 = vmul.f32 %v2457, %v2998
      %v3121 = vmul.f32 %v2461, %v2998
      %v3122 = vmul.f32 %v2465, %v2998
      %v3123 = vmul.f32 %v2469, %v2998
      %v3124 = vmul.f32 %v2473, %v2998
      %v3125 = vmul.f32 %v2477, %v2998
      %v3126 = vmul.f32 %v2481, %v2998
      %v3127 = vmul.f32 %v2485, %v2998
      %v3128 = vmul.f32 %v2489, %v2998
      %v3129 = vmul.f32 %v2493, %v2998
      %v3130 = vmul.f32 %v2497, %v2998
      %v3131 = vmul.f32 %v2501, %v2998
      %v3132 = vmul.f32 %v2505, %v2998
      %v3133 = vmul.f32 %v2509, %v2998
      %v3134 = vmul.f32 %v2513, %v2998
      %v3135 = vmul.f32 %v2517, %v2998
      %v3136 = vmul.f32 %v2521, %v2998
      %v3137 = vmul.f32 %v2525, %v2998
      %v3138 = vmul.f32 %v2529, %v2998
      %v3139 = vmul.f32 %v2533, %v2998
      %v3140 = vmul.f32 %v2537, %v2998
      %v3141 = vmul.f32 %v2541, %v2998
      %v3142 = vmul.f32 %v2545, %v2998
      %v3143 = vmul.f32 %v2549, %v2998
      %v3144 = vmul.f32 %v2553, %v2998
      %v3145 = vmul.f32 %v2557, %v2998
      %v3146 = vmul.f32 %v2561, %v2998
      %v3147 = vmul.f32 %v2565, %v2998
      %v3148 = vmul.f32 %v2569, %v2998
      %v3149 = vmul.f32 %v2573, %v2998
      %v3150 = vmul.f32 %v2577, %v2998
      %v3151 = vmul.f32 %v2581, %v2998
      %v3152 = vmul.f32 %v2585, %v2998
      %v3153 = vmul.f32 %v2589, %v2998
      %v3154 = vmul.f32 %v2593, %v2998
      %v3155 = vmul.f32 %v2597, %v2998
      %v3156 = vmul.f32 %v2601, %v2998
      %v3157 = vmul.f32 %v2605, %v2998
      %v3158 = vmul.f32 %v2609, %v2998
      %v3159 = vmul.f32 %v2613, %v2998
      %v3160 = vmul.f32 %v2617, %v2998
      %v3161 = vmul.f32 %v2621, %v2998
      %v3162 = vmul.f32 %v2625, %v2998
      %v3163 = vmul.f32 %v2629, %v2998
      %v3164 = vmul.f32 %v2633, %v2998
      %v3165 = vmul.f32 %v2637, %v2998
      %v3166 = vmul.f32 %v2641, %v2998
      %v3167 = vmul.f32 %v2645, %v2998
      %v3168 = vmul.f32 %v2649, %v2998
      %v3169 = vmul.f32 %v2653, %v2998
      %v3170 = vmul.f32 %v2657, %v2998
      %v3171 = vmul.f32 %v2661, %v2998
      %v3172 = vmul.f32 %v2665, %v2998
      %v3173 = vmul.f32 %v2669, %v2998
      %v3174 = vmul.f32 %v2673, %v2998
      %v3175 = vmul.f32 %v2677, %v2998
      %v3176 = vmul.f32 %v2681, %v2998
      %v3177 = vmul.f32 %v2685, %v2998
      %v3178 = vmul.f32 %v2689, %v2998
      %v3179 = vmul.f32 %v2693, %v2998
      %v3180 = vmul.f32 %v2697, %v2998
      %v3181 = vmul.f32 %v2701, %v2998
      %v3182 = vmul.f32 %v2705, %v2998
      %v3183 = vmul.f32 %v2709, %v2998
      %v3184 = vmul.f32 %v2713, %v2998
      %v3185 = vmul.f32 %v2717, %v2998
      %v3186 = vmul.f32 %v2721, %v2998
      %v3187 = vmul.f32 %v2725, %v2998
      %v3188 = vmul.f32 %v2729, %v2998
      %v3189 = vmul.f32 %v2733, %v2998
      %v3190 = vmul.f32 %v2737, %v2998
      %v3191 = vmul.f32 %v2741, %v2998
      %v3192 = vmul.f32 %v2745, %v2998
      %v3193 = vmul.f32 %v2749, %v2998
      %v3194 = vmul.f32 %v2753, %v2998
      %v3195 = vmul.f32 %v2757, %v2998
      %v3196 = vmul.f32 %v2761, %v2998
      %v3197 = vmul.f32 %v2765, %v2998
      %v3198 = vmul.f32 %v2769, %v2998
      %v3199 = vmul.f32 %v2773, %v2998
      %v3200 = vmul.f32 %v2777, %v2998
      %v3201 = vmul.f32 %v2781, %v2998
      %v3202 = vmul.f32 %v2785, %v2998
      %v3203 = vmul.f32 %v2789, %v2998
      %v3204 = vmul.f32 %v2793, %v2998
      %v3205 = vmul.f32 %v2797, %v2998
      %v3206 = vmul.f32 %v2801, %v2998
      %v3207 = vmul.f32 %v2805, %v2998
      %v3208 = vmul.f32 %v2809, %v2998
      %v3209 = vmul.f32 %v2813, %v2998
      %v3210 = vmul.f32 %v2817, %v2998
      %v3211 = vmul.f32 %v2821, %v2998
      %v3212 = vmul.f32 %v2825, %v2998
      %v3213 = vmul.f32 %v2829, %v2998
      %v3214 = vmul.f32 %v2833, %v2998
      %v3215 = vmul.f32 %v2837, %v2998
      %v3216 = vmul.f32 %v2841, %v2998
      %v3217 = vmul.f32 %v2845, %v2998
      %v3218 = vmul.f32 %v2849, %v2998
      %v3219 = vmul.f32 %v2853, %v2998
      %v3220 = vmul.f32 %v2857, %v2998
      %v3221 = vmul.f32 %v2861, %v2998
      %v3222 = vmul.f32 %v2865, %v2998
      %v3223 = vmul.f32 %v2869, %v2998
      %v3224 = vmul.f32 %v2873, %v2998
      %v3225 = vmul.f32 %v2877, %v2998
      %v3226 = vmul.f32 %v2881, %v2998
      %v3227 = vmul.f32 %v2885, %v2998
      %v3228 = vmul.f32 %v2889, %v2998
      %v3229 = vmul.f32 %v2893, %v2998
      %v3230 = vmul.f32 %v2897, %v2998
      %v3231 = vmul.f32 %v2901, %v2998
      %v3232 = vmul.f32 %v2905, %v2998
      %v3233 = vmul.f32 %v2909, %v2998
      %v3234 = vmul.f32 %v2913, %v2998
      %v3235 = vmul.f32 %v2917, %v2998
      %v3236 = vmul.f32 %v2921, %v2998
      %v3237 = vmul.f32 %v2925, %v2998
      %v3238 = vmul.f32 %v2929, %v2998
      %v3239 = vmul.f32 %v2933, %v2998
      %v3240 = vmul.f32 %v2937, %v2998
      %v3241 = vmul.f32 %v2941, %v2998
      %v3242 = vmul.f32 %v2945, %v2998
      %v3243 = vmul.f32 %v2949, %v2998
      %v3244 = vmul.f32 %v2953, %v2998
      %v3245 = vmul.f32 %v2957, %v2998
      %v3246 = vmul.f32 %v2961, %v2998
      %v3247 = vmul.f32 %v2965, %v2998
      %v3248 = vmul.f32 %v2969, %v2998
      %v3249 = vmul.f32 %v2973, %v2998
      %v3250 = vmul.f32 %v2977, %v2998
      %v3251 = vmul.f32 %v2981, %v2998
      %v3252 = vmul.f32 %v2985, %v2998
      %v3253 = vmul.f32 %v2989, %v2998
      %v3254 = vmul.f32 %v2993, %v2998
      %v3255 = vadd.f32 %v1715, %v2999
      %v3256 = vadd.f32 %v1716, %v3000
      %v3257 = vadd.f32 %v1717, %v3001
      %v3258 = vadd.f32 %v1718, %v3002
      %v3259 = vadd.f32 %v1719, %v3003
      %v3260 = vadd.f32 %v1720, %v3004
      %v3261 = vadd.f32 %v1721, %v3005
      %v3262 = vadd.f32 %v1722, %v3006
      %v3263 = vadd.f32 %v1723, %v3007
      %v3264 = vadd.f32 %v1724, %v3008
      %v3265 = vadd.f32 %v1725, %v3009
      %v3266 = vadd.f32 %v1726, %v3010
      %v3267 = vadd.f32 %v1727, %v3011
      %v3268 = vadd.f32 %v1728, %v3012
      %v3269 = vadd.f32 %v1729, %v3013
      %v3270 = vadd.f32 %v1730, %v3014
      %v3271 = vadd.f32 %v1731, %v3015
      %v3272 = vadd.f32 %v1732, %v3016
      %v3273 = vadd.f32 %v1733, %v3017
      %v3274 = vadd.f32 %v1734, %v3018
      %v3275 = vadd.f32 %v1735, %v3019
      %v3276 = vadd.f32 %v1736, %v3020
      %v3277 = vadd.f32 %v1737, %v3021
      %v3278 = vadd.f32 %v1738, %v3022
      %v3279 = vadd.f32 %v1739, %v3023
      %v3280 = vadd.f32 %v1740, %v3024
      %v3281 = vadd.f32 %v1741, %v3025
      %v3282 = vadd.f32 %v1742, %v3026
      %v3283 = vadd.f32 %v1743, %v3027
      %v3284 = vadd.f32 %v1744, %v3028
      %v3285 = vadd.f32 %v1745, %v3029
      %v3286 = vadd.f32 %v1746, %v3030
      %v3287 = vadd.f32 %v1747, %v3031
      %v3288 = vadd.f32 %v1748, %v3032
      %v3289 = vadd.f32 %v1749, %v3033
      %v3290 = vadd.f32 %v1750, %v3034
      %v3291 = vadd.f32 %v1751, %v3035
      %v3292 = vadd.f32 %v1752, %v3036
      %v3293 = vadd.f32 %v1753, %v3037
      %v3294 = vadd.f32 %v1754, %v3038
      %v3295 = vadd.f32 %v1755, %v3039
      %v3296 = vadd.f32 %v1756, %v3040
      %v3297 = vadd.f32 %v1757, %v3041
      %v3298 = vadd.f32 %v1758, %v3042
      %v3299 = vadd.f32 %v1759, %v3043
      %v3300 = vadd.f32 %v1760, %v3044
      %v3301 = vadd.f32 %v1761, %v3045
      %v3302 = vadd.f32 %v1762, %v3046
      %v3303 = vadd.f32 %v1763, %v3047
      %v3304 = vadd.f32 %v1764, %v3048
      %v3305 = vadd.f32 %v1765, %v3049
      %v3306 = vadd.f32 %v1766, %v3050
      %v3307 = vadd.f32 %v1767, %v3051
      %v3308 = vadd.f32 %v1768, %v3052
      %v3309 = vadd.f32 %v1769, %v3053
      %v3310 = vadd.f32 %v1770, %v3054
      %v3311 = vadd.f32 %v1771, %v3055
      %v3312 = vadd.f32 %v1772, %v3056
      %v3313 = vadd.f32 %v1773, %v3057
      %v3314 = vadd.f32 %v1774, %v3058
      %v3315 = vadd.f32 %v1775, %v3059
      %v3316 = vadd.f32 %v1776, %v3060
      %v3317 = vadd.f32 %v1777, %v3061
      %v3318 = vadd.f32 %v1778, %v3062
      %v3319 = vadd.f32 %v1779, %v3063
      %v3320 = vadd.f32 %v1780, %v3064
      %v3321 = vadd.f32 %v1781, %v3065
      %v3322 = vadd.f32 %v1782, %v3066
      %v3323 = vadd.f32 %v1783, %v3067
      %v3324 = vadd.f32 %v1784, %v3068
      %v3325 = vadd.f32 %v1785, %v3069
      %v3326 = vadd.f32 %v1786, %v3070
      %v3327 = vadd.f32 %v1787, %v3071
      %v3328 = vadd.f32 %v1788, %v3072
      %v3329 = vadd.f32 %v1789, %v3073
      %v3330 = vadd.f32 %v1790, %v3074
      %v3331 = vadd.f32 %v1791, %v3075
      %v3332 = vadd.f32 %v1792, %v3076
      %v3333 = vadd.f32 %v1793, %v3077
      %v3334 = vadd.f32 %v1794, %v3078
      %v3335 = vadd.f32 %v1795, %v3079
      %v3336 = vadd.f32 %v1796, %v3080
      %v3337 = vadd.f32 %v1797, %v3081
      %v3338 = vadd.f32 %v1798, %v3082
      %v3339 = vadd.f32 %v1799, %v3083
      %v3340 = vadd.f32 %v1800, %v3084
      %v3341 = vadd.f32 %v1801, %v3085
      %v3342 = vadd.f32 %v1802, %v3086
      %v3343 = vadd.f32 %v1803, %v3087
      %v3344 = vadd.f32 %v1804, %v3088
      %v3345 = vadd.f32 %v1805, %v3089
      %v3346 = vadd.f32 %v1806, %v3090
      %v3347 = vadd.f32 %v1807, %v3091
      %v3348 = vadd.f32 %v1808, %v3092
      %v3349 = vadd.f32 %v1809, %v3093
      %v3350 = vadd.f32 %v1810, %v3094
      %v3351 = vadd.f32 %v1811, %v3095
      %v3352 = vadd.f32 %v1812, %v3096
      %v3353 = vadd.f32 %v1813, %v3097
      %v3354 = vadd.f32 %v1814, %v3098
      %v3355 = vadd.f32 %v1815, %v3099
      %v3356 = vadd.f32 %v1816, %v3100
      %v3357 = vadd.f32 %v1817, %v3101
      %v3358 = vadd.f32 %v1818, %v3102
      %v3359 = vadd.f32 %v1819, %v3103
      %v3360 = vadd.f32 %v1820, %v3104
      %v3361 = vadd.f32 %v1821, %v3105
      %v3362 = vadd.f32 %v1822, %v3106
      %v3363 = vadd.f32 %v1823, %v3107
      %v3364 = vadd.f32 %v1824, %v3108
      %v3365 = vadd.f32 %v1825, %v3109
      %v3366 = vadd.f32 %v1826, %v3110
      %v3367 = vadd.f32 %v1827, %v3111
      %v3368 = vadd.f32 %v1828, %v3112
      %v3369 = vadd.f32 %v1829, %v3113
      %v3370 = vadd.f32 %v1830, %v3114
      %v3371 = vadd.f32 %v1831, %v3115
      %v3372 = vadd.f32 %v1832, %v3116
      %v3373 = vadd.f32 %v1833, %v3117
      %v3374 = vadd.f32 %v1834, %v3118
      %v3375 = vadd.f32 %v1835, %v3119
      %v3376 = vadd.f32 %v1836, %v3120
      %v3377 = vadd.f32 %v1837, %v3121
      %v3378 = vadd.f32 %v1838, %v3122
      %v3379 = vadd.f32 %v1839, %v3123
      %v3380 = vadd.f32 %v1840, %v3124
      %v3381 = vadd.f32 %v1841, %v3125
      %v3382 = vadd.f32 %v1842, %v3126
      %v3383 = vadd.f32 %v1843, %v3127
      %v3384 = vadd.f32 %v1844, %v3128
      %v3385 = vadd.f32 %v1845, %v3129
      %v3386 = vadd.f32 %v1846, %v3130
      %v3387 = vadd.f32 %v1847, %v3131
      %v3388 = vadd.f32 %v1848, %v3132
      %v3389 = vadd.f32 %v1849, %v3133
      %v3390 = vadd.f32 %v1850, %v3134
      %v3391 = vadd.f32 %v1851, %v3135
      %v3392 = vadd.f32 %v1852, %v3136
      %v3393 = vadd.f32 %v1853, %v3137
      %v3394 = vadd.f32 %v1854, %v3138
      %v3395 = vadd.f32 %v1855, %v3139
      %v3396 = vadd.f32 %v1856, %v3140
      %v3397 = vadd.f32 %v1857, %v3141
      %v3398 = vadd.f32 %v1858, %v3142
      %v3399 = vadd.f32 %v1859, %v3143
      %v3400 = vadd.f32 %v1860, %v3144
      %v3401 = vadd.f32 %v1861, %v3145
      %v3402 = vadd.f32 %v1862, %v3146
      %v3403 = vadd.f32 %v1863, %v3147
      %v3404 = vadd.f32 %v1864, %v3148
      %v3405 = vadd.f32 %v1865, %v3149
      %v3406 = vadd.f32 %v1866, %v3150
      %v3407 = vadd.f32 %v1867, %v3151
      %v3408 = vadd.f32 %v1868, %v3152
      %v3409 = vadd.f32 %v1869, %v3153
      %v3410 = vadd.f32 %v1870, %v3154
      %v3411 = vadd.f32 %v1871, %v3155
      %v3412 = vadd.f32 %v1872, %v3156
      %v3413 = vadd.f32 %v1873, %v3157
      %v3414 = vadd.f32 %v1874, %v3158
      %v3415 = vadd.f32 %v1875, %v3159
      %v3416 = vadd.f32 %v1876, %v3160
      %v3417 = vadd.f32 %v1877, %v3161
      %v3418 = vadd.f32 %v1878, %v3162
      %v3419 = vadd.f32 %v1879, %v3163
      %v3420 = vadd.f32 %v1880, %v3164
      %v3421 = vadd.f32 %v1881, %v3165
      %v3422 = vadd.f32 %v1882, %v3166
      %v3423 = vadd.f32 %v1883, %v3167
      %v3424 = vadd.f32 %v1884, %v3168
      %v3425 = vadd.f32 %v1885, %v3169
      %v3426 = vadd.f32 %v1886, %v3170
      %v3427 = vadd.f32 %v1887, %v3171
      %v3428 = vadd.f32 %v1888, %v3172
      %v3429 = vadd.f32 %v1889, %v3173
      %v3430 = vadd.f32 %v1890, %v3174
      %v3431 = vadd.f32 %v1891, %v3175
      %v3432 = vadd.f32 %v1892, %v3176
      %v3433 = vadd.f32 %v1893, %v3177
      %v3434 = vadd.f32 %v1894, %v3178
      %v3435 = vadd.f32 %v1895, %v3179
      %v3436 = vadd.f32 %v1896, %v3180
      %v3437 = vadd.f32 %v1897, %v3181
      %v3438 = vadd.f32 %v1898, %v3182
      %v3439 = vadd.f32 %v1899, %v3183
      %v3440 = vadd.f32 %v1900, %v3184
      %v3441 = vadd.f32 %v1901, %v3185
      %v3442 = vadd.f32 %v1902, %v3186
      %v3443 = vadd.f32 %v1903, %v3187
      %v3444 = vadd.f32 %v1904, %v3188
      %v3445 = vadd.f32 %v1905, %v3189
      %v3446 = vadd.f32 %v1906, %v3190
      %v3447 = vadd.f32 %v1907, %v3191
      %v3448 = vadd.f32 %v1908, %v3192
      %v3449 = vadd.f32 %v1909, %v3193
      %v3450 = vadd.f32 %v1910, %v3194
      %v3451 = vadd.f32 %v1911, %v3195
      %v3452 = vadd.f32 %v1912, %v3196
      %v3453 = vadd.f32 %v1913, %v3197
      %v3454 = vadd.f32 %v1914, %v3198
      %v3455 = vadd.f32 %v1915, %v3199
      %v3456 = vadd.f32 %v1916, %v3200
      %v3457 = vadd.f32 %v1917, %v3201
      %v3458 = vadd.f32 %v1918, %v3202
      %v3459 = vadd.f32 %v1919, %v3203
      %v3460 = vadd.f32 %v1920, %v3204
      %v3461 = vadd.f32 %v1921, %v3205
      %v3462 = vadd.f32 %v1922, %v3206
      %v3463 = vadd.f32 %v1923, %v3207
      %v3464 = vadd.f32 %v1924, %v3208
      %v3465 = vadd.f32 %v1925, %v3209
      %v3466 = vadd.f32 %v1926, %v3210
      %v3467 = vadd.f32 %v1927, %v3211
      %v3468 = vadd.f32 %v1928, %v3212
      %v3469 = vadd.f32 %v1929, %v3213
      %v3470 = vadd.f32 %v1930, %v3214
      %v3471 = vadd.f32 %v1931, %v3215
      %v3472 = vadd.f32 %v1932, %v3216
      %v3473 = vadd.f32 %v1933, %v3217
      %v3474 = vadd.f32 %v1934, %v3218
      %v3475 = vadd.f32 %v1935, %v3219
      %v3476 = vadd.f32 %v1936, %v3220
      %v3477 = vadd.f32 %v1937, %v3221
      %v3478 = vadd.f32 %v1938, %v3222
      %v3479 = vadd.f32 %v1939, %v3223
      %v3480 = vadd.f32 %v1940, %v3224
      %v3481 = vadd.f32 %v1941, %v3225
      %v3482 = vadd.f32 %v1942, %v3226
      %v3483 = vadd.f32 %v1943, %v3227
      %v3484 = vadd.f32 %v1944, %v3228
      %v3485 = vadd.f32 %v1945, %v3229
      %v3486 = vadd.f32 %v1946, %v3230
      %v3487 = vadd.f32 %v1947, %v3231
      %v3488 = vadd.f32 %v1948, %v3232
      %v3489 = vadd.f32 %v1949, %v3233
      %v3490 = vadd.f32 %v1950, %v3234
      %v3491 = vadd.f32 %v1951, %v3235
      %v3492 = vadd.f32 %v1952, %v3236
      %v3493 = vadd.f32 %v1953, %v3237
      %v3494 = vadd.f32 %v1954, %v3238
      %v3495 = vadd.f32 %v1955, %v3239
      %v3496 = vadd.f32 %v1956, %v3240
      %v3497 = vadd.f32 %v1957, %v3241
      %v3498 = vadd.f32 %v1958, %v3242
      %v3499 = vadd.f32 %v1959, %v3243
      %v3500 = vadd.f32 %v1960, %v3244
      %v3501 = vadd.f32 %v1961, %v3245
      %v3502 = vadd.f32 %v1962, %v3246
      %v3503 = vadd.f32 %v1963, %v3247
      %v3504 = vadd.f32 %v1964, %v3248
      %v3505 = vadd.f32 %v1965, %v3249
      %v3506 = vadd.f32 %v1966, %v3250
      %v3507 = vadd.f32 %v1967, %v3251
      %v3508 = vadd.f32 %v1968, %v3252
      %v3509 = vadd.f32 %v1969, %v3253
      %v3510 = vadd.f32 %v1970, %v3254
      %3511 = vset.pattern.permute.xlu0 2
      %3512 = vperm.xlu0 %3511, %v174
      %v3513 = vpop.permute.xlu0 %3512
      %3515 = vset.pattern.permute.xlu0 2
      %3516 = vperm.xlu0 %3515, %v175
      %v3517 = vpop.permute.xlu0 %3516
      %3519 = vset.pattern.permute.xlu0 2
      %3520 = vperm.xlu0 %3519, %v176
      %v3521 = vpop.permute.xlu0 %3520
      %3523 = vset.pattern.permute.xlu0 2
      %3524 = vperm.xlu0 %3523, %v177
      %v3525 = vpop.permute.xlu0 %3524
      %3527 = vset.pattern.permute.xlu0 2
      %3528 = vperm.xlu0 %3527, %v178
      %v3529 = vpop.permute.xlu0 %3528
      %3531 = vset.pattern.permute.xlu0 2
      %3532 = vperm.xlu0 %3531, %v179
      %v3533 = vpop.permute.xlu0 %3532
      %3535 = vset.pattern.permute.xlu0 2
      %3536 = vperm.xlu0 %3535, %v180
      %v3537 = vpop.permute.xlu0 %3536
      %3539 = vset.pattern.permute.xlu0 2
      %3540 = vperm.xlu0 %3539, %v181
      %v3541 = vpop.permute.xlu0 %3540
      %3543 = vset.pattern.permute.xlu0 2
      %3544 = vperm.xlu0 %3543, %v182
      %v3545 = vpop.permute.xlu0 %3544
      %3547 = vset.pattern.permute.xlu0 2
      %3548 = vperm.xlu0 %3547, %v183
      %v3549 = vpop.permute.xlu0 %3548
      %3551 = vset.pattern.permute.xlu0 2
      %3552 = vperm.xlu0 %3551, %v184
      %v3553 = vpop.permute.xlu0 %3552
      %3555 = vset.pattern.permute.xlu0 2
      %3556 = vperm.xlu0 %3555, %v185
      %v3557 = vpop.permute.xlu0 %3556
      %3559 = vset.pattern.permute.xlu0 2
      %3560 = vperm.xlu0 %3559, %v186
      %v3561 = vpop.permute.xlu0 %3560
      %3563 = vset.pattern.permute.xlu0 2
      %3564 = vperm.xlu0 %3563, %v187
      %v3565 = vpop.permute.xlu0 %3564
      %3567 = vset.pattern.permute.xlu0 2
      %3568 = vperm.xlu0 %3567, %v188
      %v3569 = vpop.permute.xlu0 %3568
      %3571 = vset.pattern.permute.xlu0 2
      %3572 = vperm.xlu0 %3571, %v189
      %v3573 = vpop.permute.xlu0 %3572
      %3575 = vset.pattern.permute.xlu0 2
      %3576 = vperm.xlu0 %3575, %v190
      %v3577 = vpop.permute.xlu0 %3576
      %3579 = vset.pattern.permute.xlu0 2
      %3580 = vperm.xlu0 %3579, %v191
      %v3581 = vpop.permute.xlu0 %3580
      %3583 = vset.pattern.permute.xlu0 2
      %3584 = vperm.xlu0 %3583, %v192
      %v3585 = vpop.permute.xlu0 %3584
      %3587 = vset.pattern.permute.xlu0 2
      %3588 = vperm.xlu0 %3587, %v193
      %v3589 = vpop.permute.xlu0 %3588
      %3591 = vset.pattern.permute.xlu0 2
      %3592 = vperm.xlu0 %3591, %v194
      %v3593 = vpop.permute.xlu0 %3592
      %3595 = vset.pattern.permute.xlu0 2
      %3596 = vperm.xlu0 %3595, %v195
      %v3597 = vpop.permute.xlu0 %3596
      %3599 = vset.pattern.permute.xlu0 2
      %3600 = vperm.xlu0 %3599, %v196
      %v3601 = vpop.permute.xlu0 %3600
      %3603 = vset.pattern.permute.xlu0 2
      %3604 = vperm.xlu0 %3603, %v197
      %v3605 = vpop.permute.xlu0 %3604
      %3607 = vset.pattern.permute.xlu0 2
      %3608 = vperm.xlu0 %3607, %v198
      %v3609 = vpop.permute.xlu0 %3608
      %3611 = vset.pattern.permute.xlu0 2
      %3612 = vperm.xlu0 %3611, %v199
      %v3613 = vpop.permute.xlu0 %3612
      %3615 = vset.pattern.permute.xlu0 2
      %3616 = vperm.xlu0 %3615, %v200
      %v3617 = vpop.permute.xlu0 %3616
      %3619 = vset.pattern.permute.xlu0 2
      %3620 = vperm.xlu0 %3619, %v201
      %v3621 = vpop.permute.xlu0 %3620
      %3623 = vset.pattern.permute.xlu0 2
      %3624 = vperm.xlu0 %3623, %v202
      %v3625 = vpop.permute.xlu0 %3624
      %3627 = vset.pattern.permute.xlu0 2
      %3628 = vperm.xlu0 %3627, %v203
      %v3629 = vpop.permute.xlu0 %3628
      %3631 = vset.pattern.permute.xlu0 2
      %3632 = vperm.xlu0 %3631, %v204
      %v3633 = vpop.permute.xlu0 %3632
      %3635 = vset.pattern.permute.xlu0 2
      %3636 = vperm.xlu0 %3635, %v205
      %v3637 = vpop.permute.xlu0 %3636
      %3639 = vset.pattern.permute.xlu0 2
      %3640 = vperm.xlu0 %3639, %v206
      %v3641 = vpop.permute.xlu0 %3640
      %3643 = vset.pattern.permute.xlu0 2
      %3644 = vperm.xlu0 %3643, %v207
      %v3645 = vpop.permute.xlu0 %3644
      %3647 = vset.pattern.permute.xlu0 2
      %3648 = vperm.xlu0 %3647, %v208
      %v3649 = vpop.permute.xlu0 %3648
      %3651 = vset.pattern.permute.xlu0 2
      %3652 = vperm.xlu0 %3651, %v209
      %v3653 = vpop.permute.xlu0 %3652
      %3655 = vset.pattern.permute.xlu0 2
      %3656 = vperm.xlu0 %3655, %v210
      %v3657 = vpop.permute.xlu0 %3656
      %3659 = vset.pattern.permute.xlu0 2
      %3660 = vperm.xlu0 %3659, %v211
      %v3661 = vpop.permute.xlu0 %3660
      %3663 = vset.pattern.permute.xlu0 2
      %3664 = vperm.xlu0 %3663, %v212
      %v3665 = vpop.permute.xlu0 %3664
      %3667 = vset.pattern.permute.xlu0 2
      %3668 = vperm.xlu0 %3667, %v213
      %v3669 = vpop.permute.xlu0 %3668
      %3671 = vset.pattern.permute.xlu0 2
      %3672 = vperm.xlu0 %3671, %v214
      %v3673 = vpop.permute.xlu0 %3672
      %3675 = vset.pattern.permute.xlu0 2
      %3676 = vperm.xlu0 %3675, %v215
      %v3677 = vpop.permute.xlu0 %3676
      %3679 = vset.pattern.permute.xlu0 2
      %3680 = vperm.xlu0 %3679, %v216
      %v3681 = vpop.permute.xlu0 %3680
      %3683 = vset.pattern.permute.xlu0 2
      %3684 = vperm.xlu0 %3683, %v217
      %v3685 = vpop.permute.xlu0 %3684
      %3687 = vset.pattern.permute.xlu0 2
      %3688 = vperm.xlu0 %3687, %v218
      %v3689 = vpop.permute.xlu0 %3688
      %3691 = vset.pattern.permute.xlu0 2
      %3692 = vperm.xlu0 %3691, %v219
      %v3693 = vpop.permute.xlu0 %3692
      %3695 = vset.pattern.permute.xlu0 2
      %3696 = vperm.xlu0 %3695, %v220
      %v3697 = vpop.permute.xlu0 %3696
      %3699 = vset.pattern.permute.xlu0 2
      %3700 = vperm.xlu0 %3699, %v221
      %v3701 = vpop.permute.xlu0 %3700
      %3703 = vset.pattern.permute.xlu0 2
      %3704 = vperm.xlu0 %3703, %v222
      %v3705 = vpop.permute.xlu0 %3704
      %3707 = vset.pattern.permute.xlu0 2
      %3708 = vperm.xlu0 %3707, %v223
      %v3709 = vpop.permute.xlu0 %3708
      %3711 = vset.pattern.permute.xlu0 2
      %3712 = vperm.xlu0 %3711, %v224
      %v3713 = vpop.permute.xlu0 %3712
      %3715 = vset.pattern.permute.xlu0 2
      %3716 = vperm.xlu0 %3715, %v225
      %v3717 = vpop.permute.xlu0 %3716
      %3719 = vset.pattern.permute.xlu0 2
      %3720 = vperm.xlu0 %3719, %v226
      %v3721 = vpop.permute.xlu0 %3720
      %3723 = vset.pattern.permute.xlu0 2
      %3724 = vperm.xlu0 %3723, %v227
      %v3725 = vpop.permute.xlu0 %3724
      %3727 = vset.pattern.permute.xlu0 2
      %3728 = vperm.xlu0 %3727, %v228
      %v3729 = vpop.permute.xlu0 %3728
      %3731 = vset.pattern.permute.xlu0 2
      %3732 = vperm.xlu0 %3731, %v229
      %v3733 = vpop.permute.xlu0 %3732
      %3735 = vset.pattern.permute.xlu0 2
      %3736 = vperm.xlu0 %3735, %v230
      %v3737 = vpop.permute.xlu0 %3736
      %3739 = vset.pattern.permute.xlu0 2
      %3740 = vperm.xlu0 %3739, %v231
      %v3741 = vpop.permute.xlu0 %3740
      %3743 = vset.pattern.permute.xlu0 2
      %3744 = vperm.xlu0 %3743, %v232
      %v3745 = vpop.permute.xlu0 %3744
      %3747 = vset.pattern.permute.xlu0 2
      %3748 = vperm.xlu0 %3747, %v233
      %v3749 = vpop.permute.xlu0 %3748
      %3751 = vset.pattern.permute.xlu0 2
      %3752 = vperm.xlu0 %3751, %v234
      %v3753 = vpop.permute.xlu0 %3752
      %3755 = vset.pattern.permute.xlu0 2
      %3756 = vperm.xlu0 %3755, %v235
      %v3757 = vpop.permute.xlu0 %3756
      %3759 = vset.pattern.permute.xlu0 2
      %3760 = vperm.xlu0 %3759, %v236
      %v3761 = vpop.permute.xlu0 %3760
      %3763 = vset.pattern.permute.xlu0 2
      %3764 = vperm.xlu0 %3763, %v237
      %v3765 = vpop.permute.xlu0 %3764
      %3767 = vset.pattern.permute.xlu0 2
      %3768 = vperm.xlu0 %3767, %v238
      %v3769 = vpop.permute.xlu0 %3768
      %3771 = vset.pattern.permute.xlu0 2
      %3772 = vperm.xlu0 %3771, %v239
      %v3773 = vpop.permute.xlu0 %3772
      %3775 = vset.pattern.permute.xlu0 2
      %3776 = vperm.xlu0 %3775, %v240
      %v3777 = vpop.permute.xlu0 %3776
      %3779 = vset.pattern.permute.xlu0 2
      %3780 = vperm.xlu0 %3779, %v241
      %v3781 = vpop.permute.xlu0 %3780
      %3783 = vset.pattern.permute.xlu0 2
      %3784 = vperm.xlu0 %3783, %v242
      %v3785 = vpop.permute.xlu0 %3784
      %3787 = vset.pattern.permute.xlu0 2
      %3788 = vperm.xlu0 %3787, %v243
      %v3789 = vpop.permute.xlu0 %3788
      %3791 = vset.pattern.permute.xlu0 2
      %3792 = vperm.xlu0 %3791, %v244
      %v3793 = vpop.permute.xlu0 %3792
      %3795 = vset.pattern.permute.xlu0 2
      %3796 = vperm.xlu0 %3795, %v245
      %v3797 = vpop.permute.xlu0 %3796
      %3799 = vset.pattern.permute.xlu0 2
      %3800 = vperm.xlu0 %3799, %v246
      %v3801 = vpop.permute.xlu0 %3800
      %3803 = vset.pattern.permute.xlu0 2
      %3804 = vperm.xlu0 %3803, %v247
      %v3805 = vpop.permute.xlu0 %3804
      %3807 = vset.pattern.permute.xlu0 2
      %3808 = vperm.xlu0 %3807, %v248
      %v3809 = vpop.permute.xlu0 %3808
      %3811 = vset.pattern.permute.xlu0 2
      %3812 = vperm.xlu0 %3811, %v249
      %v3813 = vpop.permute.xlu0 %3812
      %3815 = vset.pattern.permute.xlu0 2
      %3816 = vperm.xlu0 %3815, %v250
      %v3817 = vpop.permute.xlu0 %3816
      %3819 = vset.pattern.permute.xlu0 2
      %3820 = vperm.xlu0 %3819, %v251
      %v3821 = vpop.permute.xlu0 %3820
      %3823 = vset.pattern.permute.xlu0 2
      %3824 = vperm.xlu0 %3823, %v252
      %v3825 = vpop.permute.xlu0 %3824
      %3827 = vset.pattern.permute.xlu0 2
      %3828 = vperm.xlu0 %3827, %v253
      %v3829 = vpop.permute.xlu0 %3828
      %3831 = vset.pattern.permute.xlu0 2
      %3832 = vperm.xlu0 %3831, %v254
      %v3833 = vpop.permute.xlu0 %3832
      %3835 = vset.pattern.permute.xlu0 2
      %3836 = vperm.xlu0 %3835, %v255
      %v3837 = vpop.permute.xlu0 %3836
      %3839 = vset.pattern.permute.xlu0 2
      %3840 = vperm.xlu0 %3839, %v256
      %v3841 = vpop.permute.xlu0 %3840
      %3843 = vset.pattern.permute.xlu0 2
      %3844 = vperm.xlu0 %3843, %v257
      %v3845 = vpop.permute.xlu0 %3844
      %3847 = vset.pattern.permute.xlu0 2
      %3848 = vperm.xlu0 %3847, %v258
      %v3849 = vpop.permute.xlu0 %3848
      %3851 = vset.pattern.permute.xlu0 2
      %3852 = vperm.xlu0 %3851, %v259
      %v3853 = vpop.permute.xlu0 %3852
      %3855 = vset.pattern.permute.xlu0 2
      %3856 = vperm.xlu0 %3855, %v260
      %v3857 = vpop.permute.xlu0 %3856
      %3859 = vset.pattern.permute.xlu0 2
      %3860 = vperm.xlu0 %3859, %v261
      %v3861 = vpop.permute.xlu0 %3860
      %3863 = vset.pattern.permute.xlu0 2
      %3864 = vperm.xlu0 %3863, %v262
      %v3865 = vpop.permute.xlu0 %3864
      %3867 = vset.pattern.permute.xlu0 2
      %3868 = vperm.xlu0 %3867, %v263
      %v3869 = vpop.permute.xlu0 %3868
      %3871 = vset.pattern.permute.xlu0 2
      %3872 = vperm.xlu0 %3871, %v264
      %v3873 = vpop.permute.xlu0 %3872
      %3875 = vset.pattern.permute.xlu0 2
      %3876 = vperm.xlu0 %3875, %v265
      %v3877 = vpop.permute.xlu0 %3876
      %3879 = vset.pattern.permute.xlu0 2
      %3880 = vperm.xlu0 %3879, %v266
      %v3881 = vpop.permute.xlu0 %3880
      %3883 = vset.pattern.permute.xlu0 2
      %3884 = vperm.xlu0 %3883, %v267
      %v3885 = vpop.permute.xlu0 %3884
      %3887 = vset.pattern.permute.xlu0 2
      %3888 = vperm.xlu0 %3887, %v268
      %v3889 = vpop.permute.xlu0 %3888
      %3891 = vset.pattern.permute.xlu0 2
      %3892 = vperm.xlu0 %3891, %v269
      %v3893 = vpop.permute.xlu0 %3892
      %3895 = vset.pattern.permute.xlu0 2
      %3896 = vperm.xlu0 %3895, %v270
      %v3897 = vpop.permute.xlu0 %3896
      %3899 = vset.pattern.permute.xlu0 2
      %3900 = vperm.xlu0 %3899, %v271
      %v3901 = vpop.permute.xlu0 %3900
      %3903 = vset.pattern.permute.xlu0 2
      %3904 = vperm.xlu0 %3903, %v272
      %v3905 = vpop.permute.xlu0 %3904
      %3907 = vset.pattern.permute.xlu0 2
      %3908 = vperm.xlu0 %3907, %v273
      %v3909 = vpop.permute.xlu0 %3908
      %3911 = vset.pattern.permute.xlu0 2
      %3912 = vperm.xlu0 %3911, %v274
      %v3913 = vpop.permute.xlu0 %3912
      %3915 = vset.pattern.permute.xlu0 2
      %3916 = vperm.xlu0 %3915, %v275
      %v3917 = vpop.permute.xlu0 %3916
      %3919 = vset.pattern.permute.xlu0 2
      %3920 = vperm.xlu0 %3919, %v276
      %v3921 = vpop.permute.xlu0 %3920
      %3923 = vset.pattern.permute.xlu0 2
      %3924 = vperm.xlu0 %3923, %v277
      %v3925 = vpop.permute.xlu0 %3924
      %3927 = vset.pattern.permute.xlu0 2
      %3928 = vperm.xlu0 %3927, %v278
      %v3929 = vpop.permute.xlu0 %3928
      %3931 = vset.pattern.permute.xlu0 2
      %3932 = vperm.xlu0 %3931, %v279
      %v3933 = vpop.permute.xlu0 %3932
      %3935 = vset.pattern.permute.xlu0 2
      %3936 = vperm.xlu0 %3935, %v280
      %v3937 = vpop.permute.xlu0 %3936
      %3939 = vset.pattern.permute.xlu0 2
      %3940 = vperm.xlu0 %3939, %v281
      %v3941 = vpop.permute.xlu0 %3940
      %3943 = vset.pattern.permute.xlu0 2
      %3944 = vperm.xlu0 %3943, %v282
      %v3945 = vpop.permute.xlu0 %3944
      %3947 = vset.pattern.permute.xlu0 2
      %3948 = vperm.xlu0 %3947, %v283
      %v3949 = vpop.permute.xlu0 %3948
      %3951 = vset.pattern.permute.xlu0 2
      %3952 = vperm.xlu0 %3951, %v284
      %v3953 = vpop.permute.xlu0 %3952
      %3955 = vset.pattern.permute.xlu0 2
      %3956 = vperm.xlu0 %3955, %v285
      %v3957 = vpop.permute.xlu0 %3956
      %3959 = vset.pattern.permute.xlu0 2
      %3960 = vperm.xlu0 %3959, %v286
      %v3961 = vpop.permute.xlu0 %3960
      %3963 = vset.pattern.permute.xlu0 2
      %3964 = vperm.xlu0 %3963, %v287
      %v3965 = vpop.permute.xlu0 %3964
      %3967 = vset.pattern.permute.xlu0 2
      %3968 = vperm.xlu0 %3967, %v288
      %v3969 = vpop.permute.xlu0 %3968
      %3971 = vset.pattern.permute.xlu0 2
      %3972 = vperm.xlu0 %3971, %v289
      %v3973 = vpop.permute.xlu0 %3972
      %3975 = vset.pattern.permute.xlu0 2
      %3976 = vperm.xlu0 %3975, %v290
      %v3977 = vpop.permute.xlu0 %3976
      %3979 = vset.pattern.permute.xlu0 2
      %3980 = vperm.xlu0 %3979, %v291
      %v3981 = vpop.permute.xlu0 %3980
      %3983 = vset.pattern.permute.xlu0 2
      %3984 = vperm.xlu0 %3983, %v292
      %v3985 = vpop.permute.xlu0 %3984
      %3987 = vset.pattern.permute.xlu0 2
      %3988 = vperm.xlu0 %3987, %v293
      %v3989 = vpop.permute.xlu0 %3988
      %3991 = vset.pattern.permute.xlu0 2
      %3992 = vperm.xlu0 %3991, %v294
      %v3993 = vpop.permute.xlu0 %3992
      %3995 = vset.pattern.permute.xlu0 2
      %3996 = vperm.xlu0 %3995, %v295
      %v3997 = vpop.permute.xlu0 %3996
      %3999 = vset.pattern.permute.xlu0 2
      %4000 = vperm.xlu0 %3999, %v296
      %v4001 = vpop.permute.xlu0 %4000
      %4003 = vset.pattern.permute.xlu0 2
      %4004 = vperm.xlu0 %4003, %v297
      %v4005 = vpop.permute.xlu0 %4004
      %4007 = vset.pattern.permute.xlu0 2
      %4008 = vperm.xlu0 %4007, %v298
      %v4009 = vpop.permute.xlu0 %4008
      %4011 = vset.pattern.permute.xlu0 2
      %4012 = vperm.xlu0 %4011, %v299
      %v4013 = vpop.permute.xlu0 %4012
      %4015 = vset.pattern.permute.xlu0 2
      %4016 = vperm.xlu0 %4015, %v300
      %v4017 = vpop.permute.xlu0 %4016
      %4019 = vset.pattern.permute.xlu0 2
      %4020 = vperm.xlu0 %4019, %v301
      %v4021 = vpop.permute.xlu0 %4020
      %4023 = vset.pattern.permute.xlu0 2
      %4024 = vperm.xlu0 %4023, %v302
      %v4025 = vpop.permute.xlu0 %4024
      %4027 = vset.pattern.permute.xlu0 2
      %4028 = vperm.xlu0 %4027, %v303
      %v4029 = vpop.permute.xlu0 %4028
      %4031 = vset.pattern.permute.xlu0 2
      %4032 = vperm.xlu0 %4031, %v304
      %v4033 = vpop.permute.xlu0 %4032
      %4035 = vset.pattern.permute.xlu0 2
      %4036 = vperm.xlu0 %4035, %v305
      %v4037 = vpop.permute.xlu0 %4036
      %4039 = vset.pattern.permute.xlu0 2
      %4040 = vperm.xlu0 %4039, %v306
      %v4041 = vpop.permute.xlu0 %4040
      %4043 = vset.pattern.permute.xlu0 2
      %4044 = vperm.xlu0 %4043, %v307
      %v4045 = vpop.permute.xlu0 %4044
      %4047 = vset.pattern.permute.xlu0 2
      %4048 = vperm.xlu0 %4047, %v308
      %v4049 = vpop.permute.xlu0 %4048
      %4051 = vset.pattern.permute.xlu0 2
      %4052 = vperm.xlu0 %4051, %v309
      %v4053 = vpop.permute.xlu0 %4052
      %4055 = vset.pattern.permute.xlu0 2
      %4056 = vperm.xlu0 %4055, %v310
      %v4057 = vpop.permute.xlu0 %4056
      %4059 = vset.pattern.permute.xlu0 2
      %4060 = vperm.xlu0 %4059, %v311
      %v4061 = vpop.permute.xlu0 %4060
      %4063 = vset.pattern.permute.xlu0 2
      %4064 = vperm.xlu0 %4063, %v312
      %v4065 = vpop.permute.xlu0 %4064
      %4067 = vset.pattern.permute.xlu0 2
      %4068 = vperm.xlu0 %4067, %v313
      %v4069 = vpop.permute.xlu0 %4068
      %4071 = vset.pattern.permute.xlu0 2
      %4072 = vperm.xlu0 %4071, %v314
      %v4073 = vpop.permute.xlu0 %4072
      %4075 = vset.pattern.permute.xlu0 2
      %4076 = vperm.xlu0 %4075, %v315
      %v4077 = vpop.permute.xlu0 %4076
      %4079 = vset.pattern.permute.xlu0 2
      %4080 = vperm.xlu0 %4079, %v316
      %v4081 = vpop.permute.xlu0 %4080
      %4083 = vset.pattern.permute.xlu0 2
      %4084 = vperm.xlu0 %4083, %v317
      %v4085 = vpop.permute.xlu0 %4084
      %4087 = vset.pattern.permute.xlu0 2
      %4088 = vperm.xlu0 %4087, %v318
      %v4089 = vpop.permute.xlu0 %4088
      %4091 = vset.pattern.permute.xlu0 2
      %4092 = vperm.xlu0 %4091, %v319
      %v4093 = vpop.permute.xlu0 %4092
      %4095 = vset.pattern.permute.xlu0 2
      %4096 = vperm.xlu0 %4095, %v320
      %v4097 = vpop.permute.xlu0 %4096
      %4099 = vset.pattern.permute.xlu0 2
      %4100 = vperm.xlu0 %4099, %v321
      %v4101 = vpop.permute.xlu0 %4100
      %4103 = vset.pattern.permute.xlu0 2
      %4104 = vperm.xlu0 %4103, %v322
      %v4105 = vpop.permute.xlu0 %4104
      %4107 = vset.pattern.permute.xlu0 2
      %4108 = vperm.xlu0 %4107, %v323
      %v4109 = vpop.permute.xlu0 %4108
      %4111 = vset.pattern.permute.xlu0 2
      %4112 = vperm.xlu0 %4111, %v324
      %v4113 = vpop.permute.xlu0 %4112
      %4115 = vset.pattern.permute.xlu0 2
      %4116 = vperm.xlu0 %4115, %v325
      %v4117 = vpop.permute.xlu0 %4116
      %4119 = vset.pattern.permute.xlu0 2
      %4120 = vperm.xlu0 %4119, %v326
      %v4121 = vpop.permute.xlu0 %4120
      %4123 = vset.pattern.permute.xlu0 2
      %4124 = vperm.xlu0 %4123, %v327
      %v4125 = vpop.permute.xlu0 %4124
      %4127 = vset.pattern.permute.xlu0 2
      %4128 = vperm.xlu0 %4127, %v328
      %v4129 = vpop.permute.xlu0 %4128
      %4131 = vset.pattern.permute.xlu0 2
      %4132 = vperm.xlu0 %4131, %v329
      %v4133 = vpop.permute.xlu0 %4132
      %4135 = vset.pattern.permute.xlu0 2
      %4136 = vperm.xlu0 %4135, %v330
      %v4137 = vpop.permute.xlu0 %4136
      %4139 = vset.pattern.permute.xlu0 2
      %4140 = vperm.xlu0 %4139, %v331
      %v4141 = vpop.permute.xlu0 %4140
      %4143 = vset.pattern.permute.xlu0 2
      %4144 = vperm.xlu0 %4143, %v332
      %v4145 = vpop.permute.xlu0 %4144
      %4147 = vset.pattern.permute.xlu0 2
      %4148 = vperm.xlu0 %4147, %v333
      %v4149 = vpop.permute.xlu0 %4148
      %4151 = vset.pattern.permute.xlu0 2
      %4152 = vperm.xlu0 %4151, %v334
      %v4153 = vpop.permute.xlu0 %4152
      %4155 = vset.pattern.permute.xlu0 2
      %4156 = vperm.xlu0 %4155, %v335
      %v4157 = vpop.permute.xlu0 %4156
      %4159 = vset.pattern.permute.xlu0 2
      %4160 = vperm.xlu0 %4159, %v336
      %v4161 = vpop.permute.xlu0 %4160
      %4163 = vset.pattern.permute.xlu0 2
      %4164 = vperm.xlu0 %4163, %v337
      %v4165 = vpop.permute.xlu0 %4164
      %4167 = vset.pattern.permute.xlu0 2
      %4168 = vperm.xlu0 %4167, %v338
      %v4169 = vpop.permute.xlu0 %4168
      %4171 = vset.pattern.permute.xlu0 2
      %4172 = vperm.xlu0 %4171, %v339
      %v4173 = vpop.permute.xlu0 %4172
      %4175 = vset.pattern.permute.xlu0 2
      %4176 = vperm.xlu0 %4175, %v340
      %v4177 = vpop.permute.xlu0 %4176
      %4179 = vset.pattern.permute.xlu0 2
      %4180 = vperm.xlu0 %4179, %v341
      %v4181 = vpop.permute.xlu0 %4180
      %4183 = vset.pattern.permute.xlu0 2
      %4184 = vperm.xlu0 %4183, %v342
      %v4185 = vpop.permute.xlu0 %4184
      %4187 = vset.pattern.permute.xlu0 2
      %4188 = vperm.xlu0 %4187, %v343
      %v4189 = vpop.permute.xlu0 %4188
      %4191 = vset.pattern.permute.xlu0 2
      %4192 = vperm.xlu0 %4191, %v344
      %v4193 = vpop.permute.xlu0 %4192
      %4195 = vset.pattern.permute.xlu0 2
      %4196 = vperm.xlu0 %4195, %v345
      %v4197 = vpop.permute.xlu0 %4196
      %4199 = vset.pattern.permute.xlu0 2
      %4200 = vperm.xlu0 %4199, %v346
      %v4201 = vpop.permute.xlu0 %4200
      %4203 = vset.pattern.permute.xlu0 2
      %4204 = vperm.xlu0 %4203, %v347
      %v4205 = vpop.permute.xlu0 %4204
      %4207 = vset.pattern.permute.xlu0 2
      %4208 = vperm.xlu0 %4207, %v348
      %v4209 = vpop.permute.xlu0 %4208
      %4211 = vset.pattern.permute.xlu0 2
      %4212 = vperm.xlu0 %4211, %v349
      %v4213 = vpop.permute.xlu0 %4212
      %4215 = vset.pattern.permute.xlu0 2
      %4216 = vperm.xlu0 %4215, %v350
      %v4217 = vpop.permute.xlu0 %4216
      %4219 = vset.pattern.permute.xlu0 2
      %4220 = vperm.xlu0 %4219, %v351
      %v4221 = vpop.permute.xlu0 %4220
      %4223 = vset.pattern.permute.xlu0 2
      %4224 = vperm.xlu0 %4223, %v352
      %v4225 = vpop.permute.xlu0 %4224
      %4227 = vset.pattern.permute.xlu0 2
      %4228 = vperm.xlu0 %4227, %v353
      %v4229 = vpop.permute.xlu0 %4228
      %4231 = vset.pattern.permute.xlu0 2
      %4232 = vperm.xlu0 %4231, %v354
      %v4233 = vpop.permute.xlu0 %4232
      %4235 = vset.pattern.permute.xlu0 2
      %4236 = vperm.xlu0 %4235, %v355
      %v4237 = vpop.permute.xlu0 %4236
      %4239 = vset.pattern.permute.xlu0 2
      %4240 = vperm.xlu0 %4239, %v356
      %v4241 = vpop.permute.xlu0 %4240
      %4243 = vset.pattern.permute.xlu0 2
      %4244 = vperm.xlu0 %4243, %v357
      %v4245 = vpop.permute.xlu0 %4244
      %4247 = vset.pattern.permute.xlu0 2
      %4248 = vperm.xlu0 %4247, %v358
      %v4249 = vpop.permute.xlu0 %4248
      %4251 = vset.pattern.permute.xlu0 2
      %4252 = vperm.xlu0 %4251, %v359
      %v4253 = vpop.permute.xlu0 %4252
      %4255 = vset.pattern.permute.xlu0 2
      %4256 = vperm.xlu0 %4255, %v360
      %v4257 = vpop.permute.xlu0 %4256
      %4259 = vset.pattern.permute.xlu0 2
      %4260 = vperm.xlu0 %4259, %v361
      %v4261 = vpop.permute.xlu0 %4260
      %4263 = vset.pattern.permute.xlu0 2
      %4264 = vperm.xlu0 %4263, %v362
      %v4265 = vpop.permute.xlu0 %4264
      %4267 = vset.pattern.permute.xlu0 2
      %4268 = vperm.xlu0 %4267, %v363
      %v4269 = vpop.permute.xlu0 %4268
      %4271 = vset.pattern.permute.xlu0 2
      %4272 = vperm.xlu0 %4271, %v364
      %v4273 = vpop.permute.xlu0 %4272
      %4275 = vset.pattern.permute.xlu0 2
      %4276 = vperm.xlu0 %4275, %v365
      %v4277 = vpop.permute.xlu0 %4276
      %4279 = vset.pattern.permute.xlu0 2
      %4280 = vperm.xlu0 %4279, %v366
      %v4281 = vpop.permute.xlu0 %4280
      %4283 = vset.pattern.permute.xlu0 2
      %4284 = vperm.xlu0 %4283, %v367
      %v4285 = vpop.permute.xlu0 %4284
      %4287 = vset.pattern.permute.xlu0 2
      %4288 = vperm.xlu0 %4287, %v368
      %v4289 = vpop.permute.xlu0 %4288
      %4291 = vset.pattern.permute.xlu0 2
      %4292 = vperm.xlu0 %4291, %v369
      %v4293 = vpop.permute.xlu0 %4292
      %4295 = vset.pattern.permute.xlu0 2
      %4296 = vperm.xlu0 %4295, %v370
      %v4297 = vpop.permute.xlu0 %4296
      %4299 = vset.pattern.permute.xlu0 2
      %4300 = vperm.xlu0 %4299, %v371
      %v4301 = vpop.permute.xlu0 %4300
      %4303 = vset.pattern.permute.xlu0 2
      %4304 = vperm.xlu0 %4303, %v372
      %v4305 = vpop.permute.xlu0 %4304
      %4307 = vset.pattern.permute.xlu0 2
      %4308 = vperm.xlu0 %4307, %v373
      %v4309 = vpop.permute.xlu0 %4308
      %4311 = vset.pattern.permute.xlu0 2
      %4312 = vperm.xlu0 %4311, %v374
      %v4313 = vpop.permute.xlu0 %4312
      %4315 = vset.pattern.permute.xlu0 2
      %4316 = vperm.xlu0 %4315, %v375
      %v4317 = vpop.permute.xlu0 %4316
      %4319 = vset.pattern.permute.xlu0 2
      %4320 = vperm.xlu0 %4319, %v376
      %v4321 = vpop.permute.xlu0 %4320
      %4323 = vset.pattern.permute.xlu0 2
      %4324 = vperm.xlu0 %4323, %v377
      %v4325 = vpop.permute.xlu0 %4324
      %4327 = vset.pattern.permute.xlu0 2
      %4328 = vperm.xlu0 %4327, %v378
      %v4329 = vpop.permute.xlu0 %4328
      %4331 = vset.pattern.permute.xlu0 2
      %4332 = vperm.xlu0 %4331, %v379
      %v4333 = vpop.permute.xlu0 %4332
      %4335 = vset.pattern.permute.xlu0 2
      %4336 = vperm.xlu0 %4335, %v380
      %v4337 = vpop.permute.xlu0 %4336
      %4339 = vset.pattern.permute.xlu0 2
      %4340 = vperm.xlu0 %4339, %v381
      %v4341 = vpop.permute.xlu0 %4340
      %4343 = vset.pattern.permute.xlu0 2
      %4344 = vperm.xlu0 %4343, %v382
      %v4345 = vpop.permute.xlu0 %4344
      %4347 = vset.pattern.permute.xlu0 2
      %4348 = vperm.xlu0 %4347, %v383
      %v4349 = vpop.permute.xlu0 %4348
      %4351 = vset.pattern.permute.xlu0 2
      %4352 = vperm.xlu0 %4351, %v384
      %v4353 = vpop.permute.xlu0 %4352
      %4355 = vset.pattern.permute.xlu0 2
      %4356 = vperm.xlu0 %4355, %v385
      %v4357 = vpop.permute.xlu0 %4356
      %4359 = vset.pattern.permute.xlu0 2
      %4360 = vperm.xlu0 %4359, %v386
      %v4361 = vpop.permute.xlu0 %4360
      %4363 = vset.pattern.permute.xlu0 2
      %4364 = vperm.xlu0 %4363, %v387
      %v4365 = vpop.permute.xlu0 %4364
      %4367 = vset.pattern.permute.xlu0 2
      %4368 = vperm.xlu0 %4367, %v388
      %v4369 = vpop.permute.xlu0 %4368
      %4371 = vset.pattern.permute.xlu0 2
      %4372 = vperm.xlu0 %4371, %v389
      %v4373 = vpop.permute.xlu0 %4372
      %4375 = vset.pattern.permute.xlu0 2
      %4376 = vperm.xlu0 %4375, %v390
      %v4377 = vpop.permute.xlu0 %4376
      %4379 = vset.pattern.permute.xlu0 2
      %4380 = vperm.xlu0 %4379, %v391
      %v4381 = vpop.permute.xlu0 %4380
      %4383 = vset.pattern.permute.xlu0 2
      %4384 = vperm.xlu0 %4383, %v392
      %v4385 = vpop.permute.xlu0 %4384
      %4387 = vset.pattern.permute.xlu0 2
      %4388 = vperm.xlu0 %4387, %v393
      %v4389 = vpop.permute.xlu0 %4388
      %4391 = vset.pattern.permute.xlu0 2
      %4392 = vperm.xlu0 %4391, %v394
      %v4393 = vpop.permute.xlu0 %4392
      %4395 = vset.pattern.permute.xlu0 2
      %4396 = vperm.xlu0 %4395, %v395
      %v4397 = vpop.permute.xlu0 %4396
      %4399 = vset.pattern.permute.xlu0 2
      %4400 = vperm.xlu0 %4399, %v396
      %v4401 = vpop.permute.xlu0 %4400
      %4403 = vset.pattern.permute.xlu0 2
      %4404 = vperm.xlu0 %4403, %v397
      %v4405 = vpop.permute.xlu0 %4404
      %4407 = vset.pattern.permute.xlu0 2
      %4408 = vperm.xlu0 %4407, %v398
      %v4409 = vpop.permute.xlu0 %4408
      %4411 = vset.pattern.permute.xlu0 2
      %4412 = vperm.xlu0 %4411, %v399
      %v4413 = vpop.permute.xlu0 %4412
      %4415 = vset.pattern.permute.xlu0 2
      %4416 = vperm.xlu0 %4415, %v400
      %v4417 = vpop.permute.xlu0 %4416
      %4419 = vset.pattern.permute.xlu0 2
      %4420 = vperm.xlu0 %4419, %v401
      %v4421 = vpop.permute.xlu0 %4420
      %4423 = vset.pattern.permute.xlu0 2
      %4424 = vperm.xlu0 %4423, %v402
      %v4425 = vpop.permute.xlu0 %4424
      %4427 = vset.pattern.permute.xlu0 2
      %4428 = vperm.xlu0 %4427, %v403
      %v4429 = vpop.permute.xlu0 %4428
      %4431 = vset.pattern.permute.xlu0 2
      %4432 = vperm.xlu0 %4431, %v404
      %v4433 = vpop.permute.xlu0 %4432
      %4435 = vset.pattern.permute.xlu0 2
      %4436 = vperm.xlu0 %4435, %v405
      %v4437 = vpop.permute.xlu0 %4436
      %4439 = vset.pattern.permute.xlu0 2
      %4440 = vperm.xlu0 %4439, %v406
      %v4441 = vpop.permute.xlu0 %4440
      %4443 = vset.pattern.permute.xlu0 2
      %4444 = vperm.xlu0 %4443, %v407
      %v4445 = vpop.permute.xlu0 %4444
      %4447 = vset.pattern.permute.xlu0 2
      %4448 = vperm.xlu0 %4447, %v408
      %v4449 = vpop.permute.xlu0 %4448
      %4451 = vset.pattern.permute.xlu0 2
      %4452 = vperm.xlu0 %4451, %v409
      %v4453 = vpop.permute.xlu0 %4452
      %4455 = vset.pattern.permute.xlu0 2
      %4456 = vperm.xlu0 %4455, %v410
      %v4457 = vpop.permute.xlu0 %4456
      %4459 = vset.pattern.permute.xlu0 2
      %4460 = vperm.xlu0 %4459, %v411
      %v4461 = vpop.permute.xlu0 %4460
      %4463 = vset.pattern.permute.xlu0 2
      %4464 = vperm.xlu0 %4463, %v412
      %v4465 = vpop.permute.xlu0 %4464
      %4467 = vset.pattern.permute.xlu0 2
      %4468 = vperm.xlu0 %4467, %v413
      %v4469 = vpop.permute.xlu0 %4468
      %4471 = vset.pattern.permute.xlu0 2
      %4472 = vperm.xlu0 %4471, %v414
      %v4473 = vpop.permute.xlu0 %4472
      %4475 = vset.pattern.permute.xlu0 2
      %4476 = vperm.xlu0 %4475, %v415
      %v4477 = vpop.permute.xlu0 %4476
      %4479 = vset.pattern.permute.xlu0 2
      %4480 = vperm.xlu0 %4479, %v416
      %v4481 = vpop.permute.xlu0 %4480
      %4483 = vset.pattern.permute.xlu0 2
      %4484 = vperm.xlu0 %4483, %v417
      %v4485 = vpop.permute.xlu0 %4484
      %4487 = vset.pattern.permute.xlu0 2
      %4488 = vperm.xlu0 %4487, %v418
      %v4489 = vpop.permute.xlu0 %4488
      %4491 = vset.pattern.permute.xlu0 2
      %4492 = vperm.xlu0 %4491, %v419
      %v4493 = vpop.permute.xlu0 %4492
      %4495 = vset.pattern.permute.xlu0 2
      %4496 = vperm.xlu0 %4495, %v420
      %v4497 = vpop.permute.xlu0 %4496
      %4499 = vset.pattern.permute.xlu0 2
      %4500 = vperm.xlu0 %4499, %v421
      %v4501 = vpop.permute.xlu0 %4500
      %4503 = vset.pattern.permute.xlu0 2
      %4504 = vperm.xlu0 %4503, %v422
      %v4505 = vpop.permute.xlu0 %4504
      %4507 = vset.pattern.permute.xlu0 2
      %4508 = vperm.xlu0 %4507, %v423
      %v4509 = vpop.permute.xlu0 %4508
      %4511 = vset.pattern.permute.xlu0 2
      %4512 = vperm.xlu0 %4511, %v424
      %v4513 = vpop.permute.xlu0 %4512
      %4515 = vset.pattern.permute.xlu0 2
      %4516 = vperm.xlu0 %4515, %v425
      %v4517 = vpop.permute.xlu0 %4516
      %4519 = vset.pattern.permute.xlu0 2
      %4520 = vperm.xlu0 %4519, %v426
      %v4521 = vpop.permute.xlu0 %4520
      %4523 = vset.pattern.permute.xlu0 2
      %4524 = vperm.xlu0 %4523, %v427
      %v4525 = vpop.permute.xlu0 %4524
      %4527 = vset.pattern.permute.xlu0 2
      %4528 = vperm.xlu0 %4527, %v428
      %v4529 = vpop.permute.xlu0 %4528
      %4531 = vset.pattern.permute.xlu0 2
      %4532 = vperm.xlu0 %4531, %v429
      %v4533 = vpop.permute.xlu0 %4532
      %v4535 = vlaneseq
      %v4536 = vshrl.u32 %v4535, 7
      %v4537 = vsub.s32 2, %v4536
      %v4538 = vrot.slane %v430, %v4537
      %v4539 = vmul.f32 %v3513, %v4538
      %v4540 = vmul.f32 %v3517, %v4538
      %v4541 = vmul.f32 %v3521, %v4538
      %v4542 = vmul.f32 %v3525, %v4538
      %v4543 = vmul.f32 %v3529, %v4538
      %v4544 = vmul.f32 %v3533, %v4538
      %v4545 = vmul.f32 %v3537, %v4538
      %v4546 = vmul.f32 %v3541, %v4538
      %v4547 = vmul.f32 %v3545, %v4538
      %v4548 = vmul.f32 %v3549, %v4538
      %v4549 = vmul.f32 %v3553, %v4538
      %v4550 = vmul.f32 %v3557, %v4538
      %v4551 = vmul.f32 %v3561, %v4538
      %v4552 = vmul.f32 %v3565, %v4538
      %v4553 = vmul.f32 %v3569, %v4538
      %v4554 = vmul.f32 %v3573, %v4538
      %v4555 = vmul.f32 %v3577, %v4538
      %v4556 = vmul.f32 %v3581, %v4538
      %v4557 = vmul.f32 %v3585, %v4538
      %v4558 = vmul.f32 %v3589, %v4538
      %v4559 = vmul.f32 %v3593, %v4538
      %v4560 = vmul.f32 %v3597, %v4538
      %v4561 = vmul.f32 %v3601, %v4538
      %v4562 = vmul.f32 %v3605, %v4538
      %v4563 = vmul.f32 %v3609, %v4538
      %v4564 = vmul.f32 %v3613, %v4538
      %v4565 = vmul.f32 %v3617, %v4538
      %v4566 = vmul.f32 %v3621, %v4538
      %v4567 = vmul.f32 %v3625, %v4538
      %v4568 = vmul.f32 %v3629, %v4538
      %v4569 = vmul.f32 %v3633, %v4538
      %v4570 = vmul.f32 %v3637, %v4538
      %v4571 = vmul.f32 %v3641, %v4538
      %v4572 = vmul.f32 %v3645, %v4538
      %v4573 = vmul.f32 %v3649, %v4538
      %v4574 = vmul.f32 %v3653, %v4538
      %v4575 = vmul.f32 %v3657, %v4538
      %v4576 = vmul.f32 %v3661, %v4538
      %v4577 = vmul.f32 %v3665, %v4538
      %v4578 = vmul.f32 %v3669, %v4538
      %v4579 = vmul.f32 %v3673, %v4538
      %v4580 = vmul.f32 %v3677, %v4538
      %v4581 = vmul.f32 %v3681, %v4538
      %v4582 = vmul.f32 %v3685, %v4538
      %v4583 = vmul.f32 %v3689, %v4538
      %v4584 = vmul.f32 %v3693, %v4538
      %v4585 = vmul.f32 %v3697, %v4538
      %v4586 = vmul.f32 %v3701, %v4538
      %v4587 = vmul.f32 %v3705, %v4538
      %v4588 = vmul.f32 %v3709, %v4538
      %v4589 = vmul.f32 %v3713, %v4538
      %v4590 = vmul.f32 %v3717, %v4538
      %v4591 = vmul.f32 %v3721, %v4538
      %v4592 = vmul.f32 %v3725, %v4538
      %v4593 = vmul.f32 %v3729, %v4538
      %v4594 = vmul.f32 %v3733, %v4538
      %v4595 = vmul.f32 %v3737, %v4538
      %v4596 = vmul.f32 %v3741, %v4538
      %v4597 = vmul.f32 %v3745, %v4538
      %v4598 = vmul.f32 %v3749, %v4538
      %v4599 = vmul.f32 %v3753, %v4538
      %v4600 = vmul.f32 %v3757, %v4538
      %v4601 = vmul.f32 %v3761, %v4538
      %v4602 = vmul.f32 %v3765, %v4538
      %v4603 = vmul.f32 %v3769, %v4538
      %v4604 = vmul.f32 %v3773, %v4538
      %v4605 = vmul.f32 %v3777, %v4538
      %v4606 = vmul.f32 %v3781, %v4538
      %v4607 = vmul.f32 %v3785, %v4538
      %v4608 = vmul.f32 %v3789, %v4538
      %v4609 = vmul.f32 %v3793, %v4538
      %v4610 = vmul.f32 %v3797, %v4538
      %v4611 = vmul.f32 %v3801, %v4538
      %v4612 = vmul.f32 %v3805, %v4538
      %v4613 = vmul.f32 %v3809, %v4538
      %v4614 = vmul.f32 %v3813, %v4538
      %v4615 = vmul.f32 %v3817, %v4538
      %v4616 = vmul.f32 %v3821, %v4538
      %v4617 = vmul.f32 %v3825, %v4538
      %v4618 = vmul.f32 %v3829, %v4538
      %v4619 = vmul.f32 %v3833, %v4538
      %v4620 = vmul.f32 %v3837, %v4538
      %v4621 = vmul.f32 %v3841, %v4538
      %v4622 = vmul.f32 %v3845, %v4538
      %v4623 = vmul.f32 %v3849, %v4538
      %v4624 = vmul.f32 %v3853, %v4538
      %v4625 = vmul.f32 %v3857, %v4538
      %v4626 = vmul.f32 %v3861, %v4538
      %v4627 = vmul.f32 %v3865, %v4538
      %v4628 = vmul.f32 %v3869, %v4538
      %v4629 = vmul.f32 %v3873, %v4538
      %v4630 = vmul.f32 %v3877, %v4538
      %v4631 = vmul.f32 %v3881, %v4538
      %v4632 = vmul.f32 %v3885, %v4538
      %v4633 = vmul.f32 %v3889, %v4538
      %v4634 = vmul.f32 %v3893, %v4538
      %v4635 = vmul.f32 %v3897, %v4538
      %v4636 = vmul.f32 %v3901, %v4538
      %v4637 = vmul.f32 %v3905, %v4538
      %v4638 = vmul.f32 %v3909, %v4538
      %v4639 = vmul.f32 %v3913, %v4538
      %v4640 = vmul.f32 %v3917, %v4538
      %v4641 = vmul.f32 %v3921, %v4538
      %v4642 = vmul.f32 %v3925, %v4538
      %v4643 = vmul.f32 %v3929, %v4538
      %v4644 = vmul.f32 %v3933, %v4538
      %v4645 = vmul.f32 %v3937, %v4538
      %v4646 = vmul.f32 %v3941, %v4538
      %v4647 = vmul.f32 %v3945, %v4538
      %v4648 = vmul.f32 %v3949, %v4538
      %v4649 = vmul.f32 %v3953, %v4538
      %v4650 = vmul.f32 %v3957, %v4538
      %v4651 = vmul.f32 %v3961, %v4538
      %v4652 = vmul.f32 %v3965, %v4538
      %v4653 = vmul.f32 %v3969, %v4538
      %v4654 = vmul.f32 %v3973, %v4538
      %v4655 = vmul.f32 %v3977, %v4538
      %v4656 = vmul.f32 %v3981, %v4538
      %v4657 = vmul.f32 %v3985, %v4538
      %v4658 = vmul.f32 %v3989, %v4538
      %v4659 = vmul.f32 %v3993, %v4538
      %v4660 = vmul.f32 %v3997, %v4538
      %v4661 = vmul.f32 %v4001, %v4538
      %v4662 = vmul.f32 %v4005, %v4538
      %v4663 = vmul.f32 %v4009, %v4538
      %v4664 = vmul.f32 %v4013, %v4538
      %v4665 = vmul.f32 %v4017, %v4538
      %v4666 = vmul.f32 %v4021, %v4538
      %v4667 = vmul.f32 %v4025, %v4538
      %v4668 = vmul.f32 %v4029, %v4538
      %v4669 = vmul.f32 %v4033, %v4538
      %v4670 = vmul.f32 %v4037, %v4538
      %v4671 = vmul.f32 %v4041, %v4538
      %v4672 = vmul.f32 %v4045, %v4538
      %v4673 = vmul.f32 %v4049, %v4538
      %v4674 = vmul.f32 %v4053, %v4538
      %v4675 = vmul.f32 %v4057, %v4538
      %v4676 = vmul.f32 %v4061, %v4538
      %v4677 = vmul.f32 %v4065, %v4538
      %v4678 = vmul.f32 %v4069, %v4538
      %v4679 = vmul.f32 %v4073, %v4538
      %v4680 = vmul.f32 %v4077, %v4538
      %v4681 = vmul.f32 %v4081, %v4538
      %v4682 = vmul.f32 %v4085, %v4538
      %v4683 = vmul.f32 %v4089, %v4538
      %v4684 = vmul.f32 %v4093, %v4538
      %v4685 = vmul.f32 %v4097, %v4538
      %v4686 = vmul.f32 %v4101, %v4538
      %v4687 = vmul.f32 %v4105, %v4538
      %v4688 = vmul.f32 %v4109, %v4538
      %v4689 = vmul.f32 %v4113, %v4538
      %v4690 = vmul.f32 %v4117, %v4538
      %v4691 = vmul.f32 %v4121, %v4538
      %v4692 = vmul.f32 %v4125, %v4538
      %v4693 = vmul.f32 %v4129, %v4538
      %v4694 = vmul.f32 %v4133, %v4538
      %v4695 = vmul.f32 %v4137, %v4538
      %v4696 = vmul.f32 %v4141, %v4538
      %v4697 = vmul.f32 %v4145, %v4538
      %v4698 = vmul.f32 %v4149, %v4538
      %v4699 = vmul.f32 %v4153, %v4538
      %v4700 = vmul.f32 %v4157, %v4538
      %v4701 = vmul.f32 %v4161, %v4538
      %v4702 = vmul.f32 %v4165, %v4538
      %v4703 = vmul.f32 %v4169, %v4538
      %v4704 = vmul.f32 %v4173, %v4538
      %v4705 = vmul.f32 %v4177, %v4538
      %v4706 = vmul.f32 %v4181, %v4538
      %v4707 = vmul.f32 %v4185, %v4538
      %v4708 = vmul.f32 %v4189, %v4538
      %v4709 = vmul.f32 %v4193, %v4538
      %v4710 = vmul.f32 %v4197, %v4538
      %v4711 = vmul.f32 %v4201, %v4538
      %v4712 = vmul.f32 %v4205, %v4538
      %v4713 = vmul.f32 %v4209, %v4538
      %v4714 = vmul.f32 %v4213, %v4538
      %v4715 = vmul.f32 %v4217, %v4538
      %v4716 = vmul.f32 %v4221, %v4538
      %v4717 = vmul.f32 %v4225, %v4538
      %v4718 = vmul.f32 %v4229, %v4538
      %v4719 = vmul.f32 %v4233, %v4538
      %v4720 = vmul.f32 %v4237, %v4538
      %v4721 = vmul.f32 %v4241, %v4538
      %v4722 = vmul.f32 %v4245, %v4538
      %v4723 = vmul.f32 %v4249, %v4538
      %v4724 = vmul.f32 %v4253, %v4538
      %v4725 = vmul.f32 %v4257, %v4538
      %v4726 = vmul.f32 %v4261, %v4538
      %v4727 = vmul.f32 %v4265, %v4538
      %v4728 = vmul.f32 %v4269, %v4538
      %v4729 = vmul.f32 %v4273, %v4538
      %v4730 = vmul.f32 %v4277, %v4538
      %v4731 = vmul.f32 %v4281, %v4538
      %v4732 = vmul.f32 %v4285, %v4538
      %v4733 = vmul.f32 %v4289, %v4538
      %v4734 = vmul.f32 %v4293, %v4538
      %v4735 = vmul.f32 %v4297, %v4538
      %v4736 = vmul.f32 %v4301, %v4538
      %v4737 = vmul.f32 %v4305, %v4538
      %v4738 = vmul.f32 %v4309, %v4538
      %v4739 = vmul.f32 %v4313, %v4538
      %v4740 = vmul.f32 %v4317, %v4538
      %v4741 = vmul.f32 %v4321, %v4538
      %v4742 = vmul.f32 %v4325, %v4538
      %v4743 = vmul.f32 %v4329, %v4538
      %v4744 = vmul.f32 %v4333, %v4538
      %v4745 = vmul.f32 %v4337, %v4538
      %v4746 = vmul.f32 %v4341, %v4538
      %v4747 = vmul.f32 %v4345, %v4538
      %v4748 = vmul.f32 %v4349, %v4538
      %v4749 = vmul.f32 %v4353, %v4538
      %v4750 = vmul.f32 %v4357, %v4538
      %v4751 = vmul.f32 %v4361, %v4538
      %v4752 = vmul.f32 %v4365, %v4538
      %v4753 = vmul.f32 %v4369, %v4538
      %v4754 = vmul.f32 %v4373, %v4538
      %v4755 = vmul.f32 %v4377, %v4538
      %v4756 = vmul.f32 %v4381, %v4538
      %v4757 = vmul.f32 %v4385, %v4538
      %v4758 = vmul.f32 %v4389, %v4538
      %v4759 = vmul.f32 %v4393, %v4538
      %v4760 = vmul.f32 %v4397, %v4538
      %v4761 = vmul.f32 %v4401, %v4538
      %v4762 = vmul.f32 %v4405, %v4538
      %v4763 = vmul.f32 %v4409, %v4538
      %v4764 = vmul.f32 %v4413, %v4538
      %v4765 = vmul.f32 %v4417, %v4538
      %v4766 = vmul.f32 %v4421, %v4538
      %v4767 = vmul.f32 %v4425, %v4538
      %v4768 = vmul.f32 %v4429, %v4538
      %v4769 = vmul.f32 %v4433, %v4538
      %v4770 = vmul.f32 %v4437, %v4538
      %v4771 = vmul.f32 %v4441, %v4538
      %v4772 = vmul.f32 %v4445, %v4538
      %v4773 = vmul.f32 %v4449, %v4538
      %v4774 = vmul.f32 %v4453, %v4538
      %v4775 = vmul.f32 %v4457, %v4538
      %v4776 = vmul.f32 %v4461, %v4538
      %v4777 = vmul.f32 %v4465, %v4538
      %v4778 = vmul.f32 %v4469, %v4538
      %v4779 = vmul.f32 %v4473, %v4538
      %v4780 = vmul.f32 %v4477, %v4538
      %v4781 = vmul.f32 %v4481, %v4538
      %v4782 = vmul.f32 %v4485, %v4538
      %v4783 = vmul.f32 %v4489, %v4538
      %v4784 = vmul.f32 %v4493, %v4538
      %v4785 = vmul.f32 %v4497, %v4538
      %v4786 = vmul.f32 %v4501, %v4538
      %v4787 = vmul.f32 %v4505, %v4538
      %v4788 = vmul.f32 %v4509, %v4538
      %v4789 = vmul.f32 %v4513, %v4538
      %v4790 = vmul.f32 %v4517, %v4538
      %v4791 = vmul.f32 %v4521, %v4538
      %v4792 = vmul.f32 %v4525, %v4538
      %v4793 = vmul.f32 %v4529, %v4538
      %v4794 = vmul.f32 %v4533, %v4538
      %v4795 = vadd.f32 %v3255, %v4539
      %v4796 = vadd.f32 %v3256, %v4540
      %v4797 = vadd.f32 %v3257, %v4541
      %v4798 = vadd.f32 %v3258, %v4542
      %v4799 = vadd.f32 %v3259, %v4543
      %v4800 = vadd.f32 %v3260, %v4544
      %v4801 = vadd.f32 %v3261, %v4545
      %v4802 = vadd.f32 %v3262, %v4546
      %v4803 = vadd.f32 %v3263, %v4547
      %v4804 = vadd.f32 %v3264, %v4548
      %v4805 = vadd.f32 %v3265, %v4549
      %v4806 = vadd.f32 %v3266, %v4550
      %v4807 = vadd.f32 %v3267, %v4551
      %v4808 = vadd.f32 %v3268, %v4552
      %v4809 = vadd.f32 %v3269, %v4553
      %v4810 = vadd.f32 %v3270, %v4554
      %v4811 = vadd.f32 %v3271, %v4555
      %v4812 = vadd.f32 %v3272, %v4556
      %v4813 = vadd.f32 %v3273, %v4557
      %v4814 = vadd.f32 %v3274, %v4558
      %v4815 = vadd.f32 %v3275, %v4559
      %v4816 = vadd.f32 %v3276, %v4560
      %v4817 = vadd.f32 %v3277, %v4561
      %v4818 = vadd.f32 %v3278, %v4562
      %v4819 = vadd.f32 %v3279, %v4563
      %v4820 = vadd.f32 %v3280, %v4564
      %v4821 = vadd.f32 %v3281, %v4565
      %v4822 = vadd.f32 %v3282, %v4566
      %v4823 = vadd.f32 %v3283, %v4567
      %v4824 = vadd.f32 %v3284, %v4568
      %v4825 = vadd.f32 %v3285, %v4569
      %v4826 = vadd.f32 %v3286, %v4570
      %v4827 = vadd.f32 %v3287, %v4571
      %v4828 = vadd.f32 %v3288, %v4572
      %v4829 = vadd.f32 %v3289, %v4573
      %v4830 = vadd.f32 %v3290, %v4574
      %v4831 = vadd.f32 %v3291, %v4575
      %v4832 = vadd.f32 %v3292, %v4576
      %v4833 = vadd.f32 %v3293, %v4577
      %v4834 = vadd.f32 %v3294, %v4578
      %v4835 = vadd.f32 %v3295, %v4579
      %v4836 = vadd.f32 %v3296, %v4580
      %v4837 = vadd.f32 %v3297, %v4581
      %v4838 = vadd.f32 %v3298, %v4582
      %v4839 = vadd.f32 %v3299, %v4583
      %v4840 = vadd.f32 %v3300, %v4584
      %v4841 = vadd.f32 %v3301, %v4585
      %v4842 = vadd.f32 %v3302, %v4586
      %v4843 = vadd.f32 %v3303, %v4587
      %v4844 = vadd.f32 %v3304, %v4588
      %v4845 = vadd.f32 %v3305, %v4589
      %v4846 = vadd.f32 %v3306, %v4590
      %v4847 = vadd.f32 %v3307, %v4591
      %v4848 = vadd.f32 %v3308, %v4592
      %v4849 = vadd.f32 %v3309, %v4593
      %v4850 = vadd.f32 %v3310, %v4594
      %v4851 = vadd.f32 %v3311, %v4595
      %v4852 = vadd.f32 %v3312, %v4596
      %v4853 = vadd.f32 %v3313, %v4597
      %v4854 = vadd.f32 %v3314, %v4598
      %v4855 = vadd.f32 %v3315, %v4599
      %v4856 = vadd.f32 %v3316, %v4600
      %v4857 = vadd.f32 %v3317, %v4601
      %v4858 = vadd.f32 %v3318, %v4602
      %v4859 = vadd.f32 %v3319, %v4603
      %v4860 = vadd.f32 %v3320, %v4604
      %v4861 = vadd.f32 %v3321, %v4605
      %v4862 = vadd.f32 %v3322, %v4606
      %v4863 = vadd.f32 %v3323, %v4607
      %v4864 = vadd.f32 %v3324, %v4608
      %v4865 = vadd.f32 %v3325, %v4609
      %v4866 = vadd.f32 %v3326, %v4610
      %v4867 = vadd.f32 %v3327, %v4611
      %v4868 = vadd.f32 %v3328, %v4612
      %v4869 = vadd.f32 %v3329, %v4613
      %v4870 = vadd.f32 %v3330, %v4614
      %v4871 = vadd.f32 %v3331, %v4615
      %v4872 = vadd.f32 %v3332, %v4616
      %v4873 = vadd.f32 %v3333, %v4617
      %v4874 = vadd.f32 %v3334, %v4618
      %v4875 = vadd.f32 %v3335, %v4619
      %v4876 = vadd.f32 %v3336, %v4620
      %v4877 = vadd.f32 %v3337, %v4621
      %v4878 = vadd.f32 %v3338, %v4622
      %v4879 = vadd.f32 %v3339, %v4623
      %v4880 = vadd.f32 %v3340, %v4624
      %v4881 = vadd.f32 %v3341, %v4625
      %v4882 = vadd.f32 %v3342, %v4626
      %v4883 = vadd.f32 %v3343, %v4627
      %v4884 = vadd.f32 %v3344, %v4628
      %v4885 = vadd.f32 %v3345, %v4629
      %v4886 = vadd.f32 %v3346, %v4630
      %v4887 = vadd.f32 %v3347, %v4631
      %v4888 = vadd.f32 %v3348, %v4632
      %v4889 = vadd.f32 %v3349, %v4633
      %v4890 = vadd.f32 %v3350, %v4634
      %v4891 = vadd.f32 %v3351, %v4635
      %v4892 = vadd.f32 %v3352, %v4636
      %v4893 = vadd.f32 %v3353, %v4637
      %v4894 = vadd.f32 %v3354, %v4638
      %v4895 = vadd.f32 %v3355, %v4639
      %v4896 = vadd.f32 %v3356, %v4640
      %v4897 = vadd.f32 %v3357, %v4641
      %v4898 = vadd.f32 %v3358, %v4642
      %v4899 = vadd.f32 %v3359, %v4643
      %v4900 = vadd.f32 %v3360, %v4644
      %v4901 = vadd.f32 %v3361, %v4645
      %v4902 = vadd.f32 %v3362, %v4646
      %v4903 = vadd.f32 %v3363, %v4647
      %v4904 = vadd.f32 %v3364, %v4648
      %v4905 = vadd.f32 %v3365, %v4649
      %v4906 = vadd.f32 %v3366, %v4650
      %v4907 = vadd.f32 %v3367, %v4651
      %v4908 = vadd.f32 %v3368, %v4652
      %v4909 = vadd.f32 %v3369, %v4653
      %v4910 = vadd.f32 %v3370, %v4654
      %v4911 = vadd.f32 %v3371, %v4655
      %v4912 = vadd.f32 %v3372, %v4656
      %v4913 = vadd.f32 %v3373, %v4657
      %v4914 = vadd.f32 %v3374, %v4658
      %v4915 = vadd.f32 %v3375, %v4659
      %v4916 = vadd.f32 %v3376, %v4660
      %v4917 = vadd.f32 %v3377, %v4661
      %v4918 = vadd.f32 %v3378, %v4662
      %v4919 = vadd.f32 %v3379, %v4663
      %v4920 = vadd.f32 %v3380, %v4664
      %v4921 = vadd.f32 %v3381, %v4665
      %v4922 = vadd.f32 %v3382, %v4666
      %v4923 = vadd.f32 %v3383, %v4667
      %v4924 = vadd.f32 %v3384, %v4668
      %v4925 = vadd.f32 %v3385, %v4669
      %v4926 = vadd.f32 %v3386, %v4670
      %v4927 = vadd.f32 %v3387, %v4671
      %v4928 = vadd.f32 %v3388, %v4672
      %v4929 = vadd.f32 %v3389, %v4673
      %v4930 = vadd.f32 %v3390, %v4674
      %v4931 = vadd.f32 %v3391, %v4675
      %v4932 = vadd.f32 %v3392, %v4676
      %v4933 = vadd.f32 %v3393, %v4677
      %v4934 = vadd.f32 %v3394, %v4678
      %v4935 = vadd.f32 %v3395, %v4679
      %v4936 = vadd.f32 %v3396, %v4680
      %v4937 = vadd.f32 %v3397, %v4681
      %v4938 = vadd.f32 %v3398, %v4682
      %v4939 = vadd.f32 %v3399, %v4683
      %v4940 = vadd.f32 %v3400, %v4684
      %v4941 = vadd.f32 %v3401, %v4685
      %v4942 = vadd.f32 %v3402, %v4686
      %v4943 = vadd.f32 %v3403, %v4687
      %v4944 = vadd.f32 %v3404, %v4688
      %v4945 = vadd.f32 %v3405, %v4689
      %v4946 = vadd.f32 %v3406, %v4690
      %v4947 = vadd.f32 %v3407, %v4691
      %v4948 = vadd.f32 %v3408, %v4692
      %v4949 = vadd.f32 %v3409, %v4693
      %v4950 = vadd.f32 %v3410, %v4694
      %v4951 = vadd.f32 %v3411, %v4695
      %v4952 = vadd.f32 %v3412, %v4696
      %v4953 = vadd.f32 %v3413, %v4697
      %v4954 = vadd.f32 %v3414, %v4698
      %v4955 = vadd.f32 %v3415, %v4699
      %v4956 = vadd.f32 %v3416, %v4700
      %v4957 = vadd.f32 %v3417, %v4701
      %v4958 = vadd.f32 %v3418, %v4702
      %v4959 = vadd.f32 %v3419, %v4703
      %v4960 = vadd.f32 %v3420, %v4704
      %v4961 = vadd.f32 %v3421, %v4705
      %v4962 = vadd.f32 %v3422, %v4706
      %v4963 = vadd.f32 %v3423, %v4707
      %v4964 = vadd.f32 %v3424, %v4708
      %v4965 = vadd.f32 %v3425, %v4709
      %v4966 = vadd.f32 %v3426, %v4710
      %v4967 = vadd.f32 %v3427, %v4711
      %v4968 = vadd.f32 %v3428, %v4712
      %v4969 = vadd.f32 %v3429, %v4713
      %v4970 = vadd.f32 %v3430, %v4714
      %v4971 = vadd.f32 %v3431, %v4715
      %v4972 = vadd.f32 %v3432, %v4716
      %v4973 = vadd.f32 %v3433, %v4717
      %v4974 = vadd.f32 %v3434, %v4718
      %v4975 = vadd.f32 %v3435, %v4719
      %v4976 = vadd.f32 %v3436, %v4720
      %v4977 = vadd.f32 %v3437, %v4721
      %v4978 = vadd.f32 %v3438, %v4722
      %v4979 = vadd.f32 %v3439, %v4723
      %v4980 = vadd.f32 %v3440, %v4724
      %v4981 = vadd.f32 %v3441, %v4725
      %v4982 = vadd.f32 %v3442, %v4726
      %v4983 = vadd.f32 %v3443, %v4727
      %v4984 = vadd.f32 %v3444, %v4728
      %v4985 = vadd.f32 %v3445, %v4729
      %v4986 = vadd.f32 %v3446, %v4730
      %v4987 = vadd.f32 %v3447, %v4731
      %v4988 = vadd.f32 %v3448, %v4732
      %v4989 = vadd.f32 %v3449, %v4733
      %v4990 = vadd.f32 %v3450, %v4734
      %v4991 = vadd.f32 %v3451, %v4735
      %v4992 = vadd.f32 %v3452, %v4736
      %v4993 = vadd.f32 %v3453, %v4737
      %v4994 = vadd.f32 %v3454, %v4738
      %v4995 = vadd.f32 %v3455, %v4739
      %v4996 = vadd.f32 %v3456, %v4740
      %v4997 = vadd.f32 %v3457, %v4741
      %v4998 = vadd.f32 %v3458, %v4742
      %v4999 = vadd.f32 %v3459, %v4743
      %v5000 = vadd.f32 %v3460, %v4744
      %v5001 = vadd.f32 %v3461, %v4745
      %v5002 = vadd.f32 %v3462, %v4746
      %v5003 = vadd.f32 %v3463, %v4747
      %v5004 = vadd.f32 %v3464, %v4748
      %v5005 = vadd.f32 %v3465, %v4749
      %v5006 = vadd.f32 %v3466, %v4750
      %v5007 = vadd.f32 %v3467, %v4751
      %v5008 = vadd.f32 %v3468, %v4752
      %v5009 = vadd.f32 %v3469, %v4753
      %v5010 = vadd.f32 %v3470, %v4754
      %v5011 = vadd.f32 %v3471, %v4755
      %v5012 = vadd.f32 %v3472, %v4756
      %v5013 = vadd.f32 %v3473, %v4757
      %v5014 = vadd.f32 %v3474, %v4758
      %v5015 = vadd.f32 %v3475, %v4759
      %v5016 = vadd.f32 %v3476, %v4760
      %v5017 = vadd.f32 %v3477, %v4761
      %v5018 = vadd.f32 %v3478, %v4762
      %v5019 = vadd.f32 %v3479, %v4763
      %v5020 = vadd.f32 %v3480, %v4764
      %v5021 = vadd.f32 %v3481, %v4765
      %v5022 = vadd.f32 %v3482, %v4766
      %v5023 = vadd.f32 %v3483, %v4767
      %v5024 = vadd.f32 %v3484, %v4768
      %v5025 = vadd.f32 %v3485, %v4769
      %v5026 = vadd.f32 %v3486, %v4770
      %v5027 = vadd.f32 %v3487, %v4771
      %v5028 = vadd.f32 %v3488, %v4772
      %v5029 = vadd.f32 %v3489, %v4773
      %v5030 = vadd.f32 %v3490, %v4774
      %v5031 = vadd.f32 %v3491, %v4775
      %v5032 = vadd.f32 %v3492, %v4776
      %v5033 = vadd.f32 %v3493, %v4777
      %v5034 = vadd.f32 %v3494, %v4778
      %v5035 = vadd.f32 %v3495, %v4779
      %v5036 = vadd.f32 %v3496, %v4780
      %v5037 = vadd.f32 %v3497, %v4781
      %v5038 = vadd.f32 %v3498, %v4782
      %v5039 = vadd.f32 %v3499, %v4783
      %v5040 = vadd.f32 %v3500, %v4784
      %v5041 = vadd.f32 %v3501, %v4785
      %v5042 = vadd.f32 %v3502, %v4786
      %v5043 = vadd.f32 %v3503, %v4787
      %v5044 = vadd.f32 %v3504, %v4788
      %v5045 = vadd.f32 %v3505, %v4789
      %v5046 = vadd.f32 %v3506, %v4790
      %v5047 = vadd.f32 %v3507, %v4791
      %v5048 = vadd.f32 %v3508, %v4792
      %v5049 = vadd.f32 %v3509, %v4793
      %v5050 = vadd.f32 %v3510, %v4794
      %v5051 = vld [vmem:[%s2] sm:$0x1]
      %v5053 = vlaneseq
      %v5054 = vshrl.u32 %v5053, 7
      %v5055 = vsub.s32 0, %v5054
      %v5056 = vrot.slane %v5051, %v5055
      %v5058 = vadd.f32 %v4795, %v5056
      %v5059 = vadd.f32 %v4796, %v5056
      %v5060 = vadd.f32 %v4797, %v5056
      %v5061 = vadd.f32 %v4798, %v5056
      %v5062 = vadd.f32 %v4799, %v5056
      %v5063 = vadd.f32 %v4800, %v5056
      %v5064 = vadd.f32 %v4801, %v5056
      %v5065 = vadd.f32 %v4802, %v5056
      %v5066 = vadd.f32 %v4803, %v5056
      %v5067 = vadd.f32 %v4804, %v5056
      %v5068 = vadd.f32 %v4805, %v5056
      %v5069 = vadd.f32 %v4806, %v5056
      %v5070 = vadd.f32 %v4807, %v5056
      %v5071 = vadd.f32 %v4808, %v5056
      %v5072 = vadd.f32 %v4809, %v5056
      %v5073 = vadd.f32 %v4810, %v5056
      %v5074 = vadd.f32 %v4811, %v5056
      %v5075 = vadd.f32 %v4812, %v5056
      %v5076 = vadd.f32 %v4813, %v5056
      %v5077 = vadd.f32 %v4814, %v5056
      %v5078 = vadd.f32 %v4815, %v5056
      %v5079 = vadd.f32 %v4816, %v5056
      %v5080 = vadd.f32 %v4817, %v5056
      %v5081 = vadd.f32 %v4818, %v5056
      %v5082 = vadd.f32 %v4819, %v5056
      %v5083 = vadd.f32 %v4820, %v5056
      %v5084 = vadd.f32 %v4821, %v5056
      %v5085 = vadd.f32 %v4822, %v5056
      %v5086 = vadd.f32 %v4823, %v5056
      %v5087 = vadd.f32 %v4824, %v5056
      %v5088 = vadd.f32 %v4825, %v5056
      %v5089 = vadd.f32 %v4826, %v5056
      %v5090 = vadd.f32 %v4827, %v5056
      %v5091 = vadd.f32 %v4828, %v5056
      %v5092 = vadd.f32 %v4829, %v5056
      %v5093 = vadd.f32 %v4830, %v5056
      %v5094 = vadd.f32 %v4831, %v5056
      %v5095 = vadd.f32 %v4832, %v5056
      %v5096 = vadd.f32 %v4833, %v5056
      %v5097 = vadd.f32 %v4834, %v5056
      %v5098 = vadd.f32 %v4835, %v5056
      %v5099 = vadd.f32 %v4836, %v5056
      %v5100 = vadd.f32 %v4837, %v5056
      %v5101 = vadd.f32 %v4838, %v5056
      %v5102 = vadd.f32 %v4839, %v5056
      %v5103 = vadd.f32 %v4840, %v5056
      %v5104 = vadd.f32 %v4841, %v5056
      %v5105 = vadd.f32 %v4842, %v5056
      %v5106 = vadd.f32 %v4843, %v5056
      %v5107 = vadd.f32 %v4844, %v5056
      %v5108 = vadd.f32 %v4845, %v5056
      %v5109 = vadd.f32 %v4846, %v5056
      %v5110 = vadd.f32 %v4847, %v5056
      %v5111 = vadd.f32 %v4848, %v5056
      %v5112 = vadd.f32 %v4849, %v5056
      %v5113 = vadd.f32 %v4850, %v5056
      %v5114 = vadd.f32 %v4851, %v5056
      %v5115 = vadd.f32 %v4852, %v5056
      %v5116 = vadd.f32 %v4853, %v5056
      %v5117 = vadd.f32 %v4854, %v5056
      %v5118 = vadd.f32 %v4855, %v5056
      %v5119 = vadd.f32 %v4856, %v5056
      %v5120 = vadd.f32 %v4857, %v5056
      %v5121 = vadd.f32 %v4858, %v5056
      %v5122 = vadd.f32 %v4859, %v5056
      %v5123 = vadd.f32 %v4860, %v5056
      %v5124 = vadd.f32 %v4861, %v5056
      %v5125 = vadd.f32 %v4862, %v5056
      %v5126 = vadd.f32 %v4863, %v5056
      %v5127 = vadd.f32 %v4864, %v5056
      %v5128 = vadd.f32 %v4865, %v5056
      %v5129 = vadd.f32 %v4866, %v5056
      %v5130 = vadd.f32 %v4867, %v5056
      %v5131 = vadd.f32 %v4868, %v5056
      %v5132 = vadd.f32 %v4869, %v5056
      %v5133 = vadd.f32 %v4870, %v5056
      %v5134 = vadd.f32 %v4871, %v5056
      %v5135 = vadd.f32 %v4872, %v5056
      %v5136 = vadd.f32 %v4873, %v5056
      %v5137 = vadd.f32 %v4874, %v5056
      %v5138 = vadd.f32 %v4875, %v5056
      %v5139 = vadd.f32 %v4876, %v5056
      %v5140 = vadd.f32 %v4877, %v5056
      %v5141 = vadd.f32 %v4878, %v5056
      %v5142 = vadd.f32 %v4879, %v5056
      %v5143 = vadd.f32 %v4880, %v5056
      %v5144 = vadd.f32 %v4881, %v5056
      %v5145 = vadd.f32 %v4882, %v5056
      %v5146 = vadd.f32 %v4883, %v5056
      %v5147 = vadd.f32 %v4884, %v5056
      %v5148 = vadd.f32 %v4885, %v5056
      %v5149 = vadd.f32 %v4886, %v5056
      %v5150 = vadd.f32 %v4887, %v5056
      %v5151 = vadd.f32 %v4888, %v5056
      %v5152 = vadd.f32 %v4889, %v5056
      %v5153 = vadd.f32 %v4890, %v5056
      %v5154 = vadd.f32 %v4891, %v5056
      %v5155 = vadd.f32 %v4892, %v5056
      %v5156 = vadd.f32 %v4893, %v5056
      %v5157 = vadd.f32 %v4894, %v5056
      %v5158 = vadd.f32 %v4895, %v5056
      %v5159 = vadd.f32 %v4896, %v5056
      %v5160 = vadd.f32 %v4897, %v5056
      %v5161 = vadd.f32 %v4898, %v5056
      %v5162 = vadd.f32 %v4899, %v5056
      %v5163 = vadd.f32 %v4900, %v5056
      %v5164 = vadd.f32 %v4901, %v5056
      %v5165 = vadd.f32 %v4902, %v5056
      %v5166 = vadd.f32 %v4903, %v5056
      %v5167 = vadd.f32 %v4904, %v5056
      %v5168 = vadd.f32 %v4905, %v5056
      %v5169 = vadd.f32 %v4906, %v5056
      %v5170 = vadd.f32 %v4907, %v5056
      %v5171 = vadd.f32 %v4908, %v5056
      %v5172 = vadd.f32 %v4909, %v5056
      %v5173 = vadd.f32 %v4910, %v5056
      %v5174 = vadd.f32 %v4911, %v5056
      %v5175 = vadd.f32 %v4912, %v5056
      %v5176 = vadd.f32 %v4913, %v5056
      %v5177 = vadd.f32 %v4914, %v5056
      %v5178 = vadd.f32 %v4915, %v5056
      %v5179 = vadd.f32 %v4916, %v5056
      %v5180 = vadd.f32 %v4917, %v5056
      %v5181 = vadd.f32 %v4918, %v5056
      %v5182 = vadd.f32 %v4919, %v5056
      %v5183 = vadd.f32 %v4920, %v5056
      %v5184 = vadd.f32 %v4921, %v5056
      %v5185 = vadd.f32 %v4922, %v5056
      %v5186 = vadd.f32 %v4923, %v5056
      %v5187 = vadd.f32 %v4924, %v5056
      %v5188 = vadd.f32 %v4925, %v5056
      %v5189 = vadd.f32 %v4926, %v5056
      %v5190 = vadd.f32 %v4927, %v5056
      %v5191 = vadd.f32 %v4928, %v5056
      %v5192 = vadd.f32 %v4929, %v5056
      %v5193 = vadd.f32 %v4930, %v5056
      %v5194 = vadd.f32 %v4931, %v5056
      %v5195 = vadd.f32 %v4932, %v5056
      %v5196 = vadd.f32 %v4933, %v5056
      %v5197 = vadd.f32 %v4934, %v5056
      %v5198 = vadd.f32 %v4935, %v5056
      %v5199 = vadd.f32 %v4936, %v5056
      %v5200 = vadd.f32 %v4937, %v5056
      %v5201 = vadd.f32 %v4938, %v5056
      %v5202 = vadd.f32 %v4939, %v5056
      %v5203 = vadd.f32 %v4940, %v5056
      %v5204 = vadd.f32 %v4941, %v5056
      %v5205 = vadd.f32 %v4942, %v5056
      %v5206 = vadd.f32 %v4943, %v5056
      %v5207 = vadd.f32 %v4944, %v5056
      %v5208 = vadd.f32 %v4945, %v5056
      %v5209 = vadd.f32 %v4946, %v5056
      %v5210 = vadd.f32 %v4947, %v5056
      %v5211 = vadd.f32 %v4948, %v5056
      %v5212 = vadd.f32 %v4949, %v5056
      %v5213 = vadd.f32 %v4950, %v5056
      %v5214 = vadd.f32 %v4951, %v5056
      %v5215 = vadd.f32 %v4952, %v5056
      %v5216 = vadd.f32 %v4953, %v5056
      %v5217 = vadd.f32 %v4954, %v5056
      %v5218 = vadd.f32 %v4955, %v5056
      %v5219 = vadd.f32 %v4956, %v5056
      %v5220 = vadd.f32 %v4957, %v5056
      %v5221 = vadd.f32 %v4958, %v5056
      %v5222 = vadd.f32 %v4959, %v5056
      %v5223 = vadd.f32 %v4960, %v5056
      %v5224 = vadd.f32 %v4961, %v5056
      %v5225 = vadd.f32 %v4962, %v5056
      %v5226 = vadd.f32 %v4963, %v5056
      %v5227 = vadd.f32 %v4964, %v5056
      %v5228 = vadd.f32 %v4965, %v5056
      %v5229 = vadd.f32 %v4966, %v5056
      %v5230 = vadd.f32 %v4967, %v5056
      %v5231 = vadd.f32 %v4968, %v5056
      %v5232 = vadd.f32 %v4969, %v5056
      %v5233 = vadd.f32 %v4970, %v5056
      %v5234 = vadd.f32 %v4971, %v5056
      %v5235 = vadd.f32 %v4972, %v5056
      %v5236 = vadd.f32 %v4973, %v5056
      %v5237 = vadd.f32 %v4974, %v5056
      %v5238 = vadd.f32 %v4975, %v5056
      %v5239 = vadd.f32 %v4976, %v5056
      %v5240 = vadd.f32 %v4977, %v5056
      %v5241 = vadd.f32 %v4978, %v5056
      %v5242 = vadd.f32 %v4979, %v5056
      %v5243 = vadd.f32 %v4980, %v5056
      %v5244 = vadd.f32 %v4981, %v5056
      %v5245 = vadd.f32 %v4982, %v5056
      %v5246 = vadd.f32 %v4983, %v5056
      %v5247 = vadd.f32 %v4984, %v5056
      %v5248 = vadd.f32 %v4985, %v5056
      %v5249 = vadd.f32 %v4986, %v5056
      %v5250 = vadd.f32 %v4987, %v5056
      %v5251 = vadd.f32 %v4988, %v5056
      %v5252 = vadd.f32 %v4989, %v5056
      %v5253 = vadd.f32 %v4990, %v5056
      %v5254 = vadd.f32 %v4991, %v5056
      %v5255 = vadd.f32 %v4992, %v5056
      %v5256 = vadd.f32 %v4993, %v5056
      %v5257 = vadd.f32 %v4994, %v5056
      %v5258 = vadd.f32 %v4995, %v5056
      %v5259 = vadd.f32 %v4996, %v5056
      %v5260 = vadd.f32 %v4997, %v5056
      %v5261 = vadd.f32 %v4998, %v5056
      %v5262 = vadd.f32 %v4999, %v5056
      %v5263 = vadd.f32 %v5000, %v5056
      %v5264 = vadd.f32 %v5001, %v5056
      %v5265 = vadd.f32 %v5002, %v5056
      %v5266 = vadd.f32 %v5003, %v5056
      %v5267 = vadd.f32 %v5004, %v5056
      %v5268 = vadd.f32 %v5005, %v5056
      %v5269 = vadd.f32 %v5006, %v5056
      %v5270 = vadd.f32 %v5007, %v5056
      %v5271 = vadd.f32 %v5008, %v5056
      %v5272 = vadd.f32 %v5009, %v5056
      %v5273 = vadd.f32 %v5010, %v5056
      %v5274 = vadd.f32 %v5011, %v5056
      %v5275 = vadd.f32 %v5012, %v5056
      %v5276 = vadd.f32 %v5013, %v5056
      %v5277 = vadd.f32 %v5014, %v5056
      %v5278 = vadd.f32 %v5015, %v5056
      %v5279 = vadd.f32 %v5016, %v5056
      %v5280 = vadd.f32 %v5017, %v5056
      %v5281 = vadd.f32 %v5018, %v5056
      %v5282 = vadd.f32 %v5019, %v5056
      %v5283 = vadd.f32 %v5020, %v5056
      %v5284 = vadd.f32 %v5021, %v5056
      %v5285 = vadd.f32 %v5022, %v5056
      %v5286 = vadd.f32 %v5023, %v5056
      %v5287 = vadd.f32 %v5024, %v5056
      %v5288 = vadd.f32 %v5025, %v5056
      %v5289 = vadd.f32 %v5026, %v5056
      %v5290 = vadd.f32 %v5027, %v5056
      %v5291 = vadd.f32 %v5028, %v5056
      %v5292 = vadd.f32 %v5029, %v5056
      %v5293 = vadd.f32 %v5030, %v5056
      %v5294 = vadd.f32 %v5031, %v5056
      %v5295 = vadd.f32 %v5032, %v5056
      %v5296 = vadd.f32 %v5033, %v5056
      %v5297 = vadd.f32 %v5034, %v5056
      %v5298 = vadd.f32 %v5035, %v5056
      %v5299 = vadd.f32 %v5036, %v5056
      %v5300 = vadd.f32 %v5037, %v5056
      %v5301 = vadd.f32 %v5038, %v5056
      %v5302 = vadd.f32 %v5039, %v5056
      %v5303 = vadd.f32 %v5040, %v5056
      %v5304 = vadd.f32 %v5041, %v5056
      %v5305 = vadd.f32 %v5042, %v5056
      %v5306 = vadd.f32 %v5043, %v5056
      %v5307 = vadd.f32 %v5044, %v5056
      %v5308 = vadd.f32 %v5045, %v5056
      %v5309 = vadd.f32 %v5046, %v5056
      %v5310 = vadd.f32 %v5047, %v5056
      %v5311 = vadd.f32 %v5048, %v5056
      %v5312 = vadd.f32 %v5049, %v5056
      %v5313 = vadd.f32 %v5050, %v5056
      %v5314 = vmax.f32 %v5058, -0.5
      %v5315 = vmax.f32 %v5059, -0.5
      %v5316 = vmax.f32 %v5060, -0.5
      %v5317 = vmax.f32 %v5061, -0.5
      %v5318 = vmax.f32 %v5062, -0.5
      %v5319 = vmax.f32 %v5063, -0.5
      %v5320 = vmax.f32 %v5064, -0.5
      %v5321 = vmax.f32 %v5065, -0.5
      %v5322 = vmax.f32 %v5066, -0.5
      %v5323 = vmax.f32 %v5067, -0.5
      %v5324 = vmax.f32 %v5068, -0.5
      %v5325 = vmax.f32 %v5069, -0.5
      %v5326 = vmax.f32 %v5070, -0.5
      %v5327 = vmax.f32 %v5071, -0.5
      %v5328 = vmax.f32 %v5072, -0.5
      %v5329 = vmax.f32 %v5073, -0.5
      %v5330 = vmax.f32 %v5074, -0.5
      %v5331 = vmax.f32 %v5075, -0.5
      %v5332 = vmax.f32 %v5076, -0.5
      %v5333 = vmax.f32 %v5077, -0.5
      %v5334 = vmax.f32 %v5078, -0.5
      %v5335 = vmax.f32 %v5079, -0.5
      %v5336 = vmax.f32 %v5080, -0.5
      %v5337 = vmax.f32 %v5081, -0.5
      %v5338 = vmax.f32 %v5082, -0.5
      %v5339 = vmax.f32 %v5083, -0.5
      %v5340 = vmax.f32 %v5084, -0.5
      %v5341 = vmax.f32 %v5085, -0.5
      %v5342 = vmax.f32 %v5086, -0.5
      %v5343 = vmax.f32 %v5087, -0.5
      %v5344 = vmax.f32 %v5088, -0.5
      %v5345 = vmax.f32 %v5089, -0.5
      %v5346 = vmax.f32 %v5090, -0.5
      %v5347 = vmax.f32 %v5091, -0.5
      %v5348 = vmax.f32 %v5092, -0.5
      %v5349 = vmax.f32 %v5093, -0.5
      %v5350 = vmax.f32 %v5094, -0.5
      %v5351 = vmax.f32 %v5095, -0.5
      %v5352 = vmax.f32 %v5096, -0.5
      %v5353 = vmax.f32 %v5097, -0.5
      %v5354 = vmax.f32 %v5098, -0.5
      %v5355 = vmax.f32 %v5099, -0.5
      %v5356 = vmax.f32 %v5100, -0.5
      %v5357 = vmax.f32 %v5101, -0.5
      %v5358 = vmax.f32 %v5102, -0.5
      %v5359 = vmax.f32 %v5103, -0.5
      %v5360 = vmax.f32 %v5104, -0.5
      %v5361 = vmax.f32 %v5105, -0.5
      %v5362 = vmax.f32 %v5106, -0.5
      %v5363 = vmax.f32 %v5107, -0.5
      %v5364 = vmax.f32 %v5108, -0.5
      %v5365 = vmax.f32 %v5109, -0.5
      %v5366 = vmax.f32 %v5110, -0.5
      %v5367 = vmax.f32 %v5111, -0.5
      %v5368 = vmax.f32 %v5112, -0.5
      %v5369 = vmax.f32 %v5113, -0.5
      %v5370 = vmax.f32 %v5114, -0.5
      %v5371 = vmax.f32 %v5115, -0.5
      %v5372 = vmax.f32 %v5116, -0.5
      %v5373 = vmax.f32 %v5117, -0.5
      %v5374 = vmax.f32 %v5118, -0.5
      %v5375 = vmax.f32 %v5119, -0.5
      %v5376 = vmax.f32 %v5120, -0.5
      %v5377 = vmax.f32 %v5121, -0.5
      %v5378 = vmax.f32 %v5122, -0.5
      %v5379 = vmax.f32 %v5123, -0.5
      %v5380 = vmax.f32 %v5124, -0.5
      %v5381 = vmax.f32 %v5125, -0.5
      %v5382 = vmax.f32 %v5126, -0.5
      %v5383 = vmax.f32 %v5127, -0.5
      %v5384 = vmax.f32 %v5128, -0.5
      %v5385 = vmax.f32 %v5129, -0.5
      %v5386 = vmax.f32 %v5130, -0.5
      %v5387 = vmax.f32 %v5131, -0.5
      %v5388 = vmax.f32 %v5132, -0.5
      %v5389 = vmax.f32 %v5133, -0.5
      %v5390 = vmax.f32 %v5134, -0.5
      %v5391 = vmax.f32 %v5135, -0.5
      %v5392 = vmax.f32 %v5136, -0.5
      %v5393 = vmax.f32 %v5137, -0.5
      %v5394 = vmax.f32 %v5138, -0.5
      %v5395 = vmax.f32 %v5139, -0.5
      %v5396 = vmax.f32 %v5140, -0.5
      %v5397 = vmax.f32 %v5141, -0.5
      %v5398 = vmax.f32 %v5142, -0.5
      %v5399 = vmax.f32 %v5143, -0.5
      %v5400 = vmax.f32 %v5144, -0.5
      %v5401 = vmax.f32 %v5145, -0.5
      %v5402 = vmax.f32 %v5146, -0.5
      %v5403 = vmax.f32 %v5147, -0.5
      %v5404 = vmax.f32 %v5148, -0.5
      %v5405 = vmax.f32 %v5149, -0.5
      %v5406 = vmax.f32 %v5150, -0.5
      %v5407 = vmax.f32 %v5151, -0.5
      %v5408 = vmax.f32 %v5152, -0.5
      %v5409 = vmax.f32 %v5153, -0.5
      %v5410 = vmax.f32 %v5154, -0.5
      %v5411 = vmax.f32 %v5155, -0.5
      %v5412 = vmax.f32 %v5156, -0.5
      %v5413 = vmax.f32 %v5157, -0.5
      %v5414 = vmax.f32 %v5158, -0.5
      %v5415 = vmax.f32 %v5159, -0.5
      %v5416 = vmax.f32 %v5160, -0.5
      %v5417 = vmax.f32 %v5161, -0.5
      %v5418 = vmax.f32 %v5162, -0.5
      %v5419 = vmax.f32 %v5163, -0.5
      %v5420 = vmax.f32 %v5164, -0.5
      %v5421 = vmax.f32 %v5165, -0.5
      %v5422 = vmax.f32 %v5166, -0.5
      %v5423 = vmax.f32 %v5167, -0.5
      %v5424 = vmax.f32 %v5168, -0.5
      %v5425 = vmax.f32 %v5169, -0.5
      %v5426 = vmax.f32 %v5170, -0.5
      %v5427 = vmax.f32 %v5171, -0.5
      %v5428 = vmax.f32 %v5172, -0.5
      %v5429 = vmax.f32 %v5173, -0.5
      %v5430 = vmax.f32 %v5174, -0.5
      %v5431 = vmax.f32 %v5175, -0.5
      %v5432 = vmax.f32 %v5176, -0.5
      %v5433 = vmax.f32 %v5177, -0.5
      %v5434 = vmax.f32 %v5178, -0.5
      %v5435 = vmax.f32 %v5179, -0.5
      %v5436 = vmax.f32 %v5180, -0.5
      %v5437 = vmax.f32 %v5181, -0.5
      %v5438 = vmax.f32 %v5182, -0.5
      %v5439 = vmax.f32 %v5183, -0.5
      %v5440 = vmax.f32 %v5184, -0.5
      %v5441 = vmax.f32 %v5185, -0.5
      %v5442 = vmax.f32 %v5186, -0.5
      %v5443 = vmax.f32 %v5187, -0.5
      %v5444 = vmax.f32 %v5188, -0.5
      %v5445 = vmax.f32 %v5189, -0.5
      %v5446 = vmax.f32 %v5190, -0.5
      %v5447 = vmax.f32 %v5191, -0.5
      %v5448 = vmax.f32 %v5192, -0.5
      %v5449 = vmax.f32 %v5193, -0.5
      %v5450 = vmax.f32 %v5194, -0.5
      %v5451 = vmax.f32 %v5195, -0.5
      %v5452 = vmax.f32 %v5196, -0.5
      %v5453 = vmax.f32 %v5197, -0.5
      %v5454 = vmax.f32 %v5198, -0.5
      %v5455 = vmax.f32 %v5199, -0.5
      %v5456 = vmax.f32 %v5200, -0.5
      %v5457 = vmax.f32 %v5201, -0.5
      %v5458 = vmax.f32 %v5202, -0.5
      %v5459 = vmax.f32 %v5203, -0.5
      %v5460 = vmax.f32 %v5204, -0.5
      %v5461 = vmax.f32 %v5205, -0.5
      %v5462 = vmax.f32 %v5206, -0.5
      %v5463 = vmax.f32 %v5207, -0.5
      %v5464 = vmax.f32 %v5208, -0.5
      %v5465 = vmax.f32 %v5209, -0.5
      %v5466 = vmax.f32 %v5210, -0.5
      %v5467 = vmax.f32 %v5211, -0.5
      %v5468 = vmax.f32 %v5212, -0.5
      %v5469 = vmax.f32 %v5213, -0.5
      %v5470 = vmax.f32 %v5214, -0.5
      %v5471 = vmax.f32 %v5215, -0.5
      %v5472 = vmax.f32 %v5216, -0.5
      %v5473 = vmax.f32 %v5217, -0.5
      %v5474 = vmax.f32 %v5218, -0.5
      %v5475 = vmax.f32 %v5219, -0.5
      %v5476 = vmax.f32 %v5220, -0.5
      %v5477 = vmax.f32 %v5221, -0.5
      %v5478 = vmax.f32 %v5222, -0.5
      %v5479 = vmax.f32 %v5223, -0.5
      %v5480 = vmax.f32 %v5224, -0.5
      %v5481 = vmax.f32 %v5225, -0.5
      %v5482 = vmax.f32 %v5226, -0.5
      %v5483 = vmax.f32 %v5227, -0.5
      %v5484 = vmax.f32 %v5228, -0.5
      %v5485 = vmax.f32 %v5229, -0.5
      %v5486 = vmax.f32 %v5230, -0.5
      %v5487 = vmax.f32 %v5231, -0.5
      %v5488 = vmax.f32 %v5232, -0.5
      %v5489 = vmax.f32 %v5233, -0.5
      %v5490 = vmax.f32 %v5234, -0.5
      %v5491 = vmax.f32 %v5235, -0.5
      %v5492 = vmax.f32 %v5236, -0.5
      %v5493 = vmax.f32 %v5237, -0.5
      %v5494 = vmax.f32 %v5238, -0.5
      %v5495 = vmax.f32 %v5239, -0.5
      %v5496 = vmax.f32 %v5240, -0.5
      %v5497 = vmax.f32 %v5241, -0.5
      %v5498 = vmax.f32 %v5242, -0.5
      %v5499 = vmax.f32 %v5243, -0.5
      %v5500 = vmax.f32 %v5244, -0.5
      %v5501 = vmax.f32 %v5245, -0.5
      %v5502 = vmax.f32 %v5246, -0.5
      %v5503 = vmax.f32 %v5247, -0.5
      %v5504 = vmax.f32 %v5248, -0.5
      %v5505 = vmax.f32 %v5249, -0.5
      %v5506 = vmax.f32 %v5250, -0.5
      %v5507 = vmax.f32 %v5251, -0.5
      %v5508 = vmax.f32 %v5252, -0.5
      %v5509 = vmax.f32 %v5253, -0.5
      %v5510 = vmax.f32 %v5254, -0.5
      %v5511 = vmax.f32 %v5255, -0.5
      %v5512 = vmax.f32 %v5256, -0.5
      %v5513 = vmax.f32 %v5257, -0.5
      %v5514 = vmax.f32 %v5258, -0.5
      %v5515 = vmax.f32 %v5259, -0.5
      %v5516 = vmax.f32 %v5260, -0.5
      %v5517 = vmax.f32 %v5261, -0.5
      %v5518 = vmax.f32 %v5262, -0.5
      %v5519 = vmax.f32 %v5263, -0.5
      %v5520 = vmax.f32 %v5264, -0.5
      %v5521 = vmax.f32 %v5265, -0.5
      %v5522 = vmax.f32 %v5266, -0.5
      %v5523 = vmax.f32 %v5267, -0.5
      %v5524 = vmax.f32 %v5268, -0.5
      %v5525 = vmax.f32 %v5269, -0.5
      %v5526 = vmax.f32 %v5270, -0.5
      %v5527 = vmax.f32 %v5271, -0.5
      %v5528 = vmax.f32 %v5272, -0.5
      %v5529 = vmax.f32 %v5273, -0.5
      %v5530 = vmax.f32 %v5274, -0.5
      %v5531 = vmax.f32 %v5275, -0.5
      %v5532 = vmax.f32 %v5276, -0.5
      %v5533 = vmax.f32 %v5277, -0.5
      %v5534 = vmax.f32 %v5278, -0.5
      %v5535 = vmax.f32 %v5279, -0.5
      %v5536 = vmax.f32 %v5280, -0.5
      %v5537 = vmax.f32 %v5281, -0.5
      %v5538 = vmax.f32 %v5282, -0.5
      %v5539 = vmax.f32 %v5283, -0.5
      %v5540 = vmax.f32 %v5284, -0.5
      %v5541 = vmax.f32 %v5285, -0.5
      %v5542 = vmax.f32 %v5286, -0.5
      %v5543 = vmax.f32 %v5287, -0.5
      %v5544 = vmax.f32 %v5288, -0.5
      %v5545 = vmax.f32 %v5289, -0.5
      %v5546 = vmax.f32 %v5290, -0.5
      %v5547 = vmax.f32 %v5291, -0.5
      %v5548 = vmax.f32 %v5292, -0.5
      %v5549 = vmax.f32 %v5293, -0.5
      %v5550 = vmax.f32 %v5294, -0.5
      %v5551 = vmax.f32 %v5295, -0.5
      %v5552 = vmax.f32 %v5296, -0.5
      %v5553 = vmax.f32 %v5297, -0.5
      %v5554 = vmax.f32 %v5298, -0.5
      %v5555 = vmax.f32 %v5299, -0.5
      %v5556 = vmax.f32 %v5300, -0.5
      %v5557 = vmax.f32 %v5301, -0.5
      %v5558 = vmax.f32 %v5302, -0.5
      %v5559 = vmax.f32 %v5303, -0.5
      %v5560 = vmax.f32 %v5304, -0.5
      %v5561 = vmax.f32 %v5305, -0.5
      %v5562 = vmax.f32 %v5306, -0.5
      %v5563 = vmax.f32 %v5307, -0.5
      %v5564 = vmax.f32 %v5308, -0.5
      %v5565 = vmax.f32 %v5309, -0.5
      %v5566 = vmax.f32 %v5310, -0.5
      %v5567 = vmax.f32 %v5311, -0.5
      %v5568 = vmax.f32 %v5312, -0.5
      %v5569 = vmax.f32 %v5313, -0.5
      %v5570 = vmin.f32 %v5314, 0.5
      %v5571 = vmin.f32 %v5315, 0.5
      %v5572 = vmin.f32 %v5316, 0.5
      %v5573 = vmin.f32 %v5317, 0.5
      %v5574 = vmin.f32 %v5318, 0.5
      %v5575 = vmin.f32 %v5319, 0.5
      %v5576 = vmin.f32 %v5320, 0.5
      %v5577 = vmin.f32 %v5321, 0.5
      %v5578 = vmin.f32 %v5322, 0.5
      %v5579 = vmin.f32 %v5323, 0.5
      %v5580 = vmin.f32 %v5324, 0.5
      %v5581 = vmin.f32 %v5325, 0.5
      %v5582 = vmin.f32 %v5326, 0.5
      %v5583 = vmin.f32 %v5327, 0.5
      %v5584 = vmin.f32 %v5328, 0.5
      %v5585 = vmin.f32 %v5329, 0.5
      %v5586 = vmin.f32 %v5330, 0.5
      %v5587 = vmin.f32 %v5331, 0.5
      %v5588 = vmin.f32 %v5332, 0.5
      %v5589 = vmin.f32 %v5333, 0.5
      %v5590 = vmin.f32 %v5334, 0.5
      %v5591 = vmin.f32 %v5335, 0.5
      %v5592 = vmin.f32 %v5336, 0.5
      %v5593 = vmin.f32 %v5337, 0.5
      %v5594 = vmin.f32 %v5338, 0.5
      %v5595 = vmin.f32 %v5339, 0.5
      %v5596 = vmin.f32 %v5340, 0.5
      %v5597 = vmin.f32 %v5341, 0.5
      %v5598 = vmin.f32 %v5342, 0.5
      %v5599 = vmin.f32 %v5343, 0.5
      %v5600 = vmin.f32 %v5344, 0.5
      %v5601 = vmin.f32 %v5345, 0.5
      %v5602 = vmin.f32 %v5346, 0.5
      %v5603 = vmin.f32 %v5347, 0.5
      %v5604 = vmin.f32 %v5348, 0.5
      %v5605 = vmin.f32 %v5349, 0.5
      %v5606 = vmin.f32 %v5350, 0.5
      %v5607 = vmin.f32 %v5351, 0.5
      %v5608 = vmin.f32 %v5352, 0.5
      %v5609 = vmin.f32 %v5353, 0.5
      %v5610 = vmin.f32 %v5354, 0.5
      %v5611 = vmin.f32 %v5355, 0.5
      %v5612 = vmin.f32 %v5356, 0.5
      %v5613 = vmin.f32 %v5357, 0.5
      %v5614 = vmin.f32 %v5358, 0.5
      %v5615 = vmin.f32 %v5359, 0.5
      %v5616 = vmin.f32 %v5360, 0.5
      %v5617 = vmin.f32 %v5361, 0.5
      %v5618 = vmin.f32 %v5362, 0.5
      %v5619 = vmin.f32 %v5363, 0.5
      %v5620 = vmin.f32 %v5364, 0.5
      %v5621 = vmin.f32 %v5365, 0.5
      %v5622 = vmin.f32 %v5366, 0.5
      %v5623 = vmin.f32 %v5367, 0.5
      %v5624 = vmin.f32 %v5368, 0.5
      %v5625 = vmin.f32 %v5369, 0.5
      %v5626 = vmin.f32 %v5370, 0.5
      %v5627 = vmin.f32 %v5371, 0.5
      %v5628 = vmin.f32 %v5372, 0.5
      %v5629 = vmin.f32 %v5373, 0.5
      %v5630 = vmin.f32 %v5374, 0.5
      %v5631 = vmin.f32 %v5375, 0.5
      %v5632 = vmin.f32 %v5376, 0.5
      %v5633 = vmin.f32 %v5377, 0.5
      %v5634 = vmin.f32 %v5378, 0.5
      %v5635 = vmin.f32 %v5379, 0.5
      %v5636 = vmin.f32 %v5380, 0.5
      %v5637 = vmin.f32 %v5381, 0.5
      %v5638 = vmin.f32 %v5382, 0.5
      %v5639 = vmin.f32 %v5383, 0.5
      %v5640 = vmin.f32 %v5384, 0.5
      %v5641 = vmin.f32 %v5385, 0.5
      %v5642 = vmin.f32 %v5386, 0.5
      %v5643 = vmin.f32 %v5387, 0.5
      %v5644 = vmin.f32 %v5388, 0.5
      %v5645 = vmin.f32 %v5389, 0.5
      %v5646 = vmin.f32 %v5390, 0.5
      %v5647 = vmin.f32 %v5391, 0.5
      %v5648 = vmin.f32 %v5392, 0.5
      %v5649 = vmin.f32 %v5393, 0.5
      %v5650 = vmin.f32 %v5394, 0.5
      %v5651 = vmin.f32 %v5395, 0.5
      %v5652 = vmin.f32 %v5396, 0.5
      %v5653 = vmin.f32 %v5397, 0.5
      %v5654 = vmin.f32 %v5398, 0.5
      %v5655 = vmin.f32 %v5399, 0.5
      %v5656 = vmin.f32 %v5400, 0.5
      %v5657 = vmin.f32 %v5401, 0.5
      %v5658 = vmin.f32 %v5402, 0.5
      %v5659 = vmin.f32 %v5403, 0.5
      %v5660 = vmin.f32 %v5404, 0.5
      %v5661 = vmin.f32 %v5405, 0.5
      %v5662 = vmin.f32 %v5406, 0.5
      %v5663 = vmin.f32 %v5407, 0.5
      %v5664 = vmin.f32 %v5408, 0.5
      %v5665 = vmin.f32 %v5409, 0.5
      %v5666 = vmin.f32 %v5410, 0.5
      %v5667 = vmin.f32 %v5411, 0.5
      %v5668 = vmin.f32 %v5412, 0.5
      %v5669 = vmin.f32 %v5413, 0.5
      %v5670 = vmin.f32 %v5414, 0.5
      %v5671 = vmin.f32 %v5415, 0.5
      %v5672 = vmin.f32 %v5416, 0.5
      %v5673 = vmin.f32 %v5417, 0.5
      %v5674 = vmin.f32 %v5418, 0.5
      %v5675 = vmin.f32 %v5419, 0.5
      %v5676 = vmin.f32 %v5420, 0.5
      %v5677 = vmin.f32 %v5421, 0.5
      %v5678 = vmin.f32 %v5422, 0.5
      %v5679 = vmin.f32 %v5423, 0.5
      %v5680 = vmin.f32 %v5424, 0.5
      %v5681 = vmin.f32 %v5425, 0.5
      %v5682 = vmin.f32 %v5426, 0.5
      %v5683 = vmin.f32 %v5427, 0.5
      %v5684 = vmin.f32 %v5428, 0.5
      %v5685 = vmin.f32 %v5429, 0.5
      %v5686 = vmin.f32 %v5430, 0.5
      %v5687 = vmin.f32 %v5431, 0.5
      %v5688 = vmin.f32 %v5432, 0.5
      %v5689 = vmin.f32 %v5433, 0.5
      %v5690 = vmin.f32 %v5434, 0.5
      %v5691 = vmin.f32 %v5435, 0.5
      %v5692 = vmin.f32 %v5436, 0.5
      %v5693 = vmin.f32 %v5437, 0.5
      %v5694 = vmin.f32 %v5438, 0.5
      %v5695 = vmin.f32 %v5439, 0.5
      %v5696 = vmin.f32 %v5440, 0.5
      %v5697 = vmin.f32 %v5441, 0.5
      %v5698 = vmin.f32 %v5442, 0.5
      %v5699 = vmin.f32 %v5443, 0.5
      %v5700 = vmin.f32 %v5444, 0.5
      %v5701 = vmin.f32 %v5445, 0.5
      %v5702 = vmin.f32 %v5446, 0.5
      %v5703 = vmin.f32 %v5447, 0.5
      %v5704 = vmin.f32 %v5448, 0.5
      %v5705 = vmin.f32 %v5449, 0.5
      %v5706 = vmin.f32 %v5450, 0.5
      %v5707 = vmin.f32 %v5451, 0.5
      %v5708 = vmin.f32 %v5452, 0.5
      %v5709 = vmin.f32 %v5453, 0.5
      %v5710 = vmin.f32 %v5454, 0.5
      %v5711 = vmin.f32 %v5455, 0.5
      %v5712 = vmin.f32 %v5456, 0.5
      %v5713 = vmin.f32 %v5457, 0.5
      %v5714 = vmin.f32 %v5458, 0.5
      %v5715 = vmin.f32 %v5459, 0.5
      %v5716 = vmin.f32 %v5460, 0.5
      %v5717 = vmin.f32 %v5461, 0.5
      %v5718 = vmin.f32 %v5462, 0.5
      %v5719 = vmin.f32 %v5463, 0.5
      %v5720 = vmin.f32 %v5464, 0.5
      %v5721 = vmin.f32 %v5465, 0.5
      %v5722 = vmin.f32 %v5466, 0.5
      %v5723 = vmin.f32 %v5467, 0.5
      %v5724 = vmin.f32 %v5468, 0.5
      %v5725 = vmin.f32 %v5469, 0.5
      %v5726 = vmin.f32 %v5470, 0.5
      %v5727 = vmin.f32 %v5471, 0.5
      %v5728 = vmin.f32 %v5472, 0.5
      %v5729 = vmin.f32 %v5473, 0.5
      %v5730 = vmin.f32 %v5474, 0.5
      %v5731 = vmin.f32 %v5475, 0.5
      %v5732 = vmin.f32 %v5476, 0.5
      %v5733 = vmin.f32 %v5477, 0.5
      %v5734 = vmin.f32 %v5478, 0.5
      %v5735 = vmin.f32 %v5479, 0.5
      %v5736 = vmin.f32 %v5480, 0.5
      %v5737 = vmin.f32 %v5481, 0.5
      %v5738 = vmin.f32 %v5482, 0.5
      %v5739 = vmin.f32 %v5483, 0.5
      %v5740 = vmin.f32 %v5484, 0.5
      %v5741 = vmin.f32 %v5485, 0.5
      %v5742 = vmin.f32 %v5486, 0.5
      %v5743 = vmin.f32 %v5487, 0.5
      %v5744 = vmin.f32 %v5488, 0.5
      %v5745 = vmin.f32 %v5489, 0.5
      %v5746 = vmin.f32 %v5490, 0.5
      %v5747 = vmin.f32 %v5491, 0.5
      %v5748 = vmin.f32 %v5492, 0.5
      %v5749 = vmin.f32 %v5493, 0.5
      %v5750 = vmin.f32 %v5494, 0.5
      %v5751 = vmin.f32 %v5495, 0.5
      %v5752 = vmin.f32 %v5496, 0.5
      %v5753 = vmin.f32 %v5497, 0.5
      %v5754 = vmin.f32 %v5498, 0.5
      %v5755 = vmin.f32 %v5499, 0.5
      %v5756 = vmin.f32 %v5500, 0.5
      %v5757 = vmin.f32 %v5501, 0.5
      %v5758 = vmin.f32 %v5502, 0.5
      %v5759 = vmin.f32 %v5503, 0.5
      %v5760 = vmin.f32 %v5504, 0.5
      %v5761 = vmin.f32 %v5505, 0.5
      %v5762 = vmin.f32 %v5506, 0.5
      %v5763 = vmin.f32 %v5507, 0.5
      %v5764 = vmin.f32 %v5508, 0.5
      %v5765 = vmin.f32 %v5509, 0.5
      %v5766 = vmin.f32 %v5510, 0.5
      %v5767 = vmin.f32 %v5511, 0.5
      %v5768 = vmin.f32 %v5512, 0.5
      %v5769 = vmin.f32 %v5513, 0.5
      %v5770 = vmin.f32 %v5514, 0.5
      %v5771 = vmin.f32 %v5515, 0.5
      %v5772 = vmin.f32 %v5516, 0.5
      %v5773 = vmin.f32 %v5517, 0.5
      %v5774 = vmin.f32 %v5518, 0.5
      %v5775 = vmin.f32 %v5519, 0.5
      %v5776 = vmin.f32 %v5520, 0.5
      %v5777 = vmin.f32 %v5521, 0.5
      %v5778 = vmin.f32 %v5522, 0.5
      %v5779 = vmin.f32 %v5523, 0.5
      %v5780 = vmin.f32 %v5524, 0.5
      %v5781 = vmin.f32 %v5525, 0.5
      %v5782 = vmin.f32 %v5526, 0.5
      %v5783 = vmin.f32 %v5527, 0.5
      %v5784 = vmin.f32 %v5528, 0.5
      %v5785 = vmin.f32 %v5529, 0.5
      %v5786 = vmin.f32 %v5530, 0.5
      %v5787 = vmin.f32 %v5531, 0.5
      %v5788 = vmin.f32 %v5532, 0.5
      %v5789 = vmin.f32 %v5533, 0.5
      %v5790 = vmin.f32 %v5534, 0.5
      %v5791 = vmin.f32 %v5535, 0.5
      %v5792 = vmin.f32 %v5536, 0.5
      %v5793 = vmin.f32 %v5537, 0.5
      %v5794 = vmin.f32 %v5538, 0.5
      %v5795 = vmin.f32 %v5539, 0.5
      %v5796 = vmin.f32 %v5540, 0.5
      %v5797 = vmin.f32 %v5541, 0.5
      %v5798 = vmin.f32 %v5542, 0.5
      %v5799 = vmin.f32 %v5543, 0.5
      %v5800 = vmin.f32 %v5544, 0.5
      %v5801 = vmin.f32 %v5545, 0.5
      %v5802 = vmin.f32 %v5546, 0.5
      %v5803 = vmin.f32 %v5547, 0.5
      %v5804 = vmin.f32 %v5548, 0.5
      %v5805 = vmin.f32 %v5549, 0.5
      %v5806 = vmin.f32 %v5550, 0.5
      %v5807 = vmin.f32 %v5551, 0.5
      %v5808 = vmin.f32 %v5552, 0.5
      %v5809 = vmin.f32 %v5553, 0.5
      %v5810 = vmin.f32 %v5554, 0.5
      %v5811 = vmin.f32 %v5555, 0.5
      %v5812 = vmin.f32 %v5556, 0.5
      %v5813 = vmin.f32 %v5557, 0.5
      %v5814 = vmin.f32 %v5558, 0.5
      %v5815 = vmin.f32 %v5559, 0.5
      %v5816 = vmin.f32 %v5560, 0.5
      %v5817 = vmin.f32 %v5561, 0.5
      %v5818 = vmin.f32 %v5562, 0.5
      %v5819 = vmin.f32 %v5563, 0.5
      %v5820 = vmin.f32 %v5564, 0.5
      %v5821 = vmin.f32 %v5565, 0.5
      %v5822 = vmin.f32 %v5566, 0.5
      %v5823 = vmin.f32 %v5567, 0.5
      %v5824 = vmin.f32 %v5568, 0.5
      %v5825 = vmin.f32 %v5569, 0.5
      %vm5826 = vcmask 64512
      %5827 = vst.msk [vmem:[%s172] sm:$0xff] %vm5826, %v5570
      %5828 = vst.msk [vmem:[%s172 + $0x8] sm:$0xff] %vm5826, %v5571
      %5829 = vst.msk [vmem:[%s172 + $0x10] sm:$0xff] %vm5826, %v5572
      %5830 = vst.msk [vmem:[%s172 + $0x18] sm:$0xff] %vm5826, %v5573
      %5831 = vst.msk [vmem:[%s172 + $0x20] sm:$0xff] %vm5826, %v5574
      %5832 = vst.msk [vmem:[%s172 + $0x28] sm:$0xff] %vm5826, %v5575
      %5833 = vst.msk [vmem:[%s172 + $0x30] sm:$0xff] %vm5826, %v5576
      %5834 = vst.msk [vmem:[%s172 + $0x38] sm:$0xff] %vm5826, %v5577
      %5835 = vst.msk [vmem:[%s172 + $0x40] sm:$0xff] %vm5826, %v5578
      %5836 = vst.msk [vmem:[%s172 + $0x48] sm:$0xff] %vm5826, %v5579
      %5837 = vst.msk [vmem:[%s172 + $0x50] sm:$0xff] %vm5826, %v5580
      %5838 = vst.msk [vmem:[%s172 + $0x58] sm:$0xff] %vm5826, %v5581
      %5839 = vst.msk [vmem:[%s172 + $0x60] sm:$0xff] %vm5826, %v5582
      %5840 = vst.msk [vmem:[%s172 + $0x68] sm:$0xff] %vm5826, %v5583
      %5841 = vst.msk [vmem:[%s172 + $0x70] sm:$0xff] %vm5826, %v5584
      %5842 = vst.msk [vmem:[%s172 + $0x78] sm:$0xff] %vm5826, %v5585
      %5843 = vst.msk [vmem:[%s172 + $0x80] sm:$0xff] %vm5826, %v5586
      %5844 = vst.msk [vmem:[%s172 + $0x88] sm:$0xff] %vm5826, %v5587
      %5845 = vst.msk [vmem:[%s172 + $0x90] sm:$0xff] %vm5826, %v5588
      %5846 = vst.msk [vmem:[%s172 + $0x98] sm:$0xff] %vm5826, %v5589
      %5847 = vst.msk [vmem:[%s172 + $0xa0] sm:$0xff] %vm5826, %v5590
      %5848 = vst.msk [vmem:[%s172 + $0xa8] sm:$0xff] %vm5826, %v5591
      %5849 = vst.msk [vmem:[%s172 + $0xb0] sm:$0xff] %vm5826, %v5592
      %5850 = vst.msk [vmem:[%s172 + $0xb8] sm:$0xff] %vm5826, %v5593
      %5851 = vst.msk [vmem:[%s172 + $0xc0] sm:$0xff] %vm5826, %v5594
      %5852 = vst.msk [vmem:[%s172 + $0xc8] sm:$0xff] %vm5826, %v5595
      %5853 = vst.msk [vmem:[%s172 + $0xd0] sm:$0xff] %vm5826, %v5596
      %5854 = vst.msk [vmem:[%s172 + $0xd8] sm:$0xff] %vm5826, %v5597
      %5855 = vst.msk [vmem:[%s172 + $0xe0] sm:$0xff] %vm5826, %v5598
      %5856 = vst.msk [vmem:[%s172 + $0xe8] sm:$0xff] %vm5826, %v5599
      %5857 = vst.msk [vmem:[%s172 + $0xf0] sm:$0xff] %vm5826, %v5600
      %5858 = vst.msk [vmem:[%s172 + $0xf8] sm:$0xff] %vm5826, %v5601
      %5859 = vst.msk [vmem:[%s172 + $0x100] sm:$0xff] %vm5826, %v5602
      %5860 = vst.msk [vmem:[%s172 + $0x108] sm:$0xff] %vm5826, %v5603
      %5861 = vst.msk [vmem:[%s172 + $0x110] sm:$0xff] %vm5826, %v5604
      %5862 = vst.msk [vmem:[%s172 + $0x118] sm:$0xff] %vm5826, %v5605
      %5863 = vst.msk [vmem:[%s172 + $0x120] sm:$0xff] %vm5826, %v5606
      %5864 = vst.msk [vmem:[%s172 + $0x128] sm:$0xff] %vm5826, %v5607
      %5865 = vst.msk [vmem:[%s172 + $0x130] sm:$0xff] %vm5826, %v5608
      %5866 = vst.msk [vmem:[%s172 + $0x138] sm:$0xff] %vm5826, %v5609
      %5867 = vst.msk [vmem:[%s172 + $0x140] sm:$0xff] %vm5826, %v5610
      %5868 = vst.msk [vmem:[%s172 + $0x148] sm:$0xff] %vm5826, %v5611
      %5869 = vst.msk [vmem:[%s172 + $0x150] sm:$0xff] %vm5826, %v5612
      %5870 = vst.msk [vmem:[%s172 + $0x158] sm:$0xff] %vm5826, %v5613
      %5871 = vst.msk [vmem:[%s172 + $0x160] sm:$0xff] %vm5826, %v5614
      %5872 = vst.msk [vmem:[%s172 + $0x168] sm:$0xff] %vm5826, %v5615
      %5873 = vst.msk [vmem:[%s172 + $0x170] sm:$0xff] %vm5826, %v5616
      %5874 = vst.msk [vmem:[%s172 + $0x178] sm:$0xff] %vm5826, %v5617
      %5875 = vst.msk [vmem:[%s172 + $0x180] sm:$0xff] %vm5826, %v5618
      %5876 = vst.msk [vmem:[%s172 + $0x188] sm:$0xff] %vm5826, %v5619
      %5877 = vst.msk [vmem:[%s172 + $0x190] sm:$0xff] %vm5826, %v5620
      %5878 = vst.msk [vmem:[%s172 + $0x198] sm:$0xff] %vm5826, %v5621
      %5879 = vst.msk [vmem:[%s172 + $0x1a0] sm:$0xff] %vm5826, %v5622
      %5880 = vst.msk [vmem:[%s172 + $0x1a8] sm:$0xff] %vm5826, %v5623
      %5881 = vst.msk [vmem:[%s172 + $0x1b0] sm:$0xff] %vm5826, %v5624
      %5882 = vst.msk [vmem:[%s172 + $0x1b8] sm:$0xff] %vm5826, %v5625
      %5883 = vst.msk [vmem:[%s172 + $0x1c0] sm:$0xff] %vm5826, %v5626
      %5884 = vst.msk [vmem:[%s172 + $0x1c8] sm:$0xff] %vm5826, %v5627
      %5885 = vst.msk [vmem:[%s172 + $0x1d0] sm:$0xff] %vm5826, %v5628
      %5886 = vst.msk [vmem:[%s172 + $0x1d8] sm:$0xff] %vm5826, %v5629
      %5887 = vst.msk [vmem:[%s172 + $0x1e0] sm:$0xff] %vm5826, %v5630
      %5888 = vst.msk [vmem:[%s172 + $0x1e8] sm:$0xff] %vm5826, %v5631
      %5889 = vst.msk [vmem:[%s172 + $0x1f0] sm:$0xff] %vm5826, %v5632
      %5890 = vst.msk [vmem:[%s172 + $0x1f8] sm:$0xff] %vm5826, %v5633
      %5891 = vst.msk [vmem:[%s172 + $0x200] sm:$0xff] %vm5826, %v5634
      %5892 = vst.msk [vmem:[%s172 + $0x208] sm:$0xff] %vm5826, %v5635
      %5893 = vst.msk [vmem:[%s172 + $0x210] sm:$0xff] %vm5826, %v5636
      %5894 = vst.msk [vmem:[%s172 + $0x218] sm:$0xff] %vm5826, %v5637
      %5895 = vst.msk [vmem:[%s172 + $0x220] sm:$0xff] %vm5826, %v5638
      %5896 = vst.msk [vmem:[%s172 + $0x228] sm:$0xff] %vm5826, %v5639
      %5897 = vst.msk [vmem:[%s172 + $0x230] sm:$0xff] %vm5826, %v5640
      %5898 = vst.msk [vmem:[%s172 + $0x238] sm:$0xff] %vm5826, %v5641
      %5899 = vst.msk [vmem:[%s172 + $0x240] sm:$0xff] %vm5826, %v5642
      %5900 = vst.msk [vmem:[%s172 + $0x248] sm:$0xff] %vm5826, %v5643
      %5901 = vst.msk [vmem:[%s172 + $0x250] sm:$0xff] %vm5826, %v5644
      %5902 = vst.msk [vmem:[%s172 + $0x258] sm:$0xff] %vm5826, %v5645
      %5903 = vst.msk [vmem:[%s172 + $0x260] sm:$0xff] %vm5826, %v5646
      %5904 = vst.msk [vmem:[%s172 + $0x268] sm:$0xff] %vm5826, %v5647
      %5905 = vst.msk [vmem:[%s172 + $0x270] sm:$0xff] %vm5826, %v5648
      %5906 = vst.msk [vmem:[%s172 + $0x278] sm:$0xff] %vm5826, %v5649
      %5907 = vst.msk [vmem:[%s172 + $0x280] sm:$0xff] %vm5826, %v5650
      %5908 = vst.msk [vmem:[%s172 + $0x288] sm:$0xff] %vm5826, %v5651
      %5909 = vst.msk [vmem:[%s172 + $0x290] sm:$0xff] %vm5826, %v5652
      %5910 = vst.msk [vmem:[%s172 + $0x298] sm:$0xff] %vm5826, %v5653
      %5911 = vst.msk [vmem:[%s172 + $0x2a0] sm:$0xff] %vm5826, %v5654
      %5912 = vst.msk [vmem:[%s172 + $0x2a8] sm:$0xff] %vm5826, %v5655
      %5913 = vst.msk [vmem:[%s172 + $0x2b0] sm:$0xff] %vm5826, %v5656
      %5914 = vst.msk [vmem:[%s172 + $0x2b8] sm:$0xff] %vm5826, %v5657
      %5915 = vst.msk [vmem:[%s172 + $0x2c0] sm:$0xff] %vm5826, %v5658
      %5916 = vst.msk [vmem:[%s172 + $0x2c8] sm:$0xff] %vm5826, %v5659
      %5917 = vst.msk [vmem:[%s172 + $0x2d0] sm:$0xff] %vm5826, %v5660
      %5918 = vst.msk [vmem:[%s172 + $0x2d8] sm:$0xff] %vm5826, %v5661
      %5919 = vst.msk [vmem:[%s172 + $0x2e0] sm:$0xff] %vm5826, %v5662
      %5920 = vst.msk [vmem:[%s172 + $0x2e8] sm:$0xff] %vm5826, %v5663
      %5921 = vst.msk [vmem:[%s172 + $0x2f0] sm:$0xff] %vm5826, %v5664
      %5922 = vst.msk [vmem:[%s172 + $0x2f8] sm:$0xff] %vm5826, %v5665
      %5923 = vst.msk [vmem:[%s172 + $0x300] sm:$0xff] %vm5826, %v5666
      %5924 = vst.msk [vmem:[%s172 + $0x308] sm:$0xff] %vm5826, %v5667
      %5925 = vst.msk [vmem:[%s172 + $0x310] sm:$0xff] %vm5826, %v5668
      %5926 = vst.msk [vmem:[%s172 + $0x318] sm:$0xff] %vm5826, %v5669
      %5927 = vst.msk [vmem:[%s172 + $0x320] sm:$0xff] %vm5826, %v5670
      %5928 = vst.msk [vmem:[%s172 + $0x328] sm:$0xff] %vm5826, %v5671
      %5929 = vst.msk [vmem:[%s172 + $0x330] sm:$0xff] %vm5826, %v5672
      %5930 = vst.msk [vmem:[%s172 + $0x338] sm:$0xff] %vm5826, %v5673
      %5931 = vst.msk [vmem:[%s172 + $0x340] sm:$0xff] %vm5826, %v5674
      %5932 = vst.msk [vmem:[%s172 + $0x348] sm:$0xff] %vm5826, %v5675
      %5933 = vst.msk [vmem:[%s172 + $0x350] sm:$0xff] %vm5826, %v5676
      %5934 = vst.msk [vmem:[%s172 + $0x358] sm:$0xff] %vm5826, %v5677
      %5935 = vst.msk [vmem:[%s172 + $0x360] sm:$0xff] %vm5826, %v5678
      %5936 = vst.msk [vmem:[%s172 + $0x368] sm:$0xff] %vm5826, %v5679
      %5937 = vst.msk [vmem:[%s172 + $0x370] sm:$0xff] %vm5826, %v5680
      %5938 = vst.msk [vmem:[%s172 + $0x378] sm:$0xff] %vm5826, %v5681
      %5939 = vst.msk [vmem:[%s172 + $0x380] sm:$0xff] %vm5826, %v5682
      %5940 = vst.msk [vmem:[%s172 + $0x388] sm:$0xff] %vm5826, %v5683
      %5941 = vst.msk [vmem:[%s172 + $0x390] sm:$0xff] %vm5826, %v5684
      %5942 = vst.msk [vmem:[%s172 + $0x398] sm:$0xff] %vm5826, %v5685
      %5943 = vst.msk [vmem:[%s172 + $0x3a0] sm:$0xff] %vm5826, %v5686
      %5944 = vst.msk [vmem:[%s172 + $0x3a8] sm:$0xff] %vm5826, %v5687
      %5945 = vst.msk [vmem:[%s172 + $0x3b0] sm:$0xff] %vm5826, %v5688
      %5946 = vst.msk [vmem:[%s172 + $0x3b8] sm:$0xff] %vm5826, %v5689
      %5947 = vst.msk [vmem:[%s172 + $0x3c0] sm:$0xff] %vm5826, %v5690
      %5948 = vst.msk [vmem:[%s172 + $0x3c8] sm:$0xff] %vm5826, %v5691
      %5949 = vst.msk [vmem:[%s172 + $0x3d0] sm:$0xff] %vm5826, %v5692
      %5950 = vst.msk [vmem:[%s172 + $0x3d8] sm:$0xff] %vm5826, %v5693
      %5951 = vst.msk [vmem:[%s172 + $0x3e0] sm:$0xff] %vm5826, %v5694
      %5952 = vst.msk [vmem:[%s172 + $0x3e8] sm:$0xff] %vm5826, %v5695
      %5953 = vst.msk [vmem:[%s172 + $0x3f0] sm:$0xff] %vm5826, %v5696
      %5954 = vst.msk [vmem:[%s172 + $0x3f8] sm:$0xff] %vm5826, %v5697
      %5955 = vst.msk [vmem:[%s172 + $0x400] sm:$0xff] %vm5826, %v5698
      %5956 = vst.msk [vmem:[%s172 + $0x408] sm:$0xff] %vm5826, %v5699
      %5957 = vst.msk [vmem:[%s172 + $0x410] sm:$0xff] %vm5826, %v5700
      %5958 = vst.msk [vmem:[%s172 + $0x418] sm:$0xff] %vm5826, %v5701
      %5959 = vst.msk [vmem:[%s172 + $0x420] sm:$0xff] %vm5826, %v5702
      %5960 = vst.msk [vmem:[%s172 + $0x428] sm:$0xff] %vm5826, %v5703
      %5961 = vst.msk [vmem:[%s172 + $0x430] sm:$0xff] %vm5826, %v5704
      %5962 = vst.msk [vmem:[%s172 + $0x438] sm:$0xff] %vm5826, %v5705
      %5963 = vst.msk [vmem:[%s172 + $0x440] sm:$0xff] %vm5826, %v5706
      %5964 = vst.msk [vmem:[%s172 + $0x448] sm:$0xff] %vm5826, %v5707
      %5965 = vst.msk [vmem:[%s172 + $0x450] sm:$0xff] %vm5826, %v5708
      %5966 = vst.msk [vmem:[%s172 + $0x458] sm:$0xff] %vm5826, %v5709
      %5967 = vst.msk [vmem:[%s172 + $0x460] sm:$0xff] %vm5826, %v5710
      %5968 = vst.msk [vmem:[%s172 + $0x468] sm:$0xff] %vm5826, %v5711
      %5969 = vst.msk [vmem:[%s172 + $0x470] sm:$0xff] %vm5826, %v5712
      %5970 = vst.msk [vmem:[%s172 + $0x478] sm:$0xff] %vm5826, %v5713
      %5971 = vst.msk [vmem:[%s172 + $0x480] sm:$0xff] %vm5826, %v5714
      %5972 = vst.msk [vmem:[%s172 + $0x488] sm:$0xff] %vm5826, %v5715
      %5973 = vst.msk [vmem:[%s172 + $0x490] sm:$0xff] %vm5826, %v5716
      %5974 = vst.msk [vmem:[%s172 + $0x498] sm:$0xff] %vm5826, %v5717
      %5975 = vst.msk [vmem:[%s172 + $0x4a0] sm:$0xff] %vm5826, %v5718
      %5976 = vst.msk [vmem:[%s172 + $0x4a8] sm:$0xff] %vm5826, %v5719
      %5977 = vst.msk [vmem:[%s172 + $0x4b0] sm:$0xff] %vm5826, %v5720
      %5978 = vst.msk [vmem:[%s172 + $0x4b8] sm:$0xff] %vm5826, %v5721
      %5979 = vst.msk [vmem:[%s172 + $0x4c0] sm:$0xff] %vm5826, %v5722
      %5980 = vst.msk [vmem:[%s172 + $0x4c8] sm:$0xff] %vm5826, %v5723
      %5981 = vst.msk [vmem:[%s172 + $0x4d0] sm:$0xff] %vm5826, %v5724
      %5982 = vst.msk [vmem:[%s172 + $0x4d8] sm:$0xff] %vm5826, %v5725
      %5983 = vst.msk [vmem:[%s172 + $0x4e0] sm:$0xff] %vm5826, %v5726
      %5984 = vst.msk [vmem:[%s172 + $0x4e8] sm:$0xff] %vm5826, %v5727
      %5985 = vst.msk [vmem:[%s172 + $0x4f0] sm:$0xff] %vm5826, %v5728
      %5986 = vst.msk [vmem:[%s172 + $0x4f8] sm:$0xff] %vm5826, %v5729
      %5987 = vst.msk [vmem:[%s172 + $0x500] sm:$0xff] %vm5826, %v5730
      %5988 = vst.msk [vmem:[%s172 + $0x508] sm:$0xff] %vm5826, %v5731
      %5989 = vst.msk [vmem:[%s172 + $0x510] sm:$0xff] %vm5826, %v5732
      %5990 = vst.msk [vmem:[%s172 + $0x518] sm:$0xff] %vm5826, %v5733
      %5991 = vst.msk [vmem:[%s172 + $0x520] sm:$0xff] %vm5826, %v5734
      %5992 = vst.msk [vmem:[%s172 + $0x528] sm:$0xff] %vm5826, %v5735
      %5993 = vst.msk [vmem:[%s172 + $0x530] sm:$0xff] %vm5826, %v5736
      %5994 = vst.msk [vmem:[%s172 + $0x538] sm:$0xff] %vm5826, %v5737
      %5995 = vst.msk [vmem:[%s172 + $0x540] sm:$0xff] %vm5826, %v5738
      %5996 = vst.msk [vmem:[%s172 + $0x548] sm:$0xff] %vm5826, %v5739
      %5997 = vst.msk [vmem:[%s172 + $0x550] sm:$0xff] %vm5826, %v5740
      %5998 = vst.msk [vmem:[%s172 + $0x558] sm:$0xff] %vm5826, %v5741
      %5999 = vst.msk [vmem:[%s172 + $0x560] sm:$0xff] %vm5826, %v5742
      %6000 = vst.msk [vmem:[%s172 + $0x568] sm:$0xff] %vm5826, %v5743
      %6001 = vst.msk [vmem:[%s172 + $0x570] sm:$0xff] %vm5826, %v5744
      %6002 = vst.msk [vmem:[%s172 + $0x578] sm:$0xff] %vm5826, %v5745
      %6003 = vst.msk [vmem:[%s172 + $0x580] sm:$0xff] %vm5826, %v5746
      %6004 = vst.msk [vmem:[%s172 + $0x588] sm:$0xff] %vm5826, %v5747
      %6005 = vst.msk [vmem:[%s172 + $0x590] sm:$0xff] %vm5826, %v5748
      %6006 = vst.msk [vmem:[%s172 + $0x598] sm:$0xff] %vm5826, %v5749
      %6007 = vst.msk [vmem:[%s172 + $0x5a0] sm:$0xff] %vm5826, %v5750
      %6008 = vst.msk [vmem:[%s172 + $0x5a8] sm:$0xff] %vm5826, %v5751
      %6009 = vst.msk [vmem:[%s172 + $0x5b0] sm:$0xff] %vm5826, %v5752
      %6010 = vst.msk [vmem:[%s172 + $0x5b8] sm:$0xff] %vm5826, %v5753
      %6011 = vst.msk [vmem:[%s172 + $0x5c0] sm:$0xff] %vm5826, %v5754
      %6012 = vst.msk [vmem:[%s172 + $0x5c8] sm:$0xff] %vm5826, %v5755
      %6013 = vst.msk [vmem:[%s172 + $0x5d0] sm:$0xff] %vm5826, %v5756
      %6014 = vst.msk [vmem:[%s172 + $0x5d8] sm:$0xff] %vm5826, %v5757
      %6015 = vst.msk [vmem:[%s172 + $0x5e0] sm:$0xff] %vm5826, %v5758
      %6016 = vst.msk [vmem:[%s172 + $0x5e8] sm:$0xff] %vm5826, %v5759
      %6017 = vst.msk [vmem:[%s172 + $0x5f0] sm:$0xff] %vm5826, %v5760
      %6018 = vst.msk [vmem:[%s172 + $0x5f8] sm:$0xff] %vm5826, %v5761
      %6019 = vst.msk [vmem:[%s172 + $0x600] sm:$0xff] %vm5826, %v5762
      %6020 = vst.msk [vmem:[%s172 + $0x608] sm:$0xff] %vm5826, %v5763
      %6021 = vst.msk [vmem:[%s172 + $0x610] sm:$0xff] %vm5826, %v5764
      %6022 = vst.msk [vmem:[%s172 + $0x618] sm:$0xff] %vm5826, %v5765
      %6023 = vst.msk [vmem:[%s172 + $0x620] sm:$0xff] %vm5826, %v5766
      %6024 = vst.msk [vmem:[%s172 + $0x628] sm:$0xff] %vm5826, %v5767
      %6025 = vst.msk [vmem:[%s172 + $0x630] sm:$0xff] %vm5826, %v5768
      %6026 = vst.msk [vmem:[%s172 + $0x638] sm:$0xff] %vm5826, %v5769
      %6027 = vst.msk [vmem:[%s172 + $0x640] sm:$0xff] %vm5826, %v5770
      %6028 = vst.msk [vmem:[%s172 + $0x648] sm:$0xff] %vm5826, %v5771
      %6029 = vst.msk [vmem:[%s172 + $0x650] sm:$0xff] %vm5826, %v5772
      %6030 = vst.msk [vmem:[%s172 + $0x658] sm:$0xff] %vm5826, %v5773
      %6031 = vst.msk [vmem:[%s172 + $0x660] sm:$0xff] %vm5826, %v5774
      %6032 = vst.msk [vmem:[%s172 + $0x668] sm:$0xff] %vm5826, %v5775
      %6033 = vst.msk [vmem:[%s172 + $0x670] sm:$0xff] %vm5826, %v5776
      %6034 = vst.msk [vmem:[%s172 + $0x678] sm:$0xff] %vm5826, %v5777
      %6035 = vst.msk [vmem:[%s172 + $0x680] sm:$0xff] %vm5826, %v5778
      %6036 = vst.msk [vmem:[%s172 + $0x688] sm:$0xff] %vm5826, %v5779
      %6037 = vst.msk [vmem:[%s172 + $0x690] sm:$0xff] %vm5826, %v5780
      %6038 = vst.msk [vmem:[%s172 + $0x698] sm:$0xff] %vm5826, %v5781
      %6039 = vst.msk [vmem:[%s172 + $0x6a0] sm:$0xff] %vm5826, %v5782
      %6040 = vst.msk [vmem:[%s172 + $0x6a8] sm:$0xff] %vm5826, %v5783
      %6041 = vst.msk [vmem:[%s172 + $0x6b0] sm:$0xff] %vm5826, %v5784
      %6042 = vst.msk [vmem:[%s172 + $0x6b8] sm:$0xff] %vm5826, %v5785
      %6043 = vst.msk [vmem:[%s172 + $0x6c0] sm:$0xff] %vm5826, %v5786
      %6044 = vst.msk [vmem:[%s172 + $0x6c8] sm:$0xff] %vm5826, %v5787
      %6045 = vst.msk [vmem:[%s172 + $0x6d0] sm:$0xff] %vm5826, %v5788
      %6046 = vst.msk [vmem:[%s172 + $0x6d8] sm:$0xff] %vm5826, %v5789
      %6047 = vst.msk [vmem:[%s172 + $0x6e0] sm:$0xff] %vm5826, %v5790
      %6048 = vst.msk [vmem:[%s172 + $0x6e8] sm:$0xff] %vm5826, %v5791
      %6049 = vst.msk [vmem:[%s172 + $0x6f0] sm:$0xff] %vm5826, %v5792
      %6050 = vst.msk [vmem:[%s172 + $0x6f8] sm:$0xff] %vm5826, %v5793
      %6051 = vst.msk [vmem:[%s172 + $0x700] sm:$0xff] %vm5826, %v5794
      %6052 = vst.msk [vmem:[%s172 + $0x708] sm:$0xff] %vm5826, %v5795
      %6053 = vst.msk [vmem:[%s172 + $0x710] sm:$0xff] %vm5826, %v5796
      %6054 = vst.msk [vmem:[%s172 + $0x718] sm:$0xff] %vm5826, %v5797
      %6055 = vst.msk [vmem:[%s172 + $0x720] sm:$0xff] %vm5826, %v5798
      %6056 = vst.msk [vmem:[%s172 + $0x728] sm:$0xff] %vm5826, %v5799
      %6057 = vst.msk [vmem:[%s172 + $0x730] sm:$0xff] %vm5826, %v5800
      %6058 = vst.msk [vmem:[%s172 + $0x738] sm:$0xff] %vm5826, %v5801
      %6059 = vst.msk [vmem:[%s172 + $0x740] sm:$0xff] %vm5826, %v5802
      %6060 = vst.msk [vmem:[%s172 + $0x748] sm:$0xff] %vm5826, %v5803
      %6061 = vst.msk [vmem:[%s172 + $0x750] sm:$0xff] %vm5826, %v5804
      %6062 = vst.msk [vmem:[%s172 + $0x758] sm:$0xff] %vm5826, %v5805
      %6063 = vst.msk [vmem:[%s172 + $0x760] sm:$0xff] %vm5826, %v5806
      %6064 = vst.msk [vmem:[%s172 + $0x768] sm:$0xff] %vm5826, %v5807
      %6065 = vst.msk [vmem:[%s172 + $0x770] sm:$0xff] %vm5826, %v5808
      %6066 = vst.msk [vmem:[%s172 + $0x778] sm:$0xff] %vm5826, %v5809
      %6067 = vst.msk [vmem:[%s172 + $0x780] sm:$0xff] %vm5826, %v5810
      %6068 = vst.msk [vmem:[%s172 + $0x788] sm:$0xff] %vm5826, %v5811
      %6069 = vst.msk [vmem:[%s172 + $0x790] sm:$0xff] %vm5826, %v5812
      %6070 = vst.msk [vmem:[%s172 + $0x798] sm:$0xff] %vm5826, %v5813
      %6071 = vst.msk [vmem:[%s172 + $0x7a0] sm:$0xff] %vm5826, %v5814
      %6072 = vst.msk [vmem:[%s172 + $0x7a8] sm:$0xff] %vm5826, %v5815
      %6073 = vst.msk [vmem:[%s172 + $0x7b0] sm:$0xff] %vm5826, %v5816
      %6074 = vst.msk [vmem:[%s172 + $0x7b8] sm:$0xff] %vm5826, %v5817
      %6075 = vst.msk [vmem:[%s172 + $0x7c0] sm:$0xff] %vm5826, %v5818
      %6076 = vst.msk [vmem:[%s172 + $0x7c8] sm:$0xff] %vm5826, %v5819
      %6077 = vst.msk [vmem:[%s172 + $0x7d0] sm:$0xff] %vm5826, %v5820
      %6078 = vst.msk [vmem:[%s172 + $0x7d8] sm:$0xff] %vm5826, %v5821
      %6079 = vst.msk [vmem:[%s172 + $0x7e0] sm:$0xff] %vm5826, %v5822
      %6080 = vst.msk [vmem:[%s172 + $0x7e8] sm:$0xff] %vm5826, %v5823
      %6081 = vst.msk [vmem:[%s172 + $0x7f0] sm:$0xff] %vm5826, %v5824
      %6082 = vst.msk [vmem:[%s172 + $0x7f8] sm:$0xff] %vm5826, %v5825
      %s6083 = smul.u32 256, %s14
      %p6084 = scmp.lt.s32.totalorder %s6083, 511
      %s6085 = scalar_select %p6084, %s6083, 511
      %s6086 = smul.addr %s6085, 8
      %s6087 = scalar_lea.vmem %s3, %s6086
      // Predicated region
      $region33: #{tpu_custom_call.1} parent=31 // pred_check
        %p6088 = pneg %p100
      $region34: #{tpu_custom_call.1} parent=31 // pred_check_branch
        %6090 = sbr.rel (%p6088) target = $region36
      $region35: #{tpu_custom_call.1} parent=31 // pred_region
        %s6091 = smul.u32 256, %s14
      $region36: #{tpu_custom_call.1} parent=31 // pred_fallthru
        _
    $region32: #{tpu_custom_call.1} parent=5 // pred_fallthru
      _
    %p6092 = scmp.le.s32.totalorder 2, %s9
    // Predicated region
    $region37: #{tpu_custom_call.1} parent=5 // pred_check
      %p6093 = pneg %p6092
    $region38: #{tpu_custom_call.1} parent=5 // pred_check_branch
      %6095 = sbr.rel (%p6093) target = $region40
    $region39: #{tpu_custom_call.1} parent=5 // pred_region
      %s6096 = ssub.s32 %s9, 2
      // Predicated region
      $region41: #{tpu_custom_call.1} parent=39 // pred_check
        %p6097 = pneg %p106
      $region42: #{tpu_custom_call.1} parent=39 // pred_check_branch
        %6099 = sbr.rel (%p6097) target = $region44
      $region43: #{tpu_custom_call.1} parent=39 // pred_region
        %s6100 = smul.u32 256, %s15
        %p6101 = scmp.lt.s32.totalorder %s6100, 511
        %s6102 = scalar_select %p6101, %s6100, 511
        %s6103 = smul.addr %s6102, 8
        %s6104 = scalar_lea.vmem %s3, %s6103
      $region44: #{tpu_custom_call.1} parent=39 // pred_fallthru
        _
    $region40: #{tpu_custom_call.1} parent=5 // pred_fallthru
      _
  $region6: #{tpu_custom_call.1} parent=0 // loop_footer
    %s13 = sadd.s32 1, %s9
  $region7: #{tpu_custom_call.1} parent=0 // loop_footer_branch
    %8 = sbr.rel target = $region3
  $region8: #{tpu_custom_call.1} parent=0 // loop_exit
    _

</llo_original>
